<compile_context>
chip_gen: v7x
topology: tpu7x:2x2x1
jax: 0.10.0
libtpu: 0.0.40
codegen_flags: <defaults>
</compile_context>

<pallas_src>
import functools

import jax
import jax.numpy as jnp
from jax import lax
from jax.experimental import pallas as pl
from jax.experimental.pallas import tpu as pltpu


_BLOCK_IDS = 256         # ids gathered per grid step (multiple of 8)
_NUM_OUTSTANDING = 16    # in-flight per-row DMAs per grid step
_MIN_PALLAS_IDS = 64     # below this, XLA's gather beats the kernel fixed cost
_MAX_SMEM_IDS = 1 << 16  # scalar-prefetch bound (1D SMEM pads to next pow2)


def _round_up(x: int, m: int) -> int:
    return ((x + m - 1) // m) * m


def _gather_dma_kernel(ids_ref, table_hbm, out_ref, row_buf, sems, *,
                       block_ids, num_outstanding):
    """Gather `block_ids` rows of the HBM table into one dense (B, E) tile.

    ids_ref   : SMEM (n_pad,) int32  -- scalar-prefetched, pre-clamped flat ids
    table_hbm : ANY/HBM (V, E)       -- embedding table, never fully streamed
    out_ref   : VMEM (block_ids, E)  -- dense output tile for this grid step
    row_buf   : VMEM (block_ids, E)  -- DMA landing buffer
    sems      : DMA semaphores (num_outstanding,)
    """
    base = pl.program_id(0) * block_ids

    def row_copy(j, slot):
        idx = ids_ref[base + j]
        return pltpu.make_async_copy(
            table_hbm.at[pl.ds(idx, 1), :],
            row_buf.at[pl.ds(j, 1), :],
            sems.at[slot],
        )

    # Prime the ring with the first `num_outstanding` row fetches.
    for j in range(num_outstanding):
        row_copy(j, j).start()

    def body(j, carry):
        slot = j % num_outstanding
        row_copy(j, slot).wait()            # row j has landed in row_buf

        nxt = j + num_outstanding

        @pl.when(nxt < block_ids)
        def _():
            row_copy(nxt, slot).start()     # keep the ring full

        return carry

    lax.fori_loop(0, block_ids, body, 0)

    # Single dense (B, E) store: no masked single-sublane writes.
    out_ref[...] = row_buf[...]


def _gather_rows(weight: jax.Array, flat_ids: jax.Array) -> jax.Array:
    """Rows of `weight` (V, E) at integer indices `flat_ids` (n,)."""
    V, E = weight.shape
    n = int(flat_ids.shape[0])
    itemsize = jnp.dtype(weight.dtype).itemsize

    # Hoisted, vectorized clamp: the kernel can never read out of bounds.
    # (PyTorch's nn.Embedding would raise on OOB ids; here they are clamped.)
    flat_ids = jnp.clip(flat_ids.astype(jnp.int32), 0, V - 1)

    # Ids per grid step: multiple of 8 so the output tile is sublane-dense.
    B = min(_BLOCK_IDS, _round_up(n, 8))
    n_pad = _round_up(n, B)

    if n < _MIN_PALLAS_IDS or n_pad > _MAX_SMEM_IDS:
        # Tiny gathers: pallas_call fixed cost dominates, XLA gather wins.
        # Huge id vectors: would blow the scalar-prefetch SMEM budget.
        # TODO(synk): for very large batches, pass ids as a per-step
        # SMEM-blocked input instead of scalar-prefetching the whole vector.
        return jnp.take(weight, flat_ids, axis=0)

    ids_padded = flat_ids if n_pad == n else jnp.pad(flat_ids, (0, n_pad - n))
    num_blocks = n_pad // B
    num_outstanding = min(_NUM_OUTSTANDING, B)

    kernel = functools.partial(
        _gather_dma_kernel, block_ids=B, num_outstanding=num_outstanding)

    out = pl.pallas_call(
        kernel,
        out_shape=jax.ShapeDtypeStruct((n_pad, E), weight.dtype),
        grid_spec=pltpu.PrefetchScalarGridSpec(
            num_scalar_prefetch=1,  # flat ids -> SMEM, readable in the body
            grid=(num_blocks,),
            in_specs=[
                # Table stays in HBM; only the requested rows are DMA'd.
                pl.BlockSpec(memory_space=pl.ANY),
            ],
            out_specs=pl.BlockSpec((B, E), lambda i, ids: (i, 0)),
            scratch_shapes=[
                pltpu.VMEM((B, E), weight.dtype),
                pltpu.SemaphoreType.DMA((num_outstanding,)),
            ],
        ),
        compiler_params=pltpu.CompilerParams(
            # Table lives in HBM, so megacore sharding of id blocks is free
            # (no per-core table duplication, unlike a VMEM-resident table).
            dimension_semantics=("parallel",),
        ),
        cost_estimate=pl.CostEstimate(
            flops=0,
            transcendentals=0,
            # Only gathered rows move (HBM read + output write), not V*E.
            bytes_accessed=int(2 * n_pad * E * itemsize + n_pad * 4),
        ),
    )(ids_padded, weight)

    return out if n_pad == n else out[:n]


def embedding_lookup(weight: jax.Array, ids: jax.Array) -> jax.Array:
    """jnp.take(weight, ids, axis=0) implemented with a Pallas TPU gather."""
    E = weight.shape[1]
    flat_ids = ids.reshape(-1).astype(jnp.int32)
    out = _gather_rows(weight, flat_ids)
    return out.reshape(ids.shape + (E,))


class SkipGramPallas:
    """JAX/Pallas port of the PyTorch SkipGram module's forward pass."""

    def __init__(self, vocab_size, embedding_size, key):
        k_in, k_out = jax.random.split(key)
        # Matches nn.Embedding.weight.data.uniform_(-1, 1).
        self.input_embedding = jax.random.uniform(
            k_in, (vocab_size, embedding_size), jnp.float32, -1.0, 1.0)
        self.output_embedding = jax.random.uniform(
            k_out, (vocab_size, embedding_size), jnp.float32, -1.0, 1.0)
        self.vocab_size = vocab_size
        self.embedding_size = embedding_size

    def __call__(self, input_words, output_words, noise_words):
        E = self.embedding_size

        # Lookup 1: input_embedding[input_words].
        in_words_emb = embedding_lookup(self.input_embedding, input_words)

        # Lookups 2 + 3 both gather from output_embedding: fuse them into one
        # pallas_call by concatenating the flattened indices, split afterwards.
        n_out = int(output_words.size)
        fused_ids = jnp.concatenate(
            [output_words.reshape(-1), noise_words.reshape(-1)]).astype(jnp.int32)
        fused_emb = _gather_rows(self.output_embedding, fused_ids)
        out_words_emb = fused_emb[:n_out].reshape(output_words.shape + (E,))
        noise_words_emb = fused_emb[n_out:].reshape(noise_words.shape + (E,))

        return in_words_emb, out_words_emb, noise_words_emb


if __name__ == "__main__":
    vocab_size = 4096
    embedding_size = 128
    batch = 128
    n_noise = 5

    key = jax.random.PRNGKey(0)
    k_model, k_in, k_out, k_noise = jax.random.split(key, 4)

    model = SkipGramPallas(vocab_size, embedding_size, k_model)

    input_words = jax.random.randint(k_in, (batch,), 0, vocab_size, jnp.int32)
    output_words = jax.random.randint(k_out, (batch,), 0, vocab_size, jnp.int32)
    noise_words = jax.random.randint(
        k_noise, (batch, n_noise), 0, vocab_size, jnp.int32)

    forward = jax.jit(lambda iw, ow, nw: model(iw, ow, nw))
    in_emb, out_emb, noise_emb = forward(input_words, output_words, noise_words)
    jax.block_until_ready((in_emb, out_emb, noise_emb))

    # Reference check against plain-JAX gathers (gather is a bit-exact copy).
    ref_in = jnp.take(model.input_embedding, input_words, axis=0)
    ref_out = jnp.take(model.output_embedding, output_words, axis=0)
    ref_noise = jnp.take(model.output_embedding, noise_words.reshape(-1),
                         axis=0).reshape(batch, n_noise, embedding_size)

    assert in_emb.shape == (batch, embedding_size)
    assert out_emb.shape == (batch, embedding_size)
    assert noise_emb.shape == (batch, n_noise, embedding_size)
    assert jnp.allclose(in_emb, ref_in)
    assert jnp.allclose(out_emb, ref_out)
    assert jnp.allclose(noise_emb, ref_noise)

    print("KERNEL_OK")
</pallas_src>

<mosaic_0001>
module attributes {stable_mosaic.version = 11 : i64} {
  func.func @_gather_dma_kernel(%arg0: i32, %arg1: memref<128xi32, #tpu.memory_space<smem>>, %arg2: memref<4096x128xf32, #tpu.memory_space<any>>, %arg3: memref<128x128xf32, #tpu.memory_space<vmem>>, %arg4: memref<128x128xf32, #tpu.memory_space<vmem>>, %arg5: memref<16x!tpu.dma_semaphore, #tpu.memory_space<semaphore_mem>>) attributes {dimension_semantics = [#tpu.dimension_semantics<parallel>], iteration_bounds = array<i64: 1>, scalar_prefetch = 1 : i64, scratch_operands = 2 : i64, tpu.core_type = #tpu.core_type<tc>, window_params = [{}, {transform_indices = @transform_1, window_bounds = array<i64: 128, 128>}]} {
    %c128_i32 = arith.constant 128 : i32
    %0 = arith.muli %arg0, %c128_i32 : i32
    %c0_i32 = arith.constant 0 : i32
    %1 = arith.addi %0, %c0_i32 : i32
    %2 = arith.index_cast %1 : i32 to index
    %3 = memref.load %arg1[%2] : memref<128xi32, #tpu.memory_space<smem>>
    %c0_i32_0 = arith.constant 0 : i32
    %c0_i32_1 = arith.constant 0 : i32
    %4 = tpu.memref_slice %arg2[%3, %c0_i32_1] : memref<4096x128xf32, #tpu.memory_space<any>> -> memref<1x128xf32, #tpu.memory_space<any>>
    %c0_i32_2 = arith.constant 0 : i32
    %c0_i32_3 = arith.constant 0 : i32
    %5 = tpu.memref_slice %arg4[%c0_i32_2, %c0_i32_3] : memref<128x128xf32, #tpu.memory_space<vmem>> -> memref<1x128xf32, #tpu.memory_space<vmem>>
    %6 = tpu.memref_slice %arg5[%c0_i32_0] : memref<16x!tpu.dma_semaphore, #tpu.memory_space<semaphore_mem>> -> memref<1x!tpu.dma_semaphore, #tpu.memory_space<semaphore_mem>>
    %7 = tpu.memref_squeeze %6 : memref<1x!tpu.dma_semaphore, #tpu.memory_space<semaphore_mem>> -> memref<!tpu.dma_semaphore, #tpu.memory_space<semaphore_mem>>
    tpu.enqueue_dma source(%4 : memref<1x128xf32, #tpu.memory_space<any>>) target(%5 : memref<1x128xf32, #tpu.memory_space<vmem>>) target_semaphore(%7 : memref<!tpu.dma_semaphore, #tpu.memory_space<semaphore_mem>>)
    %c1_i32 = arith.constant 1 : i32
    %8 = arith.addi %0, %c1_i32 : i32
    %9 = arith.index_cast %8 : i32 to index
    %10 = memref.load %arg1[%9] : memref<128xi32, #tpu.memory_space<smem>>
    %c1_i32_4 = arith.constant 1 : i32
    %c0_i32_5 = arith.constant 0 : i32
    %11 = tpu.memref_slice %arg2[%10, %c0_i32_5] : memref<4096x128xf32, #tpu.memory_space<any>> -> memref<1x128xf32, #tpu.memory_space<any>>
    %c1_i32_6 = arith.constant 1 : i32
    %c0_i32_7 = arith.constant 0 : i32
    %12 = tpu.memref_slice %arg4[%c1_i32_6, %c0_i32_7] : memref<128x128xf32, #tpu.memory_space<vmem>> -> memref<1x128xf32, #tpu.memory_space<vmem>>
    %13 = tpu.memref_slice %arg5[%c1_i32_4] : memref<16x!tpu.dma_semaphore, #tpu.memory_space<semaphore_mem>> -> memref<1x!tpu.dma_semaphore, #tpu.memory_space<semaphore_mem>>
    %14 = tpu.memref_squeeze %13 : memref<1x!tpu.dma_semaphore, #tpu.memory_space<semaphore_mem>> -> memref<!tpu.dma_semaphore, #tpu.memory_space<semaphore_mem>>
    tpu.enqueue_dma source(%11 : memref<1x128xf32, #tpu.memory_space<any>>) target(%12 : memref<1x128xf32, #tpu.memory_space<vmem>>) target_semaphore(%14 : memref<!tpu.dma_semaphore, #tpu.memory_space<semaphore_mem>>)
    %c2_i32 = arith.constant 2 : i32
    %15 = arith.addi %0, %c2_i32 : i32
    %16 = arith.index_cast %15 : i32 to index
    %17 = memref.load %arg1[%16] : memref<128xi32, #tpu.memory_space<smem>>
    %c2_i32_8 = arith.constant 2 : i32
    %c0_i32_9 = arith.constant 0 : i32
    %18 = tpu.memref_slice %arg2[%17, %c0_i32_9] : memref<4096x128xf32, #tpu.memory_space<any>> -> memref<1x128xf32, #tpu.memory_space<any>>
    %c2_i32_10 = arith.constant 2 : i32
    %c0_i32_11 = arith.constant 0 : i32
    %19 = tpu.memref_slice %arg4[%c2_i32_10, %c0_i32_11] : memref<128x128xf32, #tpu.memory_space<vmem>> -> memref<1x128xf32, #tpu.memory_space<vmem>>
    %20 = tpu.memref_slice %arg5[%c2_i32_8] : memref<16x!tpu.dma_semaphore, #tpu.memory_space<semaphore_mem>> -> memref<1x!tpu.dma_semaphore, #tpu.memory_space<semaphore_mem>>
    %21 = tpu.memref_squeeze %20 : memref<1x!tpu.dma_semaphore, #tpu.memory_space<semaphore_mem>> -> memref<!tpu.dma_semaphore, #tpu.memory_space<semaphore_mem>>
    tpu.enqueue_dma source(%18 : memref<1x128xf32, #tpu.memory_space<any>>) target(%19 : memref<1x128xf32, #tpu.memory_space<vmem>>) target_semaphore(%21 : memref<!tpu.dma_semaphore, #tpu.memory_space<semaphore_mem>>)
    %c3_i32 = arith.constant 3 : i32
    %22 = arith.addi %0, %c3_i32 : i32
    %23 = arith.index_cast %22 : i32 to index
    %24 = memref.load %arg1[%23] : memref<128xi32, #tpu.memory_space<smem>>
    %c3_i32_12 = arith.constant 3 : i32
    %c0_i32_13 = arith.constant 0 : i32
    %25 = tpu.memref_slice %arg2[%24, %c0_i32_13] : memref<4096x128xf32, #tpu.memory_space<any>> -> memref<1x128xf32, #tpu.memory_space<any>>
    %c3_i32_14 = arith.constant 3 : i32
    %c0_i32_15 = arith.constant 0 : i32
    %26 = tpu.memref_slice %arg4[%c3_i32_14, %c0_i32_15] : memref<128x128xf32, #tpu.memory_space<vmem>> -> memref<1x128xf32, #tpu.memory_space<vmem>>
    %27 = tpu.memref_slice %arg5[%c3_i32_12] : memref<16x!tpu.dma_semaphore, #tpu.memory_space<semaphore_mem>> -> memref<1x!tpu.dma_semaphore, #tpu.memory_space<semaphore_mem>>
    %28 = tpu.memref_squeeze %27 : memref<1x!tpu.dma_semaphore, #tpu.memory_space<semaphore_mem>> -> memref<!tpu.dma_semaphore, #tpu.memory_space<semaphore_mem>>
    tpu.enqueue_dma source(%25 : memref<1x128xf32, #tpu.memory_space<any>>) target(%26 : memref<1x128xf32, #tpu.memory_space<vmem>>) target_semaphore(%28 : memref<!tpu.dma_semaphore, #tpu.memory_space<semaphore_mem>>)
    %c4_i32 = arith.constant 4 : i32
    %29 = arith.addi %0, %c4_i32 : i32
    %30 = arith.index_cast %29 : i32 to index
    %31 = memref.load %arg1[%30] : memref<128xi32, #tpu.memory_space<smem>>
    %c4_i32_16 = arith.constant 4 : i32
    %c0_i32_17 = arith.constant 0 : i32
    %32 = tpu.memref_slice %arg2[%31, %c0_i32_17] : memref<4096x128xf32, #tpu.memory_space<any>> -> memref<1x128xf32, #tpu.memory_space<any>>
    %c4_i32_18 = arith.constant 4 : i32
    %c0_i32_19 = arith.constant 0 : i32
    %33 = tpu.memref_slice %arg4[%c4_i32_18, %c0_i32_19] : memref<128x128xf32, #tpu.memory_space<vmem>> -> memref<1x128xf32, #tpu.memory_space<vmem>>
    %34 = tpu.memref_slice %arg5[%c4_i32_16] : memref<16x!tpu.dma_semaphore, #tpu.memory_space<semaphore_mem>> -> memref<1x!tpu.dma_semaphore, #tpu.memory_space<semaphore_mem>>
    %35 = tpu.memref_squeeze %34 : memref<1x!tpu.dma_semaphore, #tpu.memory_space<semaphore_mem>> -> memref<!tpu.dma_semaphore, #tpu.memory_space<semaphore_mem>>
    tpu.enqueue_dma source(%32 : memref<1x128xf32, #tpu.memory_space<any>>) target(%33 : memref<1x128xf32, #tpu.memory_space<vmem>>) target_semaphore(%35 : memref<!tpu.dma_semaphore, #tpu.memory_space<semaphore_mem>>)
    %c5_i32 = arith.constant 5 : i32
    %36 = arith.addi %0, %c5_i32 : i32
    %37 = arith.index_cast %36 : i32 to index
    %38 = memref.load %arg1[%37] : memref<128xi32, #tpu.memory_space<smem>>
    %c5_i32_20 = arith.constant 5 : i32
    %c0_i32_21 = arith.constant 0 : i32
    %39 = tpu.memref_slice %arg2[%38, %c0_i32_21] : memref<4096x128xf32, #tpu.memory_space<any>> -> memref<1x128xf32, #tpu.memory_space<any>>
    %c5_i32_22 = arith.constant 5 : i32
    %c0_i32_23 = arith.constant 0 : i32
    %40 = tpu.memref_slice %arg4[%c5_i32_22, %c0_i32_23] : memref<128x128xf32, #tpu.memory_space<vmem>> -> memref<1x128xf32, #tpu.memory_space<vmem>>
    %41 = tpu.memref_slice %arg5[%c5_i32_20] : memref<16x!tpu.dma_semaphore, #tpu.memory_space<semaphore_mem>> -> memref<1x!tpu.dma_semaphore, #tpu.memory_space<semaphore_mem>>
    %42 = tpu.memref_squeeze %41 : memref<1x!tpu.dma_semaphore, #tpu.memory_space<semaphore_mem>> -> memref<!tpu.dma_semaphore, #tpu.memory_space<semaphore_mem>>
    tpu.enqueue_dma source(%39 : memref<1x128xf32, #tpu.memory_space<any>>) target(%40 : memref<1x128xf32, #tpu.memory_space<vmem>>) target_semaphore(%42 : memref<!tpu.dma_semaphore, #tpu.memory_space<semaphore_mem>>)
    %c6_i32 = arith.constant 6 : i32
    %43 = arith.addi %0, %c6_i32 : i32
    %44 = arith.index_cast %43 : i32 to index
    %45 = memref.load %arg1[%44] : memref<128xi32, #tpu.memory_space<smem>>
    %c6_i32_24 = arith.constant 6 : i32
    %c0_i32_25 = arith.constant 0 : i32
    %46 = tpu.memref_slice %arg2[%45, %c0_i32_25] : memref<4096x128xf32, #tpu.memory_space<any>> -> memref<1x128xf32, #tpu.memory_space<any>>
    %c6_i32_26 = arith.constant 6 : i32
    %c0_i32_27 = arith.constant 0 : i32
    %47 = tpu.memref_slice %arg4[%c6_i32_26, %c0_i32_27] : memref<128x128xf32, #tpu.memory_space<vmem>> -> memref<1x128xf32, #tpu.memory_space<vmem>>
    %48 = tpu.memref_slice %arg5[%c6_i32_24] : memref<16x!tpu.dma_semaphore, #tpu.memory_space<semaphore_mem>> -> memref<1x!tpu.dma_semaphore, #tpu.memory_space<semaphore_mem>>
    %49 = tpu.memref_squeeze %48 : memref<1x!tpu.dma_semaphore, #tpu.memory_space<semaphore_mem>> -> memref<!tpu.dma_semaphore, #tpu.memory_space<semaphore_mem>>
    tpu.enqueue_dma source(%46 : memref<1x128xf32, #tpu.memory_space<any>>) target(%47 : memref<1x128xf32, #tpu.memory_space<vmem>>) target_semaphore(%49 : memref<!tpu.dma_semaphore, #tpu.memory_space<semaphore_mem>>)
    %c7_i32 = arith.constant 7 : i32
    %50 = arith.addi %0, %c7_i32 : i32
    %51 = arith.index_cast %50 : i32 to index
    %52 = memref.load %arg1[%51] : memref<128xi32, #tpu.memory_space<smem>>
    %c7_i32_28 = arith.constant 7 : i32
    %c0_i32_29 = arith.constant 0 : i32
    %53 = tpu.memref_slice %arg2[%52, %c0_i32_29] : memref<4096x128xf32, #tpu.memory_space<any>> -> memref<1x128xf32, #tpu.memory_space<any>>
    %c7_i32_30 = arith.constant 7 : i32
    %c0_i32_31 = arith.constant 0 : i32
    %54 = tpu.memref_slice %arg4[%c7_i32_30, %c0_i32_31] : memref<128x128xf32, #tpu.memory_space<vmem>> -> memref<1x128xf32, #tpu.memory_space<vmem>>
    %55 = tpu.memref_slice %arg5[%c7_i32_28] : memref<16x!tpu.dma_semaphore, #tpu.memory_space<semaphore_mem>> -> memref<1x!tpu.dma_semaphore, #tpu.memory_space<semaphore_mem>>
    %56 = tpu.memref_squeeze %55 : memref<1x!tpu.dma_semaphore, #tpu.memory_space<semaphore_mem>> -> memref<!tpu.dma_semaphore, #tpu.memory_space<semaphore_mem>>
    tpu.enqueue_dma source(%53 : memref<1x128xf32, #tpu.memory_space<any>>) target(%54 : memref<1x128xf32, #tpu.memory_space<vmem>>) target_semaphore(%56 : memref<!tpu.dma_semaphore, #tpu.memory_space<semaphore_mem>>)
    %c8_i32 = arith.constant 8 : i32
    %57 = arith.addi %0, %c8_i32 : i32
    %58 = arith.index_cast %57 : i32 to index
    %59 = memref.load %arg1[%58] : memref<128xi32, #tpu.memory_space<smem>>
    %c8_i32_32 = arith.constant 8 : i32
    %c0_i32_33 = arith.constant 0 : i32
    %60 = tpu.memref_slice %arg2[%59, %c0_i32_33] : memref<4096x128xf32, #tpu.memory_space<any>> -> memref<1x128xf32, #tpu.memory_space<any>>
    %c8_i32_34 = arith.constant 8 : i32
    %c0_i32_35 = arith.constant 0 : i32
    %61 = tpu.memref_slice %arg4[%c8_i32_34, %c0_i32_35] : memref<128x128xf32, #tpu.memory_space<vmem>> -> memref<1x128xf32, #tpu.memory_space<vmem>>
    %62 = tpu.memref_slice %arg5[%c8_i32_32] : memref<16x!tpu.dma_semaphore, #tpu.memory_space<semaphore_mem>> -> memref<1x!tpu.dma_semaphore, #tpu.memory_space<semaphore_mem>>
    %63 = tpu.memref_squeeze %62 : memref<1x!tpu.dma_semaphore, #tpu.memory_space<semaphore_mem>> -> memref<!tpu.dma_semaphore, #tpu.memory_space<semaphore_mem>>
    tpu.enqueue_dma source(%60 : memref<1x128xf32, #tpu.memory_space<any>>) target(%61 : memref<1x128xf32, #tpu.memory_space<vmem>>) target_semaphore(%63 : memref<!tpu.dma_semaphore, #tpu.memory_space<semaphore_mem>>)
    %c9_i32 = arith.constant 9 : i32
    %64 = arith.addi %0, %c9_i32 : i32
    %65 = arith.index_cast %64 : i32 to index
    %66 = memref.load %arg1[%65] : memref<128xi32, #tpu.memory_space<smem>>
    %c9_i32_36 = arith.constant 9 : i32
    %c0_i32_37 = arith.constant 0 : i32
    %67 = tpu.memref_slice %arg2[%66, %c0_i32_37] : memref<4096x128xf32, #tpu.memory_space<any>> -> memref<1x128xf32, #tpu.memory_space<any>>
    %c9_i32_38 = arith.constant 9 : i32
    %c0_i32_39 = arith.constant 0 : i32
    %68 = tpu.memref_slice %arg4[%c9_i32_38, %c0_i32_39] : memref<128x128xf32, #tpu.memory_space<vmem>> -> memref<1x128xf32, #tpu.memory_space<vmem>>
    %69 = tpu.memref_slice %arg5[%c9_i32_36] : memref<16x!tpu.dma_semaphore, #tpu.memory_space<semaphore_mem>> -> memref<1x!tpu.dma_semaphore, #tpu.memory_space<semaphore_mem>>
    %70 = tpu.memref_squeeze %69 : memref<1x!tpu.dma_semaphore, #tpu.memory_space<semaphore_mem>> -> memref<!tpu.dma_semaphore, #tpu.memory_space<semaphore_mem>>
    tpu.enqueue_dma source(%67 : memref<1x128xf32, #tpu.memory_space<any>>) target(%68 : memref<1x128xf32, #tpu.memory_space<vmem>>) target_semaphore(%70 : memref<!tpu.dma_semaphore, #tpu.memory_space<semaphore_mem>>)
    %c10_i32 = arith.constant 10 : i32
    %71 = arith.addi %0, %c10_i32 : i32
    %72 = arith.index_cast %71 : i32 to index
    %73 = memref.load %arg1[%72] : memref<128xi32, #tpu.memory_space<smem>>
    %c10_i32_40 = arith.constant 10 : i32
    %c0_i32_41 = arith.constant 0 : i32
    %74 = tpu.memref_slice %arg2[%73, %c0_i32_41] : memref<4096x128xf32, #tpu.memory_space<any>> -> memref<1x128xf32, #tpu.memory_space<any>>
    %c10_i32_42 = arith.constant 10 : i32
    %c0_i32_43 = arith.constant 0 : i32
    %75 = tpu.memref_slice %arg4[%c10_i32_42, %c0_i32_43] : memref<128x128xf32, #tpu.memory_space<vmem>> -> memref<1x128xf32, #tpu.memory_space<vmem>>
    %76 = tpu.memref_slice %arg5[%c10_i32_40] : memref<16x!tpu.dma_semaphore, #tpu.memory_space<semaphore_mem>> -> memref<1x!tpu.dma_semaphore, #tpu.memory_space<semaphore_mem>>
    %77 = tpu.memref_squeeze %76 : memref<1x!tpu.dma_semaphore, #tpu.memory_space<semaphore_mem>> -> memref<!tpu.dma_semaphore, #tpu.memory_space<semaphore_mem>>
    tpu.enqueue_dma source(%74 : memref<1x128xf32, #tpu.memory_space<any>>) target(%75 : memref<1x128xf32, #tpu.memory_space<vmem>>) target_semaphore(%77 : memref<!tpu.dma_semaphore, #tpu.memory_space<semaphore_mem>>)
    %c11_i32 = arith.constant 11 : i32
    %78 = arith.addi %0, %c11_i32 : i32
    %79 = arith.index_cast %78 : i32 to index
    %80 = memref.load %arg1[%79] : memref<128xi32, #tpu.memory_space<smem>>
    %c11_i32_44 = arith.constant 11 : i32
    %c0_i32_45 = arith.constant 0 : i32
    %81 = tpu.memref_slice %arg2[%80, %c0_i32_45] : memref<4096x128xf32, #tpu.memory_space<any>> -> memref<1x128xf32, #tpu.memory_space<any>>
    %c11_i32_46 = arith.constant 11 : i32
    %c0_i32_47 = arith.constant 0 : i32
    %82 = tpu.memref_slice %arg4[%c11_i32_46, %c0_i32_47] : memref<128x128xf32, #tpu.memory_space<vmem>> -> memref<1x128xf32, #tpu.memory_space<vmem>>
    %83 = tpu.memref_slice %arg5[%c11_i32_44] : memref<16x!tpu.dma_semaphore, #tpu.memory_space<semaphore_mem>> -> memref<1x!tpu.dma_semaphore, #tpu.memory_space<semaphore_mem>>
    %84 = tpu.memref_squeeze %83 : memref<1x!tpu.dma_semaphore, #tpu.memory_space<semaphore_mem>> -> memref<!tpu.dma_semaphore, #tpu.memory_space<semaphore_mem>>
    tpu.enqueue_dma source(%81 : memref<1x128xf32, #tpu.memory_space<any>>) target(%82 : memref<1x128xf32, #tpu.memory_space<vmem>>) target_semaphore(%84 : memref<!tpu.dma_semaphore, #tpu.memory_space<semaphore_mem>>)
    %c12_i32 = arith.constant 12 : i32
    %85 = arith.addi %0, %c12_i32 : i32
    %86 = arith.index_cast %85 : i32 to index
    %87 = memref.load %arg1[%86] : memref<128xi32, #tpu.memory_space<smem>>
    %c12_i32_48 = arith.constant 12 : i32
    %c0_i32_49 = arith.constant 0 : i32
    %88 = tpu.memref_slice %arg2[%87, %c0_i32_49] : memref<4096x128xf32, #tpu.memory_space<any>> -> memref<1x128xf32, #tpu.memory_space<any>>
    %c12_i32_50 = arith.constant 12 : i32
    %c0_i32_51 = arith.constant 0 : i32
    %89 = tpu.memref_slice %arg4[%c12_i32_50, %c0_i32_51] : memref<128x128xf32, #tpu.memory_space<vmem>> -> memref<1x128xf32, #tpu.memory_space<vmem>>
    %90 = tpu.memref_slice %arg5[%c12_i32_48] : memref<16x!tpu.dma_semaphore, #tpu.memory_space<semaphore_mem>> -> memref<1x!tpu.dma_semaphore, #tpu.memory_space<semaphore_mem>>
    %91 = tpu.memref_squeeze %90 : memref<1x!tpu.dma_semaphore, #tpu.memory_space<semaphore_mem>> -> memref<!tpu.dma_semaphore, #tpu.memory_space<semaphore_mem>>
    tpu.enqueue_dma source(%88 : memref<1x128xf32, #tpu.memory_space<any>>) target(%89 : memref<1x128xf32, #tpu.memory_space<vmem>>) target_semaphore(%91 : memref<!tpu.dma_semaphore, #tpu.memory_space<semaphore_mem>>)
    %c13_i32 = arith.constant 13 : i32
    %92 = arith.addi %0, %c13_i32 : i32
    %93 = arith.index_cast %92 : i32 to index
    %94 = memref.load %arg1[%93] : memref<128xi32, #tpu.memory_space<smem>>
    %c13_i32_52 = arith.constant 13 : i32
    %c0_i32_53 = arith.constant 0 : i32
    %95 = tpu.memref_slice %arg2[%94, %c0_i32_53] : memref<4096x128xf32, #tpu.memory_space<any>> -> memref<1x128xf32, #tpu.memory_space<any>>
    %c13_i32_54 = arith.constant 13 : i32
    %c0_i32_55 = arith.constant 0 : i32
    %96 = tpu.memref_slice %arg4[%c13_i32_54, %c0_i32_55] : memref<128x128xf32, #tpu.memory_space<vmem>> -> memref<1x128xf32, #tpu.memory_space<vmem>>
    %97 = tpu.memref_slice %arg5[%c13_i32_52] : memref<16x!tpu.dma_semaphore, #tpu.memory_space<semaphore_mem>> -> memref<1x!tpu.dma_semaphore, #tpu.memory_space<semaphore_mem>>
    %98 = tpu.memref_squeeze %97 : memref<1x!tpu.dma_semaphore, #tpu.memory_space<semaphore_mem>> -> memref<!tpu.dma_semaphore, #tpu.memory_space<semaphore_mem>>
    tpu.enqueue_dma source(%95 : memref<1x128xf32, #tpu.memory_space<any>>) target(%96 : memref<1x128xf32, #tpu.memory_space<vmem>>) target_semaphore(%98 : memref<!tpu.dma_semaphore, #tpu.memory_space<semaphore_mem>>)
    %c14_i32 = arith.constant 14 : i32
    %99 = arith.addi %0, %c14_i32 : i32
    %100 = arith.index_cast %99 : i32 to index
    %101 = memref.load %arg1[%100] : memref<128xi32, #tpu.memory_space<smem>>
    %c14_i32_56 = arith.constant 14 : i32
    %c0_i32_57 = arith.constant 0 : i32
    %102 = tpu.memref_slice %arg2[%101, %c0_i32_57] : memref<4096x128xf32, #tpu.memory_space<any>> -> memref<1x128xf32, #tpu.memory_space<any>>
    %c14_i32_58 = arith.constant 14 : i32
    %c0_i32_59 = arith.constant 0 : i32
    %103 = tpu.memref_slice %arg4[%c14_i32_58, %c0_i32_59] : memref<128x128xf32, #tpu.memory_space<vmem>> -> memref<1x128xf32, #tpu.memory_space<vmem>>
    %104 = tpu.memref_slice %arg5[%c14_i32_56] : memref<16x!tpu.dma_semaphore, #tpu.memory_space<semaphore_mem>> -> memref<1x!tpu.dma_semaphore, #tpu.memory_space<semaphore_mem>>
    %105 = tpu.memref_squeeze %104 : memref<1x!tpu.dma_semaphore, #tpu.memory_space<semaphore_mem>> -> memref<!tpu.dma_semaphore, #tpu.memory_space<semaphore_mem>>
    tpu.enqueue_dma source(%102 : memref<1x128xf32, #tpu.memory_space<any>>) target(%103 : memref<1x128xf32, #tpu.memory_space<vmem>>) target_semaphore(%105 : memref<!tpu.dma_semaphore, #tpu.memory_space<semaphore_mem>>)
    %c15_i32 = arith.constant 15 : i32
    %106 = arith.addi %0, %c15_i32 : i32
    %107 = arith.index_cast %106 : i32 to index
    %108 = memref.load %arg1[%107] : memref<128xi32, #tpu.memory_space<smem>>
    %c15_i32_60 = arith.constant 15 : i32
    %c0_i32_61 = arith.constant 0 : i32
    %109 = tpu.memref_slice %arg2[%108, %c0_i32_61] : memref<4096x128xf32, #tpu.memory_space<any>> -> memref<1x128xf32, #tpu.memory_space<any>>
    %c15_i32_62 = arith.constant 15 : i32
    %c0_i32_63 = arith.constant 0 : i32
    %110 = tpu.memref_slice %arg4[%c15_i32_62, %c0_i32_63] : memref<128x128xf32, #tpu.memory_space<vmem>> -> memref<1x128xf32, #tpu.memory_space<vmem>>
    %111 = tpu.memref_slice %arg5[%c15_i32_60] : memref<16x!tpu.dma_semaphore, #tpu.memory_space<semaphore_mem>> -> memref<1x!tpu.dma_semaphore, #tpu.memory_space<semaphore_mem>>
    %112 = tpu.memref_squeeze %111 : memref<1x!tpu.dma_semaphore, #tpu.memory_space<semaphore_mem>> -> memref<!tpu.dma_semaphore, #tpu.memory_space<semaphore_mem>>
    tpu.enqueue_dma source(%109 : memref<1x128xf32, #tpu.memory_space<any>>) target(%110 : memref<1x128xf32, #tpu.memory_space<vmem>>) target_semaphore(%112 : memref<!tpu.dma_semaphore, #tpu.memory_space<semaphore_mem>>)
    %c0_i32_64 = arith.constant 0 : i32
    %c128_i32_65 = arith.constant 128 : i32
    %113 = arith.addi %c0_i32_64, %c128_i32_65 : i32
    %c1_i32_66 = arith.constant 1 : i32
    scf.for %arg6 = %c0_i32_64 to %113 step %c1_i32_66  : i32 {
      %c16_i32 = arith.constant 16 : i32
      %c0_i32_71 = arith.constant 0 : i32
      %116 = arith.cmpi eq, %c16_i32, %c0_i32_71 : i32
      %c1_i32_72 = arith.constant 1 : i32
      %117 = arith.select %116, %c1_i32_72, %c16_i32 : i32
      %118 = arith.remsi %arg6, %117 : i32
      %c0_i32_73 = arith.constant 0 : i32
      %119 = arith.cmpi ne, %118, %c0_i32_73 : i32
      %c0_i32_74 = arith.constant 0 : i32
      %120 = arith.cmpi slt, %118, %c0_i32_74 : i32
      %c0_i32_75 = arith.constant 0 : i32
      %121 = arith.cmpi slt, %117, %c0_i32_75 : i32
      %122 = arith.xori %120, %121 : i1
      %123 = arith.andi %122, %119 : i1
      %124 = arith.addi %118, %117 : i32
      %125 = arith.select %123, %124, %118 : i32
      %126 = arith.addi %0, %arg6 : i32
      %127 = arith.index_cast %126 : i32 to index
      %128 = memref.load %arg1[%127] : memref<128xi32, #tpu.memory_space<smem>>
      %c0_i32_76 = arith.constant 0 : i32
      %129 = tpu.memref_slice %arg2[%128, %c0_i32_76] : memref<4096x128xf32, #tpu.memory_space<any>> -> memref<1x128xf32, #tpu.memory_space<any>>
      %c0_i32_77 = arith.constant 0 : i32
      %130 = tpu.memref_slice %arg4[%arg6, %c0_i32_77] : memref<128x128xf32, #tpu.memory_space<vmem>> -> memref<1x128xf32, #tpu.memory_space<vmem>>
      %131 = tpu.memref_slice %arg5[%125] : memref<16x!tpu.dma_semaphore, #tpu.memory_space<semaphore_mem>> -> memref<1x!tpu.dma_semaphore, #tpu.memory_space<semaphore_mem>>
      %132 = tpu.memref_squeeze %131 : memref<1x!tpu.dma_semaphore, #tpu.memory_space<semaphore_mem>> -> memref<!tpu.dma_semaphore, #tpu.memory_space<semaphore_mem>>
      tpu.wait_dma2 semaphore(%132 : memref<!tpu.dma_semaphore, #tpu.memory_space<semaphore_mem>>) src(%129 : memref<1x128xf32, #tpu.memory_space<any>>) dst(%130 : memref<1x128xf32, #tpu.memory_space<vmem>>)
      %c16_i32_78 = arith.constant 16 : i32
      %133 = arith.addi %arg6, %c16_i32_78 : i32
      %c128_i32_79 = arith.constant 128 : i32
      %134 = arith.cmpi slt, %133, %c128_i32_79 : i32
      %135 = arith.extui %134 : i1 to i32
      %c0_i32_80 = arith.constant 0 : i32
      %136 = arith.cmpi ne, %135, %c0_i32_80 : i32
      scf.if %136 {
        %137 = arith.addi %0, %133 : i32
        %138 = arith.index_cast %137 : i32 to index
        %139 = memref.load %arg1[%138] : memref<128xi32, #tpu.memory_space<smem>>
        %c0_i32_81 = arith.constant 0 : i32
        %140 = tpu.memref_slice %arg2[%139, %c0_i32_81] : memref<4096x128xf32, #tpu.memory_space<any>> -> memref<1x128xf32, #tpu.memory_space<any>>
        %c0_i32_82 = arith.constant 0 : i32
        %141 = tpu.memref_slice %arg4[%133, %c0_i32_82] : memref<128x128xf32, #tpu.memory_space<vmem>> -> memref<1x128xf32, #tpu.memory_space<vmem>>
        %142 = tpu.memref_slice %arg5[%125] : memref<16x!tpu.dma_semaphore, #tpu.memory_space<semaphore_mem>> -> memref<1x!tpu.dma_semaphore, #tpu.memory_space<semaphore_mem>>
        %143 = tpu.memref_squeeze %142 : memref<1x!tpu.dma_semaphore, #tpu.memory_space<semaphore_mem>> -> memref<!tpu.dma_semaphore, #tpu.memory_space<semaphore_mem>>
        tpu.enqueue_dma source(%140 : memref<1x128xf32, #tpu.memory_space<any>>) target(%141 : memref<1x128xf32, #tpu.memory_space<vmem>>) target_semaphore(%143 : memref<!tpu.dma_semaphore, #tpu.memory_space<semaphore_mem>>)
      } else {
      }
    }
    %c128_i32_67 = arith.constant 128 : i32
    %c0 = arith.constant 0 : index
    %c0_68 = arith.constant 0 : index
    %114 = vector.load %arg4[%c0, %c0_68] : memref<128x128xf32, #tpu.memory_space<vmem>>, vector<128x128xf32>
    %c0_69 = arith.constant 0 : index
    %c0_70 = arith.constant 0 : index
    %115 = vector.load %arg3[%c0_69, %c0_70] : memref<128x128xf32, #tpu.memory_space<vmem>>, vector<128x128xf32>
    tpu.vector_store %arg3[%c0_69, %c0_70], %114 {strides = array<i32>} : memref<128x128xf32, #tpu.memory_space<vmem>>, vector<128x128xf32>,
    return
  }
  func.func @transform_1(%arg0: i32, %arg1: memref<128xi32, #tpu.memory_space<smem>>) -> (i32, i32) {
    %c0_i32 = arith.constant 0 : i32
    %c0_i32_0 = arith.constant 0 : i32
    return %arg0, %c0_i32 : i32, i32
  }
}

module attributes {stable_mosaic.version = 11 : i64} {
  func.func @_gather_dma_kernel(%arg0: i32, %arg1: memref<768xi32, #tpu.memory_space<smem>>, %arg2: memref<4096x128xf32, #tpu.memory_space<any>>, %arg3: memref<256x128xf32, #tpu.memory_space<vmem>>, %arg4: memref<256x128xf32, #tpu.memory_space<vmem>>, %arg5: memref<16x!tpu.dma_semaphore, #tpu.memory_space<semaphore_mem>>) attributes {dimension_semantics = [#tpu.dimension_semantics<parallel>], iteration_bounds = array<i64: 3>, scalar_prefetch = 1 : i64, scratch_operands = 2 : i64, tpu.core_type = #tpu.core_type<tc>, window_params = [{}, {transform_indices = @transform_1, window_bounds = array<i64: 256, 128>}]} {
    %c256_i32 = arith.constant 256 : i32
    %0 = arith.muli %arg0, %c256_i32 : i32
    %c0_i32 = arith.constant 0 : i32
    %1 = arith.addi %0, %c0_i32 : i32
    %2 = arith.index_cast %1 : i32 to index
    %3 = memref.load %arg1[%2] : memref<768xi32, #tpu.memory_space<smem>>
    %c0_i32_0 = arith.constant 0 : i32
    %c0_i32_1 = arith.constant 0 : i32
    %4 = tpu.memref_slice %arg2[%3, %c0_i32_1] : memref<4096x128xf32, #tpu.memory_space<any>> -> memref<1x128xf32, #tpu.memory_space<any>>
    %c0_i32_2 = arith.constant 0 : i32
    %c0_i32_3 = arith.constant 0 : i32
    %5 = tpu.memref_slice %arg4[%c0_i32_2, %c0_i32_3] : memref<256x128xf32, #tpu.memory_space<vmem>> -> memref<1x128xf32, #tpu.memory_space<vmem>>
    %6 = tpu.memref_slice %arg5[%c0_i32_0] : memref<16x!tpu.dma_semaphore, #tpu.memory_space<semaphore_mem>> -> memref<1x!tpu.dma_semaphore, #tpu.memory_space<semaphore_mem>>
    %7 = tpu.memref_squeeze %6 : memref<1x!tpu.dma_semaphore, #tpu.memory_space<semaphore_mem>> -> memref<!tpu.dma_semaphore, #tpu.memory_space<semaphore_mem>>
    tpu.enqueue_dma source(%4 : memref<1x128xf32, #tpu.memory_space<any>>) target(%5 : memref<1x128xf32, #tpu.memory_space<vmem>>) target_semaphore(%7 : memref<!tpu.dma_semaphore, #tpu.memory_space<semaphore_mem>>)
    %c1_i32 = arith.constant 1 : i32
    %8 = arith.addi %0, %c1_i32 : i32
    %9 = arith.index_cast %8 : i32 to index
    %10 = memref.load %arg1[%9] : memref<768xi32, #tpu.memory_space<smem>>
    %c1_i32_4 = arith.constant 1 : i32
    %c0_i32_5 = arith.constant 0 : i32
    %11 = tpu.memref_slice %arg2[%10, %c0_i32_5] : memref<4096x128xf32, #tpu.memory_space<any>> -> memref<1x128xf32, #tpu.memory_space<any>>
    %c1_i32_6 = arith.constant 1 : i32
    %c0_i32_7 = arith.constant 0 : i32
    %12 = tpu.memref_slice %arg4[%c1_i32_6, %c0_i32_7] : memref<256x128xf32, #tpu.memory_space<vmem>> -> memref<1x128xf32, #tpu.memory_space<vmem>>
    %13 = tpu.memref_slice %arg5[%c1_i32_4] : memref<16x!tpu.dma_semaphore, #tpu.memory_space<semaphore_mem>> -> memref<1x!tpu.dma_semaphore, #tpu.memory_space<semaphore_mem>>
    %14 = tpu.memref_squeeze %13 : memref<1x!tpu.dma_semaphore, #tpu.memory_space<semaphore_mem>> -> memref<!tpu.dma_semaphore, #tpu.memory_space<semaphore_mem>>
    tpu.enqueue_dma source(%11 : memref<1x128xf32, #tpu.memory_space<any>>) target(%12 : memref<1x128xf32, #tpu.memory_space<vmem>>) target_semaphore(%14 : memref<!tpu.dma_semaphore, #tpu.memory_space<semaphore_mem>>)
    %c2_i32 = arith.constant 2 : i32
    %15 = arith.addi %0, %c2_i32 : i32
    %16 = arith.index_cast %15 : i32 to index
    %17 = memref.load %arg1[%16] : memref<768xi32, #tpu.memory_space<smem>>
    %c2_i32_8 = arith.constant 2 : i32
    %c0_i32_9 = arith.constant 0 : i32
    %18 = tpu.memref_slice %arg2[%17, %c0_i32_9] : memref<4096x128xf32, #tpu.memory_space<any>> -> memref<1x128xf32, #tpu.memory_space<any>>
    %c2_i32_10 = arith.constant 2 : i32
    %c0_i32_11 = arith.constant 0 : i32
    %19 = tpu.memref_slice %arg4[%c2_i32_10, %c0_i32_11] : memref<256x128xf32, #tpu.memory_space<vmem>> -> memref<1x128xf32, #tpu.memory_space<vmem>>
    %20 = tpu.memref_slice %arg5[%c2_i32_8] : memref<16x!tpu.dma_semaphore, #tpu.memory_space<semaphore_mem>> -> memref<1x!tpu.dma_semaphore, #tpu.memory_space<semaphore_mem>>
    %21 = tpu.memref_squeeze %20 : memref<1x!tpu.dma_semaphore, #tpu.memory_space<semaphore_mem>> -> memref<!tpu.dma_semaphore, #tpu.memory_space<semaphore_mem>>
    tpu.enqueue_dma source(%18 : memref<1x128xf32, #tpu.memory_space<any>>) target(%19 : memref<1x128xf32, #tpu.memory_space<vmem>>) target_semaphore(%21 : memref<!tpu.dma_semaphore, #tpu.memory_space<semaphore_mem>>)
    %c3_i32 = arith.constant 3 : i32
    %22 = arith.addi %0, %c3_i32 : i32
    %23 = arith.index_cast %22 : i32 to index
    %24 = memref.load %arg1[%23] : memref<768xi32, #tpu.memory_space<smem>>
    %c3_i32_12 = arith.constant 3 : i32
    %c0_i32_13 = arith.constant 0 : i32
    %25 = tpu.memref_slice %arg2[%24, %c0_i32_13] : memref<4096x128xf32, #tpu.memory_space<any>> -> memref<1x128xf32, #tpu.memory_space<any>>
    %c3_i32_14 = arith.constant 3 : i32
    %c0_i32_15 = arith.constant 0 : i32
    %26 = tpu.memref_slice %arg4[%c3_i32_14, %c0_i32_15] : memref<256x128xf32, #tpu.memory_space<vmem>> -> memref<1x128xf32, #tpu.memory_space<vmem>>
    %27 = tpu.memref_slice %arg5[%c3_i32_12] : memref<16x!tpu.dma_semaphore, #tpu.memory_space<semaphore_mem>> -> memref<1x!tpu.dma_semaphore, #tpu.memory_space<semaphore_mem>>
    %28 = tpu.memref_squeeze %27 : memref<1x!tpu.dma_semaphore, #tpu.memory_space<semaphore_mem>> -> memref<!tpu.dma_semaphore, #tpu.memory_space<semaphore_mem>>
    tpu.enqueue_dma source(%25 : memref<1x128xf32, #tpu.memory_space<any>>) target(%26 : memref<1x128xf32, #tpu.memory_space<vmem>>) target_semaphore(%28 : memref<!tpu.dma_semaphore, #tpu.memory_space<semaphore_mem>>)
    %c4_i32 = arith.constant 4 : i32
    %29 = arith.addi %0, %c4_i32 : i32
    %30 = arith.index_cast %29 : i32 to index
    %31 = memref.load %arg1[%30] : memref<768xi32, #tpu.memory_space<smem>>
    %c4_i32_16 = arith.constant 4 : i32
    %c0_i32_17 = arith.constant 0 : i32
    %32 = tpu.memref_slice %arg2[%31, %c0_i32_17] : memref<4096x128xf32, #tpu.memory_space<any>> -> memref<1x128xf32, #tpu.memory_space<any>>
    %c4_i32_18 = arith.constant 4 : i32
    %c0_i32_19 = arith.constant 0 : i32
    %33 = tpu.memref_slice %arg4[%c4_i32_18, %c0_i32_19] : memref<256x128xf32, #tpu.memory_space<vmem>> -> memref<1x128xf32, #tpu.memory_space<vmem>>
    %34 = tpu.memref_slice %arg5[%c4_i32_16] : memref<16x!tpu.dma_semaphore, #tpu.memory_space<semaphore_mem>> -> memref<1x!tpu.dma_semaphore, #tpu.memory_space<semaphore_mem>>
    %35 = tpu.memref_squeeze %34 : memref<1x!tpu.dma_semaphore, #tpu.memory_space<semaphore_mem>> -> memref<!tpu.dma_semaphore, #tpu.memory_space<semaphore_mem>>
    tpu.enqueue_dma source(%32 : memref<1x128xf32, #tpu.memory_space<any>>) target(%33 : memref<1x128xf32, #tpu.memory_space<vmem>>) target_semaphore(%35 : memref<!tpu.dma_semaphore, #tpu.memory_space<semaphore_mem>>)
    %c5_i32 = arith.constant 5 : i32
    %36 = arith.addi %0, %c5_i32 : i32
    %37 = arith.index_cast %36 : i32 to index
    %38 = memref.load %arg1[%37] : memref<768xi32, #tpu.memory_space<smem>>
    %c5_i32_20 = arith.constant 5 : i32
    %c0_i32_21 = arith.constant 0 : i32
    %39 = tpu.memref_slice %arg2[%38, %c0_i32_21] : memref<4096x128xf32, #tpu.memory_space<any>> -> memref<1x128xf32, #tpu.memory_space<any>>
    %c5_i32_22 = arith.constant 5 : i32
    %c0_i32_23 = arith.constant 0 : i32
    %40 = tpu.memref_slice %arg4[%c5_i32_22, %c0_i32_23] : memref<256x128xf32, #tpu.memory_space<vmem>> -> memref<1x128xf32, #tpu.memory_space<vmem>>
    %41 = tpu.memref_slice %arg5[%c5_i32_20] : memref<16x!tpu.dma_semaphore, #tpu.memory_space<semaphore_mem>> -> memref<1x!tpu.dma_semaphore, #tpu.memory_space<semaphore_mem>>
    %42 = tpu.memref_squeeze %41 : memref<1x!tpu.dma_semaphore, #tpu.memory_space<semaphore_mem>> -> memref<!tpu.dma_semaphore, #tpu.memory_space<semaphore_mem>>
    tpu.enqueue_dma source(%39 : memref<1x128xf32, #tpu.memory_space<any>>) target(%40 : memref<1x128xf32, #tpu.memory_space<vmem>>) target_semaphore(%42 : memref<!tpu.dma_semaphore, #tpu.memory_space<semaphore_mem>>)
    %c6_i32 = arith.constant 6 : i32
    %43 = arith.addi %0, %c6_i32 : i32
    %44 = arith.index_cast %43 : i32 to index
    %45 = memref.load %arg1[%44] : memref<768xi32, #tpu.memory_space<smem>>
    %c6_i32_24 = arith.constant 6 : i32
    %c0_i32_25 = arith.constant 0 : i32
    %46 = tpu.memref_slice %arg2[%45, %c0_i32_25] : memref<4096x128xf32, #tpu.memory_space<any>> -> memref<1x128xf32, #tpu.memory_space<any>>
    %c6_i32_26 = arith.constant 6 : i32
    %c0_i32_27 = arith.constant 0 : i32
    %47 = tpu.memref_slice %arg4[%c6_i32_26, %c0_i32_27] : memref<256x128xf32, #tpu.memory_space<vmem>> -> memref<1x128xf32, #tpu.memory_space<vmem>>
    %48 = tpu.memref_slice %arg5[%c6_i32_24] : memref<16x!tpu.dma_semaphore, #tpu.memory_space<semaphore_mem>> -> memref<1x!tpu.dma_semaphore, #tpu.memory_space<semaphore_mem>>
    %49 = tpu.memref_squeeze %48 : memref<1x!tpu.dma_semaphore, #tpu.memory_space<semaphore_mem>> -> memref<!tpu.dma_semaphore, #tpu.memory_space<semaphore_mem>>
    tpu.enqueue_dma source(%46 : memref<1x128xf32, #tpu.memory_space<any>>) target(%47 : memref<1x128xf32, #tpu.memory_space<vmem>>) target_semaphore(%49 : memref<!tpu.dma_semaphore, #tpu.memory_space<semaphore_mem>>)
    %c7_i32 = arith.constant 7 : i32
    %50 = arith.addi %0, %c7_i32 : i32
    %51 = arith.index_cast %50 : i32 to index
    %52 = memref.load %arg1[%51] : memref<768xi32, #tpu.memory_space<smem>>
    %c7_i32_28 = arith.constant 7 : i32
    %c0_i32_29 = arith.constant 0 : i32
    %53 = tpu.memref_slice %arg2[%52, %c0_i32_29] : memref<4096x128xf32, #tpu.memory_space<any>> -> memref<1x128xf32, #tpu.memory_space<any>>
    %c7_i32_30 = arith.constant 7 : i32
    %c0_i32_31 = arith.constant 0 : i32
    %54 = tpu.memref_slice %arg4[%c7_i32_30, %c0_i32_31] : memref<256x128xf32, #tpu.memory_space<vmem>> -> memref<1x128xf32, #tpu.memory_space<vmem>>
    %55 = tpu.memref_slice %arg5[%c7_i32_28] : memref<16x!tpu.dma_semaphore, #tpu.memory_space<semaphore_mem>> -> memref<1x!tpu.dma_semaphore, #tpu.memory_space<semaphore_mem>>
    %56 = tpu.memref_squeeze %55 : memref<1x!tpu.dma_semaphore, #tpu.memory_space<semaphore_mem>> -> memref<!tpu.dma_semaphore, #tpu.memory_space<semaphore_mem>>
    tpu.enqueue_dma source(%53 : memref<1x128xf32, #tpu.memory_space<any>>) target(%54 : memref<1x128xf32, #tpu.memory_space<vmem>>) target_semaphore(%56 : memref<!tpu.dma_semaphore, #tpu.memory_space<semaphore_mem>>)
    %c8_i32 = arith.constant 8 : i32
    %57 = arith.addi %0, %c8_i32 : i32
    %58 = arith.index_cast %57 : i32 to index
    %59 = memref.load %arg1[%58] : memref<768xi32, #tpu.memory_space<smem>>
    %c8_i32_32 = arith.constant 8 : i32
    %c0_i32_33 = arith.constant 0 : i32
    %60 = tpu.memref_slice %arg2[%59, %c0_i32_33] : memref<4096x128xf32, #tpu.memory_space<any>> -> memref<1x128xf32, #tpu.memory_space<any>>
    %c8_i32_34 = arith.constant 8 : i32
    %c0_i32_35 = arith.constant 0 : i32
    %61 = tpu.memref_slice %arg4[%c8_i32_34, %c0_i32_35] : memref<256x128xf32, #tpu.memory_space<vmem>> -> memref<1x128xf32, #tpu.memory_space<vmem>>
    %62 = tpu.memref_slice %arg5[%c8_i32_32] : memref<16x!tpu.dma_semaphore, #tpu.memory_space<semaphore_mem>> -> memref<1x!tpu.dma_semaphore, #tpu.memory_space<semaphore_mem>>
    %63 = tpu.memref_squeeze %62 : memref<1x!tpu.dma_semaphore, #tpu.memory_space<semaphore_mem>> -> memref<!tpu.dma_semaphore, #tpu.memory_space<semaphore_mem>>
    tpu.enqueue_dma source(%60 : memref<1x128xf32, #tpu.memory_space<any>>) target(%61 : memref<1x128xf32, #tpu.memory_space<vmem>>) target_semaphore(%63 : memref<!tpu.dma_semaphore, #tpu.memory_space<semaphore_mem>>)
    %c9_i32 = arith.constant 9 : i32
    %64 = arith.addi %0, %c9_i32 : i32
    %65 = arith.index_cast %64 : i32 to index
    %66 = memref.load %arg1[%65] : memref<768xi32, #tpu.memory_space<smem>>
    %c9_i32_36 = arith.constant 9 : i32
    %c0_i32_37 = arith.constant 0 : i32
    %67 = tpu.memref_slice %arg2[%66, %c0_i32_37] : memref<4096x128xf32, #tpu.memory_space<any>> -> memref<1x128xf32, #tpu.memory_space<any>>
    %c9_i32_38 = arith.constant 9 : i32
    %c0_i32_39 = arith.constant 0 : i32
    %68 = tpu.memref_slice %arg4[%c9_i32_38, %c0_i32_39] : memref<256x128xf32, #tpu.memory_space<vmem>> -> memref<1x128xf32, #tpu.memory_space<vmem>>
    %69 = tpu.memref_slice %arg5[%c9_i32_36] : memref<16x!tpu.dma_semaphore, #tpu.memory_space<semaphore_mem>> -> memref<1x!tpu.dma_semaphore, #tpu.memory_space<semaphore_mem>>
    %70 = tpu.memref_squeeze %69 : memref<1x!tpu.dma_semaphore, #tpu.memory_space<semaphore_mem>> -> memref<!tpu.dma_semaphore, #tpu.memory_space<semaphore_mem>>
    tpu.enqueue_dma source(%67 : memref<1x128xf32, #tpu.memory_space<any>>) target(%68 : memref<1x128xf32, #tpu.memory_space<vmem>>) target_semaphore(%70 : memref<!tpu.dma_semaphore, #tpu.memory_space<semaphore_mem>>)
    %c10_i32 = arith.constant 10 : i32
    %71 = arith.addi %0, %c10_i32 : i32
    %72 = arith.index_cast %71 : i32 to index
    %73 = memref.load %arg1[%72] : memref<768xi32, #tpu.memory_space<smem>>
    %c10_i32_40 = arith.constant 10 : i32
    %c0_i32_41 = arith.constant 0 : i32
    %74 = tpu.memref_slice %arg2[%73, %c0_i32_41] : memref<4096x128xf32, #tpu.memory_space<any>> -> memref<1x128xf32, #tpu.memory_space<any>>
    %c10_i32_42 = arith.constant 10 : i32
    %c0_i32_43 = arith.constant 0 : i32
    %75 = tpu.memref_slice %arg4[%c10_i32_42, %c0_i32_43] : memref<256x128xf32, #tpu.memory_space<vmem>> -> memref<1x128xf32, #tpu.memory_space<vmem>>
    %76 = tpu.memref_slice %arg5[%c10_i32_40] : memref<16x!tpu.dma_semaphore, #tpu.memory_space<semaphore_mem>> -> memref<1x!tpu.dma_semaphore, #tpu.memory_space<semaphore_mem>>
    %77 = tpu.memref_squeeze %76 : memref<1x!tpu.dma_semaphore, #tpu.memory_space<semaphore_mem>> -> memref<!tpu.dma_semaphore, #tpu.memory_space<semaphore_mem>>
    tpu.enqueue_dma source(%74 : memref<1x128xf32, #tpu.memory_space<any>>) target(%75 : memref<1x128xf32, #tpu.memory_space<vmem>>) target_semaphore(%77 : memref<!tpu.dma_semaphore, #tpu.memory_space<semaphore_mem>>)
    %c11_i32 = arith.constant 11 : i32
    %78 = arith.addi %0, %c11_i32 : i32
    %79 = arith.index_cast %78 : i32 to index
    %80 = memref.load %arg1[%79] : memref<768xi32, #tpu.memory_space<smem>>
    %c11_i32_44 = arith.constant 11 : i32
    %c0_i32_45 = arith.constant 0 : i32
    %81 = tpu.memref_slice %arg2[%80, %c0_i32_45] : memref<4096x128xf32, #tpu.memory_space<any>> -> memref<1x128xf32, #tpu.memory_space<any>>
    %c11_i32_46 = arith.constant 11 : i32
    %c0_i32_47 = arith.constant 0 : i32
    %82 = tpu.memref_slice %arg4[%c11_i32_46, %c0_i32_47] : memref<256x128xf32, #tpu.memory_space<vmem>> -> memref<1x128xf32, #tpu.memory_space<vmem>>
    %83 = tpu.memref_slice %arg5[%c11_i32_44] : memref<16x!tpu.dma_semaphore, #tpu.memory_space<semaphore_mem>> -> memref<1x!tpu.dma_semaphore, #tpu.memory_space<semaphore_mem>>
    %84 = tpu.memref_squeeze %83 : memref<1x!tpu.dma_semaphore, #tpu.memory_space<semaphore_mem>> -> memref<!tpu.dma_semaphore, #tpu.memory_space<semaphore_mem>>
    tpu.enqueue_dma source(%81 : memref<1x128xf32, #tpu.memory_space<any>>) target(%82 : memref<1x128xf32, #tpu.memory_space<vmem>>) target_semaphore(%84 : memref<!tpu.dma_semaphore, #tpu.memory_space<semaphore_mem>>)
    %c12_i32 = arith.constant 12 : i32
    %85 = arith.addi %0, %c12_i32 : i32
    %86 = arith.index_cast %85 : i32 to index
    %87 = memref.load %arg1[%86] : memref<768xi32, #tpu.memory_space<smem>>
    %c12_i32_48 = arith.constant 12 : i32
    %c0_i32_49 = arith.constant 0 : i32
    %88 = tpu.memref_slice %arg2[%87, %c0_i32_49] : memref<4096x128xf32, #tpu.memory_space<any>> -> memref<1x128xf32, #tpu.memory_space<any>>
    %c12_i32_50 = arith.constant 12 : i32
    %c0_i32_51 = arith.constant 0 : i32
    %89 = tpu.memref_slice %arg4[%c12_i32_50, %c0_i32_51] : memref<256x128xf32, #tpu.memory_space<vmem>> -> memref<1x128xf32, #tpu.memory_space<vmem>>
    %90 = tpu.memref_slice %arg5[%c12_i32_48] : memref<16x!tpu.dma_semaphore, #tpu.memory_space<semaphore_mem>> -> memref<1x!tpu.dma_semaphore, #tpu.memory_space<semaphore_mem>>
    %91 = tpu.memref_squeeze %90 : memref<1x!tpu.dma_semaphore, #tpu.memory_space<semaphore_mem>> -> memref<!tpu.dma_semaphore, #tpu.memory_space<semaphore_mem>>
    tpu.enqueue_dma source(%88 : memref<1x128xf32, #tpu.memory_space<any>>) target(%89 : memref<1x128xf32, #tpu.memory_space<vmem>>) target_semaphore(%91 : memref<!tpu.dma_semaphore, #tpu.memory_space<semaphore_mem>>)
    %c13_i32 = arith.constant 13 : i32
    %92 = arith.addi %0, %c13_i32 : i32
    %93 = arith.index_cast %92 : i32 to index
    %94 = memref.load %arg1[%93] : memref<768xi32, #tpu.memory_space<smem>>
    %c13_i32_52 = arith.constant 13 : i32
    %c0_i32_53 = arith.constant 0 : i32
    %95 = tpu.memref_slice %arg2[%94, %c0_i32_53] : memref<4096x128xf32, #tpu.memory_space<any>> -> memref<1x128xf32, #tpu.memory_space<any>>
    %c13_i32_54 = arith.constant 13 : i32
    %c0_i32_55 = arith.constant 0 : i32
    %96 = tpu.memref_slice %arg4[%c13_i32_54, %c0_i32_55] : memref<256x128xf32, #tpu.memory_space<vmem>> -> memref<1x128xf32, #tpu.memory_space<vmem>>
    %97 = tpu.memref_slice %arg5[%c13_i32_52] : memref<16x!tpu.dma_semaphore, #tpu.memory_space<semaphore_mem>> -> memref<1x!tpu.dma_semaphore, #tpu.memory_space<semaphore_mem>>
    %98 = tpu.memref_squeeze %97 : memref<1x!tpu.dma_semaphore, #tpu.memory_space<semaphore_mem>> -> memref<!tpu.dma_semaphore, #tpu.memory_space<semaphore_mem>>
    tpu.enqueue_dma source(%95 : memref<1x128xf32, #tpu.memory_space<any>>) target(%96 : memref<1x128xf32, #tpu.memory_space<vmem>>) target_semaphore(%98 : memref<!tpu.dma_semaphore, #tpu.memory_space<semaphore_mem>>)
    %c14_i32 = arith.constant 14 : i32
    %99 = arith.addi %0, %c14_i32 : i32
    %100 = arith.index_cast %99 : i32 to index
    %101 = memref.load %arg1[%100] : memref<768xi32, #tpu.memory_space<smem>>
    %c14_i32_56 = arith.constant 14 : i32
    %c0_i32_57 = arith.constant 0 : i32
    %102 = tpu.memref_slice %arg2[%101, %c0_i32_57] : memref<4096x128xf32, #tpu.memory_space<any>> -> memref<1x128xf32, #tpu.memory_space<any>>
    %c14_i32_58 = arith.constant 14 : i32
    %c0_i32_59 = arith.constant 0 : i32
    %103 = tpu.memref_slice %arg4[%c14_i32_58, %c0_i32_59] : memref<256x128xf32, #tpu.memory_space<vmem>> -> memref<1x128xf32, #tpu.memory_space<vmem>>
    %104 = tpu.memref_slice %arg5[%c14_i32_56] : memref<16x!tpu.dma_semaphore, #tpu.memory_space<semaphore_mem>> -> memref<1x!tpu.dma_semaphore, #tpu.memory_space<semaphore_mem>>
    %105 = tpu.memref_squeeze %104 : memref<1x!tpu.dma_semaphore, #tpu.memory_space<semaphore_mem>> -> memref<!tpu.dma_semaphore, #tpu.memory_space<semaphore_mem>>
    tpu.enqueue_dma source(%102 : memref<1x128xf32, #tpu.memory_space<any>>) target(%103 : memref<1x128xf32, #tpu.memory_space<vmem>>) target_semaphore(%105 : memref<!tpu.dma_semaphore, #tpu.memory_space<semaphore_mem>>)
    %c15_i32 = arith.constant 15 : i32
    %106 = arith.addi %0, %c15_i32 : i32
    %107 = arith.index_cast %106 : i32 to index
    %108 = memref.load %arg1[%107] : memref<768xi32, #tpu.memory_space<smem>>
    %c15_i32_60 = arith.constant 15 : i32
    %c0_i32_61 = arith.constant 0 : i32
    %109 = tpu.memref_slice %arg2[%108, %c0_i32_61] : memref<4096x128xf32, #tpu.memory_space<any>> -> memref<1x128xf32, #tpu.memory_space<any>>
    %c15_i32_62 = arith.constant 15 : i32
    %c0_i32_63 = arith.constant 0 : i32
    %110 = tpu.memref_slice %arg4[%c15_i32_62, %c0_i32_63] : memref<256x128xf32, #tpu.memory_space<vmem>> -> memref<1x128xf32, #tpu.memory_space<vmem>>
    %111 = tpu.memref_slice %arg5[%c15_i32_60] : memref<16x!tpu.dma_semaphore, #tpu.memory_space<semaphore_mem>> -> memref<1x!tpu.dma_semaphore, #tpu.memory_space<semaphore_mem>>
    %112 = tpu.memref_squeeze %111 : memref<1x!tpu.dma_semaphore, #tpu.memory_space<semaphore_mem>> -> memref<!tpu.dma_semaphore, #tpu.memory_space<semaphore_mem>>
    tpu.enqueue_dma source(%109 : memref<1x128xf32, #tpu.memory_space<any>>) target(%110 : memref<1x128xf32, #tpu.memory_space<vmem>>) target_semaphore(%112 : memref<!tpu.dma_semaphore, #tpu.memory_space<semaphore_mem>>)
    %c0_i32_64 = arith.constant 0 : i32
    %c256_i32_65 = arith.constant 256 : i32
    %113 = arith.addi %c0_i32_64, %c256_i32_65 : i32
    %c1_i32_66 = arith.constant 1 : i32
    scf.for %arg6 = %c0_i32_64 to %113 step %c1_i32_66  : i32 {
      %c16_i32 = arith.constant 16 : i32
      %c0_i32_71 = arith.constant 0 : i32
      %116 = arith.cmpi eq, %c16_i32, %c0_i32_71 : i32
      %c1_i32_72 = arith.constant 1 : i32
      %117 = arith.select %116, %c1_i32_72, %c16_i32 : i32
      %118 = arith.remsi %arg6, %117 : i32
      %c0_i32_73 = arith.constant 0 : i32
      %119 = arith.cmpi ne, %118, %c0_i32_73 : i32
      %c0_i32_74 = arith.constant 0 : i32
      %120 = arith.cmpi slt, %118, %c0_i32_74 : i32
      %c0_i32_75 = arith.constant 0 : i32
      %121 = arith.cmpi slt, %117, %c0_i32_75 : i32
      %122 = arith.xori %120, %121 : i1
      %123 = arith.andi %122, %119 : i1
      %124 = arith.addi %118, %117 : i32
      %125 = arith.select %123, %124, %118 : i32
      %126 = arith.addi %0, %arg6 : i32
      %127 = arith.index_cast %126 : i32 to index
      %128 = memref.load %arg1[%127] : memref<768xi32, #tpu.memory_space<smem>>
      %c0_i32_76 = arith.constant 0 : i32
      %129 = tpu.memref_slice %arg2[%128, %c0_i32_76] : memref<4096x128xf32, #tpu.memory_space<any>> -> memref<1x128xf32, #tpu.memory_space<any>>
      %c0_i32_77 = arith.constant 0 : i32
      %130 = tpu.memref_slice %arg4[%arg6, %c0_i32_77] : memref<256x128xf32, #tpu.memory_space<vmem>> -> memref<1x128xf32, #tpu.memory_space<vmem>>
      %131 = tpu.memref_slice %arg5[%125] : memref<16x!tpu.dma_semaphore, #tpu.memory_space<semaphore_mem>> -> memref<1x!tpu.dma_semaphore, #tpu.memory_space<semaphore_mem>>
      %132 = tpu.memref_squeeze %131 : memref<1x!tpu.dma_semaphore, #tpu.memory_space<semaphore_mem>> -> memref<!tpu.dma_semaphore, #tpu.memory_space<semaphore_mem>>
      tpu.wait_dma2 semaphore(%132 : memref<!tpu.dma_semaphore, #tpu.memory_space<semaphore_mem>>) src(%129 : memref<1x128xf32, #tpu.memory_space<any>>) dst(%130 : memref<1x128xf32, #tpu.memory_space<vmem>>)
      %c16_i32_78 = arith.constant 16 : i32
      %133 = arith.addi %arg6, %c16_i32_78 : i32
      %c256_i32_79 = arith.constant 256 : i32
      %134 = arith.cmpi slt, %133, %c256_i32_79 : i32
      %135 = arith.extui %134 : i1 to i32
      %c0_i32_80 = arith.constant 0 : i32
      %136 = arith.cmpi ne, %135, %c0_i32_80 : i32
      scf.if %136 {
        %137 = arith.addi %0, %133 : i32
        %138 = arith.index_cast %137 : i32 to index
        %139 = memref.load %arg1[%138] : memref<768xi32, #tpu.memory_space<smem>>
        %c0_i32_81 = arith.constant 0 : i32
        %140 = tpu.memref_slice %arg2[%139, %c0_i32_81] : memref<4096x128xf32, #tpu.memory_space<any>> -> memref<1x128xf32, #tpu.memory_space<any>>
        %c0_i32_82 = arith.constant 0 : i32
        %141 = tpu.memref_slice %arg4[%133, %c0_i32_82] : memref<256x128xf32, #tpu.memory_space<vmem>> -> memref<1x128xf32, #tpu.memory_space<vmem>>
        %142 = tpu.memref_slice %arg5[%125] : memref<16x!tpu.dma_semaphore, #tpu.memory_space<semaphore_mem>> -> memref<1x!tpu.dma_semaphore, #tpu.memory_space<semaphore_mem>>
        %143 = tpu.memref_squeeze %142 : memref<1x!tpu.dma_semaphore, #tpu.memory_space<semaphore_mem>> -> memref<!tpu.dma_semaphore, #tpu.memory_space<semaphore_mem>>
        tpu.enqueue_dma source(%140 : memref<1x128xf32, #tpu.memory_space<any>>) target(%141 : memref<1x128xf32, #tpu.memory_space<vmem>>) target_semaphore(%143 : memref<!tpu.dma_semaphore, #tpu.memory_space<semaphore_mem>>)
      } else {
      }
    }
    %c256_i32_67 = arith.constant 256 : i32
    %c0 = arith.constant 0 : index
    %c0_68 = arith.constant 0 : index
    %114 = vector.load %arg4[%c0, %c0_68] : memref<256x128xf32, #tpu.memory_space<vmem>>, vector<256x128xf32>
    %c0_69 = arith.constant 0 : index
    %c0_70 = arith.constant 0 : index
    %115 = vector.load %arg3[%c0_69, %c0_70] : memref<256x128xf32, #tpu.memory_space<vmem>>, vector<256x128xf32>
    tpu.vector_store %arg3[%c0_69, %c0_70], %114 {strides = array<i32>} : memref<256x128xf32, #tpu.memory_space<vmem>>, vector<256x128xf32>,
    return
  }
  func.func @transform_1(%arg0: i32, %arg1: memref<768xi32, #tpu.memory_space<smem>>) -> (i32, i32) {
    %c0_i32 = arith.constant 0 : i32
    %c0_i32_0 = arith.constant 0 : i32
    return %arg0, %c0_i32 : i32, i32
  }
}

</mosaic_0001>

<llo_original>
// kernel: _lambda_.2
$region0: #{_lambda_.2}
  #allocation0 [shape = 'u32[]', space=smem, size = 0x4, offset = 0x4, fixed_abs, tag = 'smem constant byte address 0x4 - core index']
  #allocation1 [shape = 'u32[144,128]{1,0:T(1,128)}', space=vmem, size = 0x12000, scoped, tag = 'internal scratch']
  #allocation2 [shape = 'f32[128,128]{1,0:T(8,128)}', space=vmem, size = 0x10000, scoped, tag = 'scratch operand']
  #allocation3 [shape = 's32[16]{0}', space=sflag, size = 0x40, scoped, tag = 'scratch operand']
  #allocation4 [shape = 's32[1]{0}', space=sflag, size = 0x4, scoped, tag = 'scoped memory for _lambda_.2']
  #allocation5 [shape = 'u8[512]{0}', space=smem, size = 0x200, scoped, tag = 'prefetched SMEM operand 0']
  #allocation8 [shape = 's32[]', space=sflag, size = 0x4, offset = 0, fixed_abs, tag = 'sflag constant byte address 0x0 - dummy sync flag']
  #allocation9 [shape = 's32[]', space=sflag, size = 0x4, offset = 0, fixed_abs, tag = 'sflag constant byte address 0x0 - dummy sync flag']
  #allocation10 [shape = 'u32[]', space=smem, size = 0x4, offset = 0x44, fixed_abs, tag = 'smem constant byte address 0x44 - assertion arg 0']
  #allocation11 [shape = 'u32[]', space=smem, size = 0x4, offset = 0x48, fixed_abs, tag = 'smem constant byte address 0x48 - assertion arg 1']
  #allocation12 [shape = 's32[]', space=sflag, size = 0x4, offset = 0, fixed_abs, tag = 'sflag constant byte address 0x0 - dummy sync flag']
  #allocation13 [shape = 's32[]', space=sflag, size = 0x4, offset = 0, fixed_abs, tag = 'sflag constant byte address 0x0 - dummy sync flag']
  #allocation14 [shape = 's32[]', space=sflag, size = 0x4, offset = 0, fixed_abs, tag = 'sflag constant byte address 0x0 - dummy sync flag']
  #allocation15 [shape = 's32[]', space=sflag, size = 0x4, offset = 0, fixed_abs, tag = 'sflag constant byte address 0x0 - dummy sync flag']
  #allocation16 [shape = 's32[]', space=sflag, size = 0x4, offset = 0, fixed_abs, tag = 'sflag constant byte address 0x0 - dummy sync flag']
  #allocation17 [shape = 's32[]', space=sflag, size = 0x4, offset = 0, fixed_abs, tag = 'sflag constant byte address 0x0 - dummy sync flag']
  #allocation18 [shape = 's32[]', space=sflag, size = 0x4, offset = 0, fixed_abs, tag = 'sflag constant byte address 0x0 - dummy sync flag']
  #allocation19 [shape = 's32[]', space=sflag, size = 0x4, offset = 0, fixed_abs, tag = 'sflag constant byte address 0x0 - dummy sync flag']
  #allocation20 [shape = 's32[]', space=sflag, size = 0x4, offset = 0, fixed_abs, tag = 'sflag constant byte address 0x0 - dummy sync flag']
  #allocation21 [shape = 's32[]', space=sflag, size = 0x4, offset = 0, fixed_abs, tag = 'sflag constant byte address 0x0 - dummy sync flag']
  #allocation22 [shape = 's32[]', space=sflag, size = 0x4, offset = 0, fixed_abs, tag = 'sflag constant byte address 0x0 - dummy sync flag']
  #allocation23 [shape = 's32[]', space=sflag, size = 0x4, offset = 0, fixed_abs, tag = 'sflag constant byte address 0x0 - dummy sync flag']
  #allocation24 [shape = 's32[]', space=sflag, size = 0x4, offset = 0, fixed_abs, tag = 'sflag constant byte address 0x0 - dummy sync flag']
  #allocation25 [shape = 's32[]', space=sflag, size = 0x4, offset = 0, fixed_abs, tag = 'sflag constant byte address 0x0 - dummy sync flag']
  #allocation26 [shape = 's32[]', space=sflag, size = 0x4, offset = 0, fixed_abs, tag = 'sflag constant byte address 0x0 - dummy sync flag']
  #allocation27 [shape = 's32[]', space=sflag, size = 0x4, offset = 0, fixed_abs, tag = 'sflag constant byte address 0x0 - dummy sync flag']
  #allocation28 [shape = 's32[]', space=sflag, size = 0x4, offset = 0, fixed_abs, tag = 'sflag constant byte address 0x0 - dummy sync flag']
  #allocation29 [shape = 's32[]', space=sflag, size = 0x4, offset = 0, fixed_abs, tag = 'sflag constant byte address 0x0 - dummy sync flag']
  #allocation30 [shape = 's32[]', space=sflag, size = 0x4, offset = 0, fixed_abs, tag = 'sflag constant byte address 0x0 - dummy sync flag']
  #allocation31 [shape = 's32[]', space=sflag, size = 0x4, offset = 0, fixed_abs, tag = 'sflag constant byte address 0x0 - dummy sync flag']
  #allocation32 [shape = 's32[]', space=sflag, size = 0x4, offset = 0, fixed_abs, tag = 'sflag constant byte address 0x0 - dummy sync flag']
  #allocation33 [shape = 's32[]', space=sflag, size = 0x4, offset = 0, fixed_abs, tag = 'sflag constant byte address 0x0 - dummy sync flag']
  #allocation34 [shape = 's32[]', space=sflag, size = 0x4, offset = 0, fixed_abs, tag = 'sflag constant byte address 0x0 - dummy sync flag']
  #allocation35 [shape = 's32[]', space=sflag, size = 0x4, offset = 0, fixed_abs, tag = 'sflag constant byte address 0x0 - dummy sync flag']
  #allocation36 [shape = 's32[]', space=sflag, size = 0x4, offset = 0, fixed_abs, tag = 'sflag constant byte address 0x0 - dummy sync flag']
  #allocation37 [shape = 's32[]', space=sflag, size = 0x4, offset = 0, fixed_abs, tag = 'sflag constant byte address 0x0 - dummy sync flag']
  #allocation38 [shape = 's32[]', space=sflag, size = 0x4, offset = 0, fixed_abs, tag = 'sflag constant byte address 0x0 - dummy sync flag']
  #allocation39 [shape = 's32[]', space=sflag, size = 0x4, offset = 0, fixed_abs, tag = 'sflag constant byte address 0x0 - dummy sync flag']
  #allocation40 [shape = 's32[]', space=sflag, size = 0x4, offset = 0, fixed_abs, tag = 'sflag constant byte address 0x0 - dummy sync flag']
  #allocation41 [shape = 's32[]', space=sflag, size = 0x4, offset = 0, fixed_abs, tag = 'sflag constant byte address 0x0 - dummy sync flag']
  #allocation42 [shape = 's32[]', space=sflag, size = 0x4, offset = 0, fixed_abs, tag = 'sflag constant byte address 0x0 - dummy sync flag']
  #allocation43 [shape = 's32[]', space=sflag, size = 0x4, offset = 0, fixed_abs, tag = 'sflag constant byte address 0x0 - dummy sync flag']
  %s0 = inlined_call_operand.vmem [shape: s32[128], index: 0, kind: input, shape index: {}]
  %s1 = inlined_call_operand.hbm [shape: f32[4096,128], index: 1, kind: input, shape index: {}]
  %s2 = inlined_call_operand.hbm [shape: f32[128,128], index: 2, kind: output, shape index: {}]
  %s3 = sld [smem:[#allocation0]]
  $region89: #{_lambda_.2} parent=0
    _
  %s5 = ssub.s32 1, %s3
  %s6 = scalar_select 0, %s5, %s3
  %s7 = sshll.u32 %s0, 4
  %s8 = int_to_ptr.vmem [resolvable:$true] %s7
  %10 = dma.vmem_to_smem %s8, 16, [#allocation5], [#allocation4]
  %11 = dma.done [#allocation4], 16
  %12 = sfence
  $region1: #{_lambda_.2} parent=0
    #allocation6 [shape = 'u8[65536]{0}', space=vmem, size = 0x10000, scoped, tag = 'output window, operand 0, single buffered']
    #allocation7 [shape = 's32[1]{0}', space=sflag, size = 0x4, scoped, tag = 'scoped memory for _lambda_.2']
    %13 = vsyncpa [#allocation7], 0
    %s14 = smul.u32 0, 128
    %s15 = sld [smem:[#allocation5 + %s14]]
    %s16 = smul.addr %s15, 16
    %s17 = scalar_lea.hbm %s1, %s16
    // Predicated region
    $region2: #{_lambda_.2} parent=1 // pred_check
      _
    $region3: #{_lambda_.2} parent=1 // pred_check_branch
      %19 = sbr.rel target = $region5
    $region4: #{_lambda_.2} parent=1 // pred_region
      %20 = sst [smem:[#allocation10]] [#allocation9]
      %21 = sst [smem:[#allocation11]] [#allocation8]
    $region5: #{_lambda_.2} parent=1 // pred_fallthru
      _
    %23 = shalt.err (0)
    %s25 = sshll.u32 [#allocation2], 4
    %s26 = int_to_ptr.vmem [resolvable:$true] %s25
    %28 = dma.hbm_to_vmem [thread:$0]  %s17, 16, %s26, [#allocation3]
    %s29 = sadd.s32 %s14, 1
    %s30 = sld [smem:[#allocation5 + %s29]]
    %s31 = smul.addr %s30, 16
    %s32 = scalar_lea.hbm %s1, %s31
    %s33 = scalar_lea.vmem [#allocation2], 1
    %s34 = scalar_lea.sflag [#allocation3], 1
    // Predicated region
    $region6: #{_lambda_.2} parent=1 // pred_check
      _
    $region7: #{_lambda_.2} parent=1 // pred_check_branch
      %36 = sbr.rel target = $region9
    $region8: #{_lambda_.2} parent=1 // pred_region
      %37 = sst [smem:[#allocation10]] [#allocation13]
      %38 = sst [smem:[#allocation11]] [#allocation12]
    $region9: #{_lambda_.2} parent=1 // pred_fallthru
      _
    %40 = shalt.err (0)
    %s42 = sshll.u32 %s33, 4
    %s43 = int_to_ptr.vmem [resolvable:$true] %s42
    %45 = dma.hbm_to_vmem [thread:$0]  %s32, 16, %s43, %s34
    %s46 = sadd.s32 %s14, 2
    %s47 = sld [smem:[#allocation5 + %s46]]
    %s48 = smul.addr %s47, 16
    %s49 = scalar_lea.hbm %s1, %s48
    %s50 = scalar_lea.vmem [#allocation2], 2
    %s51 = scalar_lea.sflag [#allocation3], 2
    // Predicated region
    $region10: #{_lambda_.2} parent=1 // pred_check
      _
    $region11: #{_lambda_.2} parent=1 // pred_check_branch
      %53 = sbr.rel target = $region13
    $region12: #{_lambda_.2} parent=1 // pred_region
      %54 = sst [smem:[#allocation10]] [#allocation15]
      %55 = sst [smem:[#allocation11]] [#allocation14]
    $region13: #{_lambda_.2} parent=1 // pred_fallthru
      _
    %57 = shalt.err (0)
    %s59 = sshll.u32 %s50, 4
    %s60 = int_to_ptr.vmem [resolvable:$true] %s59
    %62 = dma.hbm_to_vmem [thread:$0]  %s49, 16, %s60, %s51
    %s63 = sadd.s32 %s14, 3
    %s64 = sld [smem:[#allocation5 + %s63]]
    %s65 = smul.addr %s64, 16
    %s66 = scalar_lea.hbm %s1, %s65
    %s67 = scalar_lea.vmem [#allocation2], 3
    %s68 = scalar_lea.sflag [#allocation3], 3
    // Predicated region
    $region14: #{_lambda_.2} parent=1 // pred_check
      _
    $region15: #{_lambda_.2} parent=1 // pred_check_branch
      %70 = sbr.rel target = $region17
    $region16: #{_lambda_.2} parent=1 // pred_region
      %71 = sst [smem:[#allocation10]] [#allocation17]
      %72 = sst [smem:[#allocation11]] [#allocation16]
    $region17: #{_lambda_.2} parent=1 // pred_fallthru
      _
    %74 = shalt.err (0)
    %s76 = sshll.u32 %s67, 4
    %s77 = int_to_ptr.vmem [resolvable:$true] %s76
    %79 = dma.hbm_to_vmem [thread:$0]  %s66, 16, %s77, %s68
    %s80 = sadd.s32 %s14, 4
    %s81 = sld [smem:[#allocation5 + %s80]]
    %s82 = smul.addr %s81, 16
    %s83 = scalar_lea.hbm %s1, %s82
    %s84 = scalar_lea.vmem [#allocation2], 4
    %s85 = scalar_lea.sflag [#allocation3], 4
    // Predicated region
    $region18: #{_lambda_.2} parent=1 // pred_check
      _
    $region19: #{_lambda_.2} parent=1 // pred_check_branch
      %87 = sbr.rel target = $region21
    $region20: #{_lambda_.2} parent=1 // pred_region
      %88 = sst [smem:[#allocation10]] [#allocation19]
      %89 = sst [smem:[#allocation11]] [#allocation18]
    $region21: #{_lambda_.2} parent=1 // pred_fallthru
      _
    %91 = shalt.err (0)
    %s93 = sshll.u32 %s84, 4
    %s94 = int_to_ptr.vmem [resolvable:$true] %s93
    %96 = dma.hbm_to_vmem [thread:$0]  %s83, 16, %s94, %s85
    %s97 = sadd.s32 %s14, 5
    %s98 = sld [smem:[#allocation5 + %s97]]
    %s99 = smul.addr %s98, 16
    %s100 = scalar_lea.hbm %s1, %s99
    %s101 = scalar_lea.vmem [#allocation2], 5
    %s102 = scalar_lea.sflag [#allocation3], 5
    // Predicated region
    $region22: #{_lambda_.2} parent=1 // pred_check
      _
    $region23: #{_lambda_.2} parent=1 // pred_check_branch
      %104 = sbr.rel target = $region25
    $region24: #{_lambda_.2} parent=1 // pred_region
      %105 = sst [smem:[#allocation10]] [#allocation21]
      %106 = sst [smem:[#allocation11]] [#allocation20]
    $region25: #{_lambda_.2} parent=1 // pred_fallthru
      _
    %108 = shalt.err (0)
    %s110 = sshll.u32 %s101, 4
    %s111 = int_to_ptr.vmem [resolvable:$true] %s110
    %113 = dma.hbm_to_vmem [thread:$0]  %s100, 16, %s111, %s102
    %s114 = sadd.s32 %s14, 6
    %s115 = sld [smem:[#allocation5 + %s114]]
    %s116 = smul.addr %s115, 16
    %s117 = scalar_lea.hbm %s1, %s116
    %s118 = scalar_lea.vmem [#allocation2], 6
    %s119 = scalar_lea.sflag [#allocation3], 6
    // Predicated region
    $region26: #{_lambda_.2} parent=1 // pred_check
      _
    $region27: #{_lambda_.2} parent=1 // pred_check_branch
      %121 = sbr.rel target = $region29
    $region28: #{_lambda_.2} parent=1 // pred_region
      %122 = sst [smem:[#allocation10]] [#allocation23]
      %123 = sst [smem:[#allocation11]] [#allocation22]
    $region29: #{_lambda_.2} parent=1 // pred_fallthru
      _
    %125 = shalt.err (0)
    %s127 = sshll.u32 %s118, 4
    %s128 = int_to_ptr.vmem [resolvable:$true] %s127
    %130 = dma.hbm_to_vmem [thread:$0]  %s117, 16, %s128, %s119
    %s131 = sadd.s32 %s14, 7
    %s132 = sld [smem:[#allocation5 + %s131]]
    %s133 = smul.addr %s132, 16
    %s134 = scalar_lea.hbm %s1, %s133
    %s135 = scalar_lea.vmem [#allocation2], 7
    %s136 = scalar_lea.sflag [#allocation3], 7
    // Predicated region
    $region30: #{_lambda_.2} parent=1 // pred_check
      _
    $region31: #{_lambda_.2} parent=1 // pred_check_branch
      %138 = sbr.rel target = $region33
    $region32: #{_lambda_.2} parent=1 // pred_region
      %139 = sst [smem:[#allocation10]] [#allocation25]
      %140 = sst [smem:[#allocation11]] [#allocation24]
    $region33: #{_lambda_.2} parent=1 // pred_fallthru
      _
    %142 = shalt.err (0)
    %s144 = sshll.u32 %s135, 4
    %s145 = int_to_ptr.vmem [resolvable:$true] %s144
    %147 = dma.hbm_to_vmem [thread:$0]  %s134, 16, %s145, %s136
    %s148 = sadd.s32 %s14, 8
    %s149 = sld [smem:[#allocation5 + %s148]]
    %s150 = smul.addr %s149, 16
    %s151 = scalar_lea.hbm %s1, %s150
    %s152 = scalar_lea.vmem [#allocation2], 8
    %s153 = scalar_lea.sflag [#allocation3], 8
    // Predicated region
    $region34: #{_lambda_.2} parent=1 // pred_check
      _
    $region35: #{_lambda_.2} parent=1 // pred_check_branch
      %155 = sbr.rel target = $region37
    $region36: #{_lambda_.2} parent=1 // pred_region
      %156 = sst [smem:[#allocation10]] [#allocation27]
      %157 = sst [smem:[#allocation11]] [#allocation26]
    $region37: #{_lambda_.2} parent=1 // pred_fallthru
      _
    %159 = shalt.err (0)
    %s161 = sshll.u32 %s152, 4
    %s162 = int_to_ptr.vmem [resolvable:$true] %s161
    %164 = dma.hbm_to_vmem [thread:$0]  %s151, 16, %s162, %s153
    %s165 = sadd.s32 %s14, 9
    %s166 = sld [smem:[#allocation5 + %s165]]
    %s167 = smul.addr %s166, 16
    %s168 = scalar_lea.hbm %s1, %s167
    %s169 = scalar_lea.vmem [#allocation2], 9
    %s170 = scalar_lea.sflag [#allocation3], 9
    // Predicated region
    $region38: #{_lambda_.2} parent=1 // pred_check
      _
    $region39: #{_lambda_.2} parent=1 // pred_check_branch
      %172 = sbr.rel target = $region41
    $region40: #{_lambda_.2} parent=1 // pred_region
      %173 = sst [smem:[#allocation10]] [#allocation29]
      %174 = sst [smem:[#allocation11]] [#allocation28]
    $region41: #{_lambda_.2} parent=1 // pred_fallthru
      _
    %176 = shalt.err (0)
    %s178 = sshll.u32 %s169, 4
    %s179 = int_to_ptr.vmem [resolvable:$true] %s178
    %181 = dma.hbm_to_vmem [thread:$0]  %s168, 16, %s179, %s170
    %s182 = sadd.s32 %s14, 10
    %s183 = sld [smem:[#allocation5 + %s182]]
    %s184 = smul.addr %s183, 16
    %s185 = scalar_lea.hbm %s1, %s184
    %s186 = scalar_lea.vmem [#allocation2], 10
    %s187 = scalar_lea.sflag [#allocation3], 10
    // Predicated region
    $region42: #{_lambda_.2} parent=1 // pred_check
      _
    $region43: #{_lambda_.2} parent=1 // pred_check_branch
      %189 = sbr.rel target = $region45
    $region44: #{_lambda_.2} parent=1 // pred_region
      %190 = sst [smem:[#allocation10]] [#allocation31]
      %191 = sst [smem:[#allocation11]] [#allocation30]
    $region45: #{_lambda_.2} parent=1 // pred_fallthru
      _
    %193 = shalt.err (0)
    %s195 = sshll.u32 %s186, 4
    %s196 = int_to_ptr.vmem [resolvable:$true] %s195
    %198 = dma.hbm_to_vmem [thread:$0]  %s185, 16, %s196, %s187
    %s199 = sadd.s32 %s14, 11
    %s200 = sld [smem:[#allocation5 + %s199]]
    %s201 = smul.addr %s200, 16
    %s202 = scalar_lea.hbm %s1, %s201
    %s203 = scalar_lea.vmem [#allocation2], 11
    %s204 = scalar_lea.sflag [#allocation3], 11
    // Predicated region
    $region46: #{_lambda_.2} parent=1 // pred_check
      _
    $region47: #{_lambda_.2} parent=1 // pred_check_branch
      %206 = sbr.rel target = $region49
    $region48: #{_lambda_.2} parent=1 // pred_region
      %207 = sst [smem:[#allocation10]] [#allocation33]
      %208 = sst [smem:[#allocation11]] [#allocation32]
    $region49: #{_lambda_.2} parent=1 // pred_fallthru
      _
    %210 = shalt.err (0)
    %s212 = sshll.u32 %s203, 4
    %s213 = int_to_ptr.vmem [resolvable:$true] %s212
    %215 = dma.hbm_to_vmem [thread:$0]  %s202, 16, %s213, %s204
    %s216 = sadd.s32 %s14, 12
    %s217 = sld [smem:[#allocation5 + %s216]]
    %s218 = smul.addr %s217, 16
    %s219 = scalar_lea.hbm %s1, %s218
    %s220 = scalar_lea.vmem [#allocation2], 12
    %s221 = scalar_lea.sflag [#allocation3], 12
    // Predicated region
    $region50: #{_lambda_.2} parent=1 // pred_check
      _
    $region51: #{_lambda_.2} parent=1 // pred_check_branch
      %223 = sbr.rel target = $region53
    $region52: #{_lambda_.2} parent=1 // pred_region
      %224 = sst [smem:[#allocation10]] [#allocation35]
      %225 = sst [smem:[#allocation11]] [#allocation34]
    $region53: #{_lambda_.2} parent=1 // pred_fallthru
      _
    %227 = shalt.err (0)
    %s229 = sshll.u32 %s220, 4
    %s230 = int_to_ptr.vmem [resolvable:$true] %s229
    %232 = dma.hbm_to_vmem [thread:$0]  %s219, 16, %s230, %s221
    %s233 = sadd.s32 %s14, 13
    %s234 = sld [smem:[#allocation5 + %s233]]
    %s235 = smul.addr %s234, 16
    %s236 = scalar_lea.hbm %s1, %s235
    %s237 = scalar_lea.vmem [#allocation2], 13
    %s238 = scalar_lea.sflag [#allocation3], 13
    // Predicated region
    $region54: #{_lambda_.2} parent=1 // pred_check
      _
    $region55: #{_lambda_.2} parent=1 // pred_check_branch
      %240 = sbr.rel target = $region57
    $region56: #{_lambda_.2} parent=1 // pred_region
      %241 = sst [smem:[#allocation10]] [#allocation37]
      %242 = sst [smem:[#allocation11]] [#allocation36]
    $region57: #{_lambda_.2} parent=1 // pred_fallthru
      _
    %244 = shalt.err (0)
    %s246 = sshll.u32 %s237, 4
    %s247 = int_to_ptr.vmem [resolvable:$true] %s246
    %249 = dma.hbm_to_vmem [thread:$0]  %s236, 16, %s247, %s238
    %s250 = sadd.s32 %s14, 14
    %s251 = sld [smem:[#allocation5 + %s250]]
    %s252 = smul.addr %s251, 16
    %s253 = scalar_lea.hbm %s1, %s252
    %s254 = scalar_lea.vmem [#allocation2], 14
    %s255 = scalar_lea.sflag [#allocation3], 14
    // Predicated region
    $region58: #{_lambda_.2} parent=1 // pred_check
      _
    $region59: #{_lambda_.2} parent=1 // pred_check_branch
      %257 = sbr.rel target = $region61
    $region60: #{_lambda_.2} parent=1 // pred_region
      %258 = sst [smem:[#allocation10]] [#allocation39]
      %259 = sst [smem:[#allocation11]] [#allocation38]
    $region61: #{_lambda_.2} parent=1 // pred_fallthru
      _
    %261 = shalt.err (0)
    %s263 = sshll.u32 %s254, 4
    %s264 = int_to_ptr.vmem [resolvable:$true] %s263
    %266 = dma.hbm_to_vmem [thread:$0]  %s253, 16, %s264, %s255
    %s267 = sadd.s32 %s14, 15
    %s268 = sld [smem:[#allocation5 + %s267]]
    %s269 = smul.addr %s268, 16
    %s270 = scalar_lea.hbm %s1, %s269
    %s271 = scalar_lea.vmem [#allocation2], 15
    %s272 = scalar_lea.sflag [#allocation3], 15
    // Predicated region
    $region62: #{_lambda_.2} parent=1 // pred_check
      _
    $region63: #{_lambda_.2} parent=1 // pred_check_branch
      %274 = sbr.rel target = $region65
    $region64: #{_lambda_.2} parent=1 // pred_region
      %275 = sst [smem:[#allocation10]] [#allocation41]
      %276 = sst [smem:[#allocation11]] [#allocation40]
    $region65: #{_lambda_.2} parent=1 // pred_fallthru
      _
    %278 = shalt.err (0)
    %s280 = sshll.u32 %s271, 4
    %s281 = int_to_ptr.vmem [resolvable:$true] %s280
    %283 = dma.hbm_to_vmem [thread:$0]  %s270, 16, %s281, %s272
    loop: start=0, step=1, limit=128
    $region66: #{_lambda_.2} parent=1 // loop_pre_header
      _
    $region67: #{_lambda_.2} parent=1 // loop_header
      %s285 = sphi 0, %s289
      %p286 = scmp.ge.s32.totalorder %s285, 128
    $region68: #{_lambda_.2} parent=1 // loop_header_branch
      %288 = sbr.rel (%p286) target = $region72
    $region69: #{_lambda_.2} parent=1 // loop_body
      %p290 = scmp.lt.s32.totalorder %s285, 0
      %s291 = ssub.s32 0, %s285
      %s292 = scalar_select %p290, %s291, %s285
      %s293 = sand.u32 %s292, 15
      %s294 = ssub.s32 0, %s293
      %s295 = scalar_select %p290, %s294, %s293
      %p296 = scmp.ne.s32.totalorder %s295, 0
      %p297 = scmp.lt.s32.totalorder %s295, 0
      %p298 = pnand %p297, %p296
      %p299 = pneg %p298
      %s300 = sadd.s32 %s295, 16
      %s301 = scalar_select %p299, %s300, %s295
      %s302 = sadd.s32 %s14, %s285
      %s303 = sld [smem:[#allocation5 + %s302]]
      %s304 = scalar_lea.sflag [#allocation3], %s301
      %s305 = smul.u32 1, 1
      %s306 = sshll.u32 %s305, 4
      %307 = dma.done %s304, %s306
      %s308 = sadd.s32 %s285, 16
      %p309 = scmp.lt.s32.totalorder %s308, 128
      // Predicated region
      $region73: #{_lambda_.2} parent=69 // pred_check
        %p310 = pneg %p309
      $region74: #{_lambda_.2} parent=69 // pred_check_branch
        %312 = sbr.rel (%p310) target = $region76
      $region75: #{_lambda_.2} parent=69 // pred_region
        %s313 = sadd.s32 %s14, %s308
        %s314 = sld [smem:[#allocation5 + %s313]]
        %s315 = smul.addr %s314, 16
        %s316 = scalar_lea.hbm %s1, %s315
        %s317 = scalar_lea.vmem [#allocation2], %s308
        // Predicated region
        $region77: #{_lambda_.2} parent=75 // pred_check
          _
        $region78: #{_lambda_.2} parent=75 // pred_check_branch
          %319 = sbr.rel target = $region80
        $region79: #{_lambda_.2} parent=75 // pred_region
          %320 = sst [smem:[#allocation10]] [#allocation43]
          %321 = sst [smem:[#allocation11]] [#allocation42]
        $region80: #{_lambda_.2} parent=75 // pred_fallthru
          _
        %323 = shalt.err (0)
        %s325 = sshll.u32 %s317, 4
        %s326 = int_to_ptr.vmem [resolvable:$true] %s325
        %328 = dma.hbm_to_vmem [thread:$0]  %s316, 16, %s326, %s304
      $region76: #{_lambda_.2} parent=69 // pred_fallthru
        _
    $region70: #{_lambda_.2} parent=1 // loop_footer
      %s289 = sadd.s32 1, %s285
    $region71: #{_lambda_.2} parent=1 // loop_footer_branch
      %284 = sbr.rel target = $region67
    $region72: #{_lambda_.2} parent=1 // loop_exit
      _
    %v329 = vld [vmem:[#allocation2] sm:$0xff]
    %v330 = vld [vmem:[#allocation2 + $0x8] sm:$0xff]
    %v331 = vld [vmem:[#allocation2 + $0x10] sm:$0xff]
    %v332 = vld [vmem:[#allocation2 + $0x18] sm:$0xff]
    %v333 = vld [vmem:[#allocation2 + $0x20] sm:$0xff]
    %v334 = vld [vmem:[#allocation2 + $0x28] sm:$0xff]
    %v335 = vld [vmem:[#allocation2 + $0x30] sm:$0xff]
    %v336 = vld [vmem:[#allocation2 + $0x38] sm:$0xff]
    %v337 = vld [vmem:[#allocation2 + $0x40] sm:$0xff]
    %v338 = vld [vmem:[#allocation2 + $0x48] sm:$0xff]
    %v339 = vld [vmem:[#allocation2 + $0x50] sm:$0xff]
    %v340 = vld [vmem:[#allocation2 + $0x58] sm:$0xff]
    %v341 = vld [vmem:[#allocation2 + $0x60] sm:$0xff]
    %v342 = vld [vmem:[#allocation2 + $0x68] sm:$0xff]
    %v343 = vld [vmem:[#allocation2 + $0x70] sm:$0xff]
    %v344 = vld [vmem:[#allocation2 + $0x78] sm:$0xff]
    %345 = vst [vmem:[#allocation6] sm:$0xff] %v329
    %346 = vst [vmem:[#allocation6 + $0x8] sm:$0xff] %v330
    %347 = vst [vmem:[#allocation6 + $0x10] sm:$0xff] %v331
    %348 = vst [vmem:[#allocation6 + $0x18] sm:$0xff] %v332
    %349 = vst [vmem:[#allocation6 + $0x20] sm:$0xff] %v333
    %350 = vst [vmem:[#allocation6 + $0x28] sm:$0xff] %v334
    %351 = vst [vmem:[#allocation6 + $0x30] sm:$0xff] %v335
    %352 = vst [vmem:[#allocation6 + $0x38] sm:$0xff] %v336
    %353 = vst [vmem:[#allocation6 + $0x40] sm:$0xff] %v337
    %354 = vst [vmem:[#allocation6 + $0x48] sm:$0xff] %v338
    %355 = vst [vmem:[#allocation6 + $0x50] sm:$0xff] %v339
    %356 = vst [vmem:[#allocation6 + $0x58] sm:$0xff] %v340
    %357 = vst [vmem:[#allocation6 + $0x60] sm:$0xff] %v341
    %358 = vst [vmem:[#allocation6 + $0x68] sm:$0xff] %v342
    %359 = vst [vmem:[#allocation6 + $0x70] sm:$0xff] %v343
    %360 = vst [vmem:[#allocation6 + $0x78] sm:$0xff] %v344
    // Predicated region
    $region81: #{_lambda_.2} parent=1 // pred_check
      _
    $region82: #{_lambda_.2} parent=1 // pred_check_branch
      %362 = sbr.rel (0) target = $region84
    $region83: #{_lambda_.2} parent=1 // pred_region
      %s364 = ssub.s32 2048, 2048
      %365 = vsyncadd [#allocation7], %s364
      %s366 = sshll.u32 [#allocation6], 4
      %s367 = int_to_ptr.vmem [resolvable:$true] %s366
      %372 = dma.vmem_to_hbm [thread:$0]  %s367, 2048, %s2, [#allocation7], 128, 128, 8
    $region84: #{_lambda_.2} parent=1 // pred_fallthru
      _
    // Predicated region
    $region85: #{_lambda_.2} parent=1 // pred_check
      _
    $region86: #{_lambda_.2} parent=1 // pred_check_branch
      %374 = sbr.rel (0) target = $region88
    $region87: #{_lambda_.2} parent=1 // pred_region
      %375 = dma.done [#allocation7], 2048
    $region88: #{_lambda_.2} parent=1 // pred_fallthru
      _
    %376 = vsyncpa [#allocation7], 1
  %377 = vsyncmov [#allocation3]
  %s378 = vpop.sfrf %377
  %p379 = scmp.eq.s32.totalorder %s378, 0
  %p380 = pneg %p379
  %382 = shalt.err (%p380)
  %s383 = scalar_lea.sflag [#allocation3], 1
  %384 = vsyncmov %s383
  %s385 = vpop.sfrf %384
  %p386 = scmp.eq.s32.totalorder %s385, 0
  %p387 = pneg %p386
  %389 = shalt.err (%p387)
  %s390 = scalar_lea.sflag [#allocation3], 2
  %391 = vsyncmov %s390
  %s392 = vpop.sfrf %391
  %p393 = scmp.eq.s32.totalorder %s392, 0
  %p394 = pneg %p393
  %396 = shalt.err (%p394)
  %s397 = scalar_lea.sflag [#allocation3], 3
  %398 = vsyncmov %s397
  %s399 = vpop.sfrf %398
  %p400 = scmp.eq.s32.totalorder %s399, 0
  %p401 = pneg %p400
  %403 = shalt.err (%p401)
  %s404 = scalar_lea.sflag [#allocation3], 4
  %405 = vsyncmov %s404
  %s406 = vpop.sfrf %405
  %p407 = scmp.eq.s32.totalorder %s406, 0
  %p408 = pneg %p407
  %410 = shalt.err (%p408)
  %s411 = scalar_lea.sflag [#allocation3], 5
  %412 = vsyncmov %s411
  %s413 = vpop.sfrf %412
  %p414 = scmp.eq.s32.totalorder %s413, 0
  %p415 = pneg %p414
  %417 = shalt.err (%p415)
  %s418 = scalar_lea.sflag [#allocation3], 6
  %419 = vsyncmov %s418
  %s420 = vpop.sfrf %419
  %p421 = scmp.eq.s32.totalorder %s420, 0
  %p422 = pneg %p421
  %424 = shalt.err (%p422)
  %s425 = scalar_lea.sflag [#allocation3], 7
  %426 = vsyncmov %s425
  %s427 = vpop.sfrf %426
  %p428 = scmp.eq.s32.totalorder %s427, 0
  %p429 = pneg %p428
  %431 = shalt.err (%p429)
  %s432 = scalar_lea.sflag [#allocation3], 8
  %433 = vsyncmov %s432
  %s434 = vpop.sfrf %433
  %p435 = scmp.eq.s32.totalorder %s434, 0
  %p436 = pneg %p435
  %438 = shalt.err (%p436)
  %s439 = scalar_lea.sflag [#allocation3], 9
  %440 = vsyncmov %s439
  %s441 = vpop.sfrf %440
  %p442 = scmp.eq.s32.totalorder %s441, 0
  %p443 = pneg %p442
  %445 = shalt.err (%p443)
  %s446 = scalar_lea.sflag [#allocation3], 10
  %447 = vsyncmov %s446
  %s448 = vpop.sfrf %447
  %p449 = scmp.eq.s32.totalorder %s448, 0
  %p450 = pneg %p449
  %452 = shalt.err (%p450)
  %s453 = scalar_lea.sflag [#allocation3], 11
  %454 = vsyncmov %s453
  %s455 = vpop.sfrf %454
  %p456 = scmp.eq.s32.totalorder %s455, 0
  %p457 = pneg %p456
  %459 = shalt.err (%p457)
  %s460 = scalar_lea.sflag [#allocation3], 12
  %461 = vsyncmov %s460
  %s462 = vpop.sfrf %461
  %p463 = scmp.eq.s32.totalorder %s462, 0
  %p464 = pneg %p463
  %466 = shalt.err (%p464)
  %s467 = scalar_lea.sflag [#allocation3], 13
  %468 = vsyncmov %s467
  %s469 = vpop.sfrf %468
  %p470 = scmp.eq.s32.totalorder %s469, 0
  %p471 = pneg %p470
  %473 = shalt.err (%p471)
  %s474 = scalar_lea.sflag [#allocation3], 14
  %475 = vsyncmov %s474
  %s476 = vpop.sfrf %475
  %p477 = scmp.eq.s32.totalorder %s476, 0
  %p478 = pneg %p477
  %480 = shalt.err (%p478)
  %s481 = scalar_lea.sflag [#allocation3], 15
  %482 = vsyncmov %s481
  %s483 = vpop.sfrf %482
  %p484 = scmp.eq.s32.totalorder %s483, 0
  %p485 = pneg %p484
  %487 = shalt.err (%p485)

// kernel: _lambda_.3
$region0: #{_lambda_.3}
  #allocation0 [shape = 'u32[]', space=smem, size = 0x4, offset = 0x4, fixed_abs, tag = 'smem constant byte address 0x4 - core index']
  #allocation1 [shape = 'u32[144,128]{1,0:T(1,128)}', space=vmem, size = 0x12000, scoped, tag = 'internal scratch']
  #allocation2 [shape = 'f32[256,128]{1,0:T(8,128)}', space=vmem, size = 0x20000, scoped, tag = 'scratch operand']
  #allocation3 [shape = 's32[16]{0}', space=sflag, size = 0x40, scoped, tag = 'scratch operand']
  #allocation4 [shape = 's32[1]{0}', space=sflag, size = 0x4, scoped, tag = 'scoped memory for _lambda_.3']
  #allocation5 [shape = 'u8[3072]{0}', space=smem, size = 0xc00, scoped, tag = 'prefetched SMEM operand 0']
  #allocation6 [shape = 's32[]', space=sflag, size = 0x4, offset = 0, fixed_abs, tag = 'sflag constant byte address 0x0 - dummy sync flag']
  #allocation7 [shape = 's32[]', space=sflag, size = 0x4, offset = 0, fixed_abs, tag = 'sflag constant byte address 0x0 - dummy sync flag']
  #allocation8 [shape = 's32[]', space=sflag, size = 0x4, offset = 0, fixed_abs, tag = 'sflag constant byte address 0x0 - dummy sync flag']
  #allocation9 [shape = 's32[]', space=sflag, size = 0x4, offset = 0, fixed_abs, tag = 'sflag constant byte address 0x0 - dummy sync flag']
  #allocation10 [shape = 's32[]', space=sflag, size = 0x4, offset = 0, fixed_abs, tag = 'sflag constant byte address 0x0 - dummy sync flag']
  #allocation11 [shape = 's32[]', space=sflag, size = 0x4, offset = 0, fixed_abs, tag = 'sflag constant byte address 0x0 - dummy sync flag']
  #allocation12 [shape = 's32[]', space=sflag, size = 0x4, offset = 0, fixed_abs, tag = 'sflag constant byte address 0x0 - dummy sync flag']
  #allocation13 [shape = 's32[]', space=sflag, size = 0x4, offset = 0, fixed_abs, tag = 'sflag constant byte address 0x0 - dummy sync flag']
  #allocation14 [shape = 's32[]', space=sflag, size = 0x4, offset = 0, fixed_abs, tag = 'sflag constant byte address 0x0 - dummy sync flag']
  #allocation15 [shape = 's32[]', space=sflag, size = 0x4, offset = 0, fixed_abs, tag = 'sflag constant byte address 0x0 - dummy sync flag']
  #allocation16 [shape = 's32[]', space=sflag, size = 0x4, offset = 0, fixed_abs, tag = 'sflag constant byte address 0x0 - dummy sync flag']
  #allocation17 [shape = 's32[]', space=sflag, size = 0x4, offset = 0, fixed_abs, tag = 'sflag constant byte address 0x0 - dummy sync flag']
  #allocation18 [shape = 's32[]', space=sflag, size = 0x4, offset = 0, fixed_abs, tag = 'sflag constant byte address 0x0 - dummy sync flag']
  #allocation19 [shape = 's32[]', space=sflag, size = 0x4, offset = 0, fixed_abs, tag = 'sflag constant byte address 0x0 - dummy sync flag']
  #allocation20 [shape = 's32[]', space=sflag, size = 0x4, offset = 0, fixed_abs, tag = 'sflag constant byte address 0x0 - dummy sync flag']
  #allocation21 [shape = 's32[]', space=sflag, size = 0x4, offset = 0, fixed_abs, tag = 'sflag constant byte address 0x0 - dummy sync flag']
  #allocation22 [shape = 's32[]', space=sflag, size = 0x4, offset = 0, fixed_abs, tag = 'sflag constant byte address 0x0 - dummy sync flag']
  %s0 = inlined_call_operand.vmem [shape: s32[768], index: 0, kind: input, shape index: {}]
  %s1 = inlined_call_operand.vmem [shape: f32[4096,128], index: 1, kind: input, shape index: {}]
  %s2 = inlined_call_operand.vmem [shape: f32[768,128], index: 2, kind: output, shape index: {}]
  %s3 = sld [smem:[#allocation0]]
  $region546: #{_lambda_.3} parent=0
    _
  %s5 = ssub.s32 1, %s3
  %s6 = scalar_select 0, %s5, %s3
  %s7 = sshll.u32 %s0, 4
  %s8 = int_to_ptr.vmem [resolvable:$true] %s7
  %10 = dma.vmem_to_smem %s8, 96, [#allocation5], [#allocation4]
  %11 = dma.done [#allocation4], 96
  %12 = sfence
  loop: start=0, step=1, limit=4
  $region2: #{_lambda_.3} parent=0 // loop_pre_header
    _
  $region3: #{_lambda_.3} parent=0 // loop_header
    %s14 = sphi 0, %s18
    %p15 = scmp.ge.s32.totalorder %s14, 4
    %s23 = sphi 0, %s25
    %s26 = sphi 0, %s23
    %s36 = sphi 0, %s26
  $region4: #{_lambda_.3} parent=0 // loop_header_branch
    %17 = sbr.rel (%p15) target = $region8
  $region5: #{_lambda_.3} parent=0 // loop_body
    %s19 = ssub.s32 %s14, 1
    %s20 = sadd.s32 %s14, 1
    %s21 = ssub.s32 %s14, %s20
    %p22 = scmp.eq.s32.totalorder %s21, 0
    %s24 = sadd.s32 %s23, 1
    %s25 = scalar_select %p22, %s23, %s24
    %p27 = pneg %p22
    %p28 = scmp.eq.s32.totalorder %s14, 2
    %p29 = por %p27, %p28
    %p30 = scmp.ne.s32.totalorder %s23, %s26
    %p31 = scmp.eq.s32.totalorder %s14, 0
    %p32 = por %p30, %p31
    %p33 = scmp.ne.s32.totalorder %s23, %s26
    %p34 = scmp.eq.s32.totalorder %s19, 2
    %p35 = por %p33, %p34
    %p37 = scmp.ne.s32.totalorder %s26, %s36
    %p38 = scmp.eq.s32.totalorder %s19, 0
    %p39 = por %p37, %p38
    %p40 = scmp.lt.s32.totalorder %s14, 3
    // Predicated region
    $region9: #{_lambda_.3} parent=5 // pred_check
      %p41 = pneg %p40
    $region10: #{_lambda_.3} parent=5 // pred_check_branch
      %43 = sbr.rel (%p41) target = $region12
    $region11: #{_lambda_.3} parent=5 // pred_region
      %p44 = pneg %p32
      %p45 = pneg %p29
      %s46 = smul.u32 32, %s14
      %p47 = scmp.lt.s32.totalorder %s46, 95
      %s48 = scalar_select %p47, %s46, 95
      %s49 = smul.addr %s48, 8
      %s50 = scalar_lea.vmem %s2, %s49
      %s51 = smul.u32 32, %s14
      %p52 = scmp.lt.s32.totalorder %s51, 95
      %s53 = scalar_select %p52, %s51, 95
      %s54 = smul.addr %s53, 8
      %s55 = scalar_lea.vmem %s2, %s54
      %s56 = smul.u32 32, %s14
      %s57 = smul.u32 %s14, 256
      %s58 = sld [smem:[#allocation5 + %s57]]
      %s59 = scalar_lea.vmem %s1, %s58
      %p61 = scmp.lt.u32.totalorder 1, 8
      %p62 = pneg %p61
      // Predicated region
      $region13: #{_lambda_.3} parent=11 // pred_check
        _
      $region14: #{_lambda_.3} parent=11 // pred_check_branch
        %64 = sbr.rel (%p61) target = $region16
      $region15: #{_lambda_.3} parent=11 // pred_region
        %s79 = sand.u32 1, 7
        %p80 = scmp.eq.s32.totalorder %s79, 0
        %p81 = pneg %p80
        // Predicated region
        $region28: #{_lambda_.3} parent=15 // pred_check
          _
        $region29: #{_lambda_.3} parent=15 // pred_check_branch
          %83 = sbr.rel (%p80) target = $region31
        $region30: #{_lambda_.3} parent=15 // pred_region
          %s84 = sand.u32 1, 7
          %s85 = ssub.s32 1, %s84
          %s86 = scalar_lea.vmem %s59, %s85
          %s87 = ssub.s32 1, %s84
          %s88 = scalar_lea.vmem [#allocation2], %s87
          %s89 = sshllo.u32 0, %s84
          loop: start=0, step=1, limit=1
          $region32: #{_lambda_.3} parent=30 // loop_pre_header
            _
          $region33: #{_lambda_.3} parent=30 // loop_header
            %s91 = sphi 0, %s95
            %p92 = scmp.ge.s32.totalorder %s91, 1
            %s96 = sphi %s86, %s86
            %s97 = sphi %s88, %s88
          $region34: #{_lambda_.3} parent=30 // loop_header_branch
            %94 = sbr.rel (%p92) target = $region38
          $region35: #{_lambda_.3} parent=30 // loop_body
            %v98 = vld [vmem:[%s96] sm:%s89]
            %99 = vst [vmem:[%s97] sm:%s89] %v98
          $region36: #{_lambda_.3} parent=30 // loop_footer
            %s95 = sadd.s32 1, %s91
          $region37: #{_lambda_.3} parent=30 // loop_footer_branch
            %90 = sbr.rel target = $region33
          $region38: #{_lambda_.3} parent=30 // loop_exit
            _
        $region31: #{_lambda_.3} parent=15 // pred_fallthru
          _
      $region16: #{_lambda_.3} parent=11 // pred_fallthru
        _
      // Predicated region
      $region17: #{_lambda_.3} parent=11 // pred_check
        %p65 = pneg %p61
      $region18: #{_lambda_.3} parent=11 // pred_check_branch
        %67 = sbr.rel (%p65) target = $region20
      $region19: #{_lambda_.3} parent=11 // pred_region
        %s68 = sshllo.u32 0, 1
        loop: start=0, step=1, limit=1
        $region21: #{_lambda_.3} parent=19 // loop_pre_header
          _
        $region22: #{_lambda_.3} parent=19 // loop_header
          %s70 = sphi 0, %s74
          %p71 = scmp.ge.s32.totalorder %s70, 1
          %s75 = sphi %s59, %s59
          %s76 = sphi [#allocation2], [#allocation2]
        $region23: #{_lambda_.3} parent=19 // loop_header_branch
          %73 = sbr.rel (%p71) target = $region27
        $region24: #{_lambda_.3} parent=19 // loop_body
          %v77 = vld [vmem:[%s75] sm:%s68]
          %78 = vst [vmem:[%s76] sm:%s68] %v77
        $region25: #{_lambda_.3} parent=19 // loop_footer
          %s74 = sadd.s32 1, %s70
        $region26: #{_lambda_.3} parent=19 // loop_footer_branch
          %69 = sbr.rel target = $region22
        $region27: #{_lambda_.3} parent=19 // loop_exit
          _
      $region20: #{_lambda_.3} parent=11 // pred_fallthru
        _
      // Predicated region
      $region39: #{_lambda_.3} parent=11 // pred_check
        _
      $region40: #{_lambda_.3} parent=11 // pred_check_branch
        %102 = sbr.rel (0) target = $region42
      $region41: #{_lambda_.3} parent=11 // pred_region
        %103 = vsyncadd [#allocation3], 16
      $region42: #{_lambda_.3} parent=11 // pred_fallthru
        _
      %s104 = sadd.s32 %s57, 1
      %s105 = sld [smem:[#allocation5 + %s104]]
      %s106 = scalar_lea.vmem %s1, %s105
      %s107 = scalar_lea.vmem [#allocation2], 1
      %s108 = scalar_lea.sflag [#allocation3], 1
      %p110 = scmp.lt.u32.totalorder 1, 8
      %p111 = pneg %p110
      // Predicated region
      $region43: #{_lambda_.3} parent=11 // pred_check
        _
      $region44: #{_lambda_.3} parent=11 // pred_check_branch
        %113 = sbr.rel (%p110) target = $region46
      $region45: #{_lambda_.3} parent=11 // pred_region
        %s128 = sand.u32 1, 7
        %p129 = scmp.eq.s32.totalorder %s128, 0
        %p130 = pneg %p129
        // Predicated region
        $region58: #{_lambda_.3} parent=45 // pred_check
          _
        $region59: #{_lambda_.3} parent=45 // pred_check_branch
          %132 = sbr.rel (%p129) target = $region61
        $region60: #{_lambda_.3} parent=45 // pred_region
          %s133 = sand.u32 1, 7
          %s134 = ssub.s32 1, %s133
          %s135 = scalar_lea.vmem %s106, %s134
          %s136 = ssub.s32 1, %s133
          %s137 = scalar_lea.vmem %s107, %s136 [#allocation2]
          %s138 = sshllo.u32 0, %s133
          loop: start=0, step=1, limit=1
          $region62: #{_lambda_.3} parent=60 // loop_pre_header
            _
          $region63: #{_lambda_.3} parent=60 // loop_header
            %s140 = sphi 0, %s144
            %p141 = scmp.ge.s32.totalorder %s140, 1
            %s145 = sphi %s135, %s135
            %s146 = sphi %s137, %s137
          $region64: #{_lambda_.3} parent=60 // loop_header_branch
            %143 = sbr.rel (%p141) target = $region68
          $region65: #{_lambda_.3} parent=60 // loop_body
            %v147 = vld [vmem:[%s145] sm:%s138]
            %148 = vst [vmem:[%s146] sm:%s138] %v147
          $region66: #{_lambda_.3} parent=60 // loop_footer
            %s144 = sadd.s32 1, %s140
          $region67: #{_lambda_.3} parent=60 // loop_footer_branch
            %139 = sbr.rel target = $region63
          $region68: #{_lambda_.3} parent=60 // loop_exit
            _
        $region61: #{_lambda_.3} parent=45 // pred_fallthru
          _
      $region46: #{_lambda_.3} parent=11 // pred_fallthru
        _
      // Predicated region
      $region47: #{_lambda_.3} parent=11 // pred_check
        %p114 = pneg %p110
      $region48: #{_lambda_.3} parent=11 // pred_check_branch
        %116 = sbr.rel (%p114) target = $region50
      $region49: #{_lambda_.3} parent=11 // pred_region
        %s117 = sshllo.u32 0, 1
        loop: start=0, step=1, limit=1
        $region51: #{_lambda_.3} parent=49 // loop_pre_header
          _
        $region52: #{_lambda_.3} parent=49 // loop_header
          %s119 = sphi 0, %s123
          %p120 = scmp.ge.s32.totalorder %s119, 1
          %s124 = sphi %s106, %s106
          %s125 = sphi %s107, %s107
        $region53: #{_lambda_.3} parent=49 // loop_header_branch
          %122 = sbr.rel (%p120) target = $region57
        $region54: #{_lambda_.3} parent=49 // loop_body
          %v126 = vld [vmem:[%s124] sm:%s117]
          %127 = vst [vmem:[%s125] sm:%s117] %v126
        $region55: #{_lambda_.3} parent=49 // loop_footer
          %s123 = sadd.s32 1, %s119
        $region56: #{_lambda_.3} parent=49 // loop_footer_branch
          %118 = sbr.rel target = $region52
        $region57: #{_lambda_.3} parent=49 // loop_exit
          _
      $region50: #{_lambda_.3} parent=11 // pred_fallthru
        _
      // Predicated region
      $region69: #{_lambda_.3} parent=11 // pred_check
        _
      $region70: #{_lambda_.3} parent=11 // pred_check_branch
        %151 = sbr.rel (0) target = $region72
      $region71: #{_lambda_.3} parent=11 // pred_region
        %152 = vsyncadd %s108, 16
      $region72: #{_lambda_.3} parent=11 // pred_fallthru
        _
      %s153 = sadd.s32 %s57, 2
      %s154 = sld [smem:[#allocation5 + %s153]]
      %s155 = scalar_lea.vmem %s1, %s154
      %s156 = scalar_lea.vmem [#allocation2], 2
      %s157 = scalar_lea.sflag [#allocation3], 2
      %p159 = scmp.lt.u32.totalorder 1, 8
      %p160 = pneg %p159
      // Predicated region
      $region73: #{_lambda_.3} parent=11 // pred_check
        _
      $region74: #{_lambda_.3} parent=11 // pred_check_branch
        %162 = sbr.rel (%p159) target = $region76
      $region75: #{_lambda_.3} parent=11 // pred_region
        %s177 = sand.u32 1, 7
        %p178 = scmp.eq.s32.totalorder %s177, 0
        %p179 = pneg %p178
        // Predicated region
        $region88: #{_lambda_.3} parent=75 // pred_check
          _
        $region89: #{_lambda_.3} parent=75 // pred_check_branch
          %181 = sbr.rel (%p178) target = $region91
        $region90: #{_lambda_.3} parent=75 // pred_region
          %s182 = sand.u32 1, 7
          %s183 = ssub.s32 1, %s182
          %s184 = scalar_lea.vmem %s155, %s183
          %s185 = ssub.s32 1, %s182
          %s186 = scalar_lea.vmem %s156, %s185 [#allocation2]
          %s187 = sshllo.u32 0, %s182
          loop: start=0, step=1, limit=1
          $region92: #{_lambda_.3} parent=90 // loop_pre_header
            _
          $region93: #{_lambda_.3} parent=90 // loop_header
            %s189 = sphi 0, %s193
            %p190 = scmp.ge.s32.totalorder %s189, 1
            %s194 = sphi %s184, %s184
            %s195 = sphi %s186, %s186
          $region94: #{_lambda_.3} parent=90 // loop_header_branch
            %192 = sbr.rel (%p190) target = $region98
          $region95: #{_lambda_.3} parent=90 // loop_body
            %v196 = vld [vmem:[%s194] sm:%s187]
            %197 = vst [vmem:[%s195] sm:%s187] %v196
          $region96: #{_lambda_.3} parent=90 // loop_footer
            %s193 = sadd.s32 1, %s189
          $region97: #{_lambda_.3} parent=90 // loop_footer_branch
            %188 = sbr.rel target = $region93
          $region98: #{_lambda_.3} parent=90 // loop_exit
            _
        $region91: #{_lambda_.3} parent=75 // pred_fallthru
          _
      $region76: #{_lambda_.3} parent=11 // pred_fallthru
        _
      // Predicated region
      $region77: #{_lambda_.3} parent=11 // pred_check
        %p163 = pneg %p159
      $region78: #{_lambda_.3} parent=11 // pred_check_branch
        %165 = sbr.rel (%p163) target = $region80
      $region79: #{_lambda_.3} parent=11 // pred_region
        %s166 = sshllo.u32 0, 1
        loop: start=0, step=1, limit=1
        $region81: #{_lambda_.3} parent=79 // loop_pre_header
          _
        $region82: #{_lambda_.3} parent=79 // loop_header
          %s168 = sphi 0, %s172
          %p169 = scmp.ge.s32.totalorder %s168, 1
          %s173 = sphi %s155, %s155
          %s174 = sphi %s156, %s156
        $region83: #{_lambda_.3} parent=79 // loop_header_branch
          %171 = sbr.rel (%p169) target = $region87
        $region84: #{_lambda_.3} parent=79 // loop_body
          %v175 = vld [vmem:[%s173] sm:%s166]
          %176 = vst [vmem:[%s174] sm:%s166] %v175
        $region85: #{_lambda_.3} parent=79 // loop_footer
          %s172 = sadd.s32 1, %s168
        $region86: #{_lambda_.3} parent=79 // loop_footer_branch
          %167 = sbr.rel target = $region82
        $region87: #{_lambda_.3} parent=79 // loop_exit
          _
      $region80: #{_lambda_.3} parent=11 // pred_fallthru
        _
      // Predicated region
      $region99: #{_lambda_.3} parent=11 // pred_check
        _
      $region100: #{_lambda_.3} parent=11 // pred_check_branch
        %200 = sbr.rel (0) target = $region102
      $region101: #{_lambda_.3} parent=11 // pred_region
        %201 = vsyncadd %s157, 16
      $region102: #{_lambda_.3} parent=11 // pred_fallthru
        _
      %s202 = sadd.s32 %s57, 3
      %s203 = sld [smem:[#allocation5 + %s202]]
      %s204 = scalar_lea.vmem %s1, %s203
      %s205 = scalar_lea.vmem [#allocation2], 3
      %s206 = scalar_lea.sflag [#allocation3], 3
      %p208 = scmp.lt.u32.totalorder 1, 8
      %p209 = pneg %p208
      // Predicated region
      $region103: #{_lambda_.3} parent=11 // pred_check
        _
      $region104: #{_lambda_.3} parent=11 // pred_check_branch
        %211 = sbr.rel (%p208) target = $region106
      $region105: #{_lambda_.3} parent=11 // pred_region
        %s226 = sand.u32 1, 7
        %p227 = scmp.eq.s32.totalorder %s226, 0
        %p228 = pneg %p227
        // Predicated region
        $region118: #{_lambda_.3} parent=105 // pred_check
          _
        $region119: #{_lambda_.3} parent=105 // pred_check_branch
          %230 = sbr.rel (%p227) target = $region121
        $region120: #{_lambda_.3} parent=105 // pred_region
          %s231 = sand.u32 1, 7
          %s232 = ssub.s32 1, %s231
          %s233 = scalar_lea.vmem %s204, %s232
          %s234 = ssub.s32 1, %s231
          %s235 = scalar_lea.vmem %s205, %s234 [#allocation2]
          %s236 = sshllo.u32 0, %s231
          loop: start=0, step=1, limit=1
          $region122: #{_lambda_.3} parent=120 // loop_pre_header
            _
          $region123: #{_lambda_.3} parent=120 // loop_header
            %s238 = sphi 0, %s242
            %p239 = scmp.ge.s32.totalorder %s238, 1
            %s243 = sphi %s233, %s233
            %s244 = sphi %s235, %s235
          $region124: #{_lambda_.3} parent=120 // loop_header_branch
            %241 = sbr.rel (%p239) target = $region128
          $region125: #{_lambda_.3} parent=120 // loop_body
            %v245 = vld [vmem:[%s243] sm:%s236]
            %246 = vst [vmem:[%s244] sm:%s236] %v245
          $region126: #{_lambda_.3} parent=120 // loop_footer
            %s242 = sadd.s32 1, %s238
          $region127: #{_lambda_.3} parent=120 // loop_footer_branch
            %237 = sbr.rel target = $region123
          $region128: #{_lambda_.3} parent=120 // loop_exit
            _
        $region121: #{_lambda_.3} parent=105 // pred_fallthru
          _
      $region106: #{_lambda_.3} parent=11 // pred_fallthru
        _
      // Predicated region
      $region107: #{_lambda_.3} parent=11 // pred_check
        %p212 = pneg %p208
      $region108: #{_lambda_.3} parent=11 // pred_check_branch
        %214 = sbr.rel (%p212) target = $region110
      $region109: #{_lambda_.3} parent=11 // pred_region
        %s215 = sshllo.u32 0, 1
        loop: start=0, step=1, limit=1
        $region111: #{_lambda_.3} parent=109 // loop_pre_header
          _
        $region112: #{_lambda_.3} parent=109 // loop_header
          %s217 = sphi 0, %s221
          %p218 = scmp.ge.s32.totalorder %s217, 1
          %s222 = sphi %s204, %s204
          %s223 = sphi %s205, %s205
        $region113: #{_lambda_.3} parent=109 // loop_header_branch
          %220 = sbr.rel (%p218) target = $region117
        $region114: #{_lambda_.3} parent=109 // loop_body
          %v224 = vld [vmem:[%s222] sm:%s215]
          %225 = vst [vmem:[%s223] sm:%s215] %v224
        $region115: #{_lambda_.3} parent=109 // loop_footer
          %s221 = sadd.s32 1, %s217
        $region116: #{_lambda_.3} parent=109 // loop_footer_branch
          %216 = sbr.rel target = $region112
        $region117: #{_lambda_.3} parent=109 // loop_exit
          _
      $region110: #{_lambda_.3} parent=11 // pred_fallthru
        _
      // Predicated region
      $region129: #{_lambda_.3} parent=11 // pred_check
        _
      $region130: #{_lambda_.3} parent=11 // pred_check_branch
        %249 = sbr.rel (0) target = $region132
      $region131: #{_lambda_.3} parent=11 // pred_region
        %250 = vsyncadd %s206, 16
      $region132: #{_lambda_.3} parent=11 // pred_fallthru
        _
      %s251 = sadd.s32 %s57, 4
      %s252 = sld [smem:[#allocation5 + %s251]]
      %s253 = scalar_lea.vmem %s1, %s252
      %s254 = scalar_lea.vmem [#allocation2], 4
      %s255 = scalar_lea.sflag [#allocation3], 4
      %p257 = scmp.lt.u32.totalorder 1, 8
      %p258 = pneg %p257
      // Predicated region
      $region133: #{_lambda_.3} parent=11 // pred_check
        _
      $region134: #{_lambda_.3} parent=11 // pred_check_branch
        %260 = sbr.rel (%p257) target = $region136
      $region135: #{_lambda_.3} parent=11 // pred_region
        %s275 = sand.u32 1, 7
        %p276 = scmp.eq.s32.totalorder %s275, 0
        %p277 = pneg %p276
        // Predicated region
        $region148: #{_lambda_.3} parent=135 // pred_check
          _
        $region149: #{_lambda_.3} parent=135 // pred_check_branch
          %279 = sbr.rel (%p276) target = $region151
        $region150: #{_lambda_.3} parent=135 // pred_region
          %s280 = sand.u32 1, 7
          %s281 = ssub.s32 1, %s280
          %s282 = scalar_lea.vmem %s253, %s281
          %s283 = ssub.s32 1, %s280
          %s284 = scalar_lea.vmem %s254, %s283 [#allocation2]
          %s285 = sshllo.u32 0, %s280
          loop: start=0, step=1, limit=1
          $region152: #{_lambda_.3} parent=150 // loop_pre_header
            _
          $region153: #{_lambda_.3} parent=150 // loop_header
            %s287 = sphi 0, %s291
            %p288 = scmp.ge.s32.totalorder %s287, 1
            %s292 = sphi %s282, %s282
            %s293 = sphi %s284, %s284
          $region154: #{_lambda_.3} parent=150 // loop_header_branch
            %290 = sbr.rel (%p288) target = $region158
          $region155: #{_lambda_.3} parent=150 // loop_body
            %v294 = vld [vmem:[%s292] sm:%s285]
            %295 = vst [vmem:[%s293] sm:%s285] %v294
          $region156: #{_lambda_.3} parent=150 // loop_footer
            %s291 = sadd.s32 1, %s287
          $region157: #{_lambda_.3} parent=150 // loop_footer_branch
            %286 = sbr.rel target = $region153
          $region158: #{_lambda_.3} parent=150 // loop_exit
            _
        $region151: #{_lambda_.3} parent=135 // pred_fallthru
          _
      $region136: #{_lambda_.3} parent=11 // pred_fallthru
        _
      // Predicated region
      $region137: #{_lambda_.3} parent=11 // pred_check
        %p261 = pneg %p257
      $region138: #{_lambda_.3} parent=11 // pred_check_branch
        %263 = sbr.rel (%p261) target = $region140
      $region139: #{_lambda_.3} parent=11 // pred_region
        %s264 = sshllo.u32 0, 1
        loop: start=0, step=1, limit=1
        $region141: #{_lambda_.3} parent=139 // loop_pre_header
          _
        $region142: #{_lambda_.3} parent=139 // loop_header
          %s266 = sphi 0, %s270
          %p267 = scmp.ge.s32.totalorder %s266, 1
          %s271 = sphi %s253, %s253
          %s272 = sphi %s254, %s254
        $region143: #{_lambda_.3} parent=139 // loop_header_branch
          %269 = sbr.rel (%p267) target = $region147
        $region144: #{_lambda_.3} parent=139 // loop_body
          %v273 = vld [vmem:[%s271] sm:%s264]
          %274 = vst [vmem:[%s272] sm:%s264] %v273
        $region145: #{_lambda_.3} parent=139 // loop_footer
          %s270 = sadd.s32 1, %s266
        $region146: #{_lambda_.3} parent=139 // loop_footer_branch
          %265 = sbr.rel target = $region142
        $region147: #{_lambda_.3} parent=139 // loop_exit
          _
      $region140: #{_lambda_.3} parent=11 // pred_fallthru
        _
      // Predicated region
      $region159: #{_lambda_.3} parent=11 // pred_check
        _
      $region160: #{_lambda_.3} parent=11 // pred_check_branch
        %298 = sbr.rel (0) target = $region162
      $region161: #{_lambda_.3} parent=11 // pred_region
        %299 = vsyncadd %s255, 16
      $region162: #{_lambda_.3} parent=11 // pred_fallthru
        _
      %s300 = sadd.s32 %s57, 5
      %s301 = sld [smem:[#allocation5 + %s300]]
      %s302 = scalar_lea.vmem %s1, %s301
      %s303 = scalar_lea.vmem [#allocation2], 5
      %s304 = scalar_lea.sflag [#allocation3], 5
      %p306 = scmp.lt.u32.totalorder 1, 8
      %p307 = pneg %p306
      // Predicated region
      $region163: #{_lambda_.3} parent=11 // pred_check
        _
      $region164: #{_lambda_.3} parent=11 // pred_check_branch
        %309 = sbr.rel (%p306) target = $region166
      $region165: #{_lambda_.3} parent=11 // pred_region
        %s324 = sand.u32 1, 7
        %p325 = scmp.eq.s32.totalorder %s324, 0
        %p326 = pneg %p325
        // Predicated region
        $region178: #{_lambda_.3} parent=165 // pred_check
          _
        $region179: #{_lambda_.3} parent=165 // pred_check_branch
          %328 = sbr.rel (%p325) target = $region181
        $region180: #{_lambda_.3} parent=165 // pred_region
          %s329 = sand.u32 1, 7
          %s330 = ssub.s32 1, %s329
          %s331 = scalar_lea.vmem %s302, %s330
          %s332 = ssub.s32 1, %s329
          %s333 = scalar_lea.vmem %s303, %s332 [#allocation2]
          %s334 = sshllo.u32 0, %s329
          loop: start=0, step=1, limit=1
          $region182: #{_lambda_.3} parent=180 // loop_pre_header
            _
          $region183: #{_lambda_.3} parent=180 // loop_header
            %s336 = sphi 0, %s340
            %p337 = scmp.ge.s32.totalorder %s336, 1
            %s341 = sphi %s331, %s331
            %s342 = sphi %s333, %s333
          $region184: #{_lambda_.3} parent=180 // loop_header_branch
            %339 = sbr.rel (%p337) target = $region188
          $region185: #{_lambda_.3} parent=180 // loop_body
            %v343 = vld [vmem:[%s341] sm:%s334]
            %344 = vst [vmem:[%s342] sm:%s334] %v343
          $region186: #{_lambda_.3} parent=180 // loop_footer
            %s340 = sadd.s32 1, %s336
          $region187: #{_lambda_.3} parent=180 // loop_footer_branch
            %335 = sbr.rel target = $region183
          $region188: #{_lambda_.3} parent=180 // loop_exit
            _
        $region181: #{_lambda_.3} parent=165 // pred_fallthru
          _
      $region166: #{_lambda_.3} parent=11 // pred_fallthru
        _
      // Predicated region
      $region167: #{_lambda_.3} parent=11 // pred_check
        %p310 = pneg %p306
      $region168: #{_lambda_.3} parent=11 // pred_check_branch
        %312 = sbr.rel (%p310) target = $region170
      $region169: #{_lambda_.3} parent=11 // pred_region
        %s313 = sshllo.u32 0, 1
        loop: start=0, step=1, limit=1
        $region171: #{_lambda_.3} parent=169 // loop_pre_header
          _
        $region172: #{_lambda_.3} parent=169 // loop_header
          %s315 = sphi 0, %s319
          %p316 = scmp.ge.s32.totalorder %s315, 1
          %s320 = sphi %s302, %s302
          %s321 = sphi %s303, %s303
        $region173: #{_lambda_.3} parent=169 // loop_header_branch
          %318 = sbr.rel (%p316) target = $region177
        $region174: #{_lambda_.3} parent=169 // loop_body
          %v322 = vld [vmem:[%s320] sm:%s313]
          %323 = vst [vmem:[%s321] sm:%s313] %v322
        $region175: #{_lambda_.3} parent=169 // loop_footer
          %s319 = sadd.s32 1, %s315
        $region176: #{_lambda_.3} parent=169 // loop_footer_branch
          %314 = sbr.rel target = $region172
        $region177: #{_lambda_.3} parent=169 // loop_exit
          _
      $region170: #{_lambda_.3} parent=11 // pred_fallthru
        _
      // Predicated region
      $region189: #{_lambda_.3} parent=11 // pred_check
        _
      $region190: #{_lambda_.3} parent=11 // pred_check_branch
        %347 = sbr.rel (0) target = $region192
      $region191: #{_lambda_.3} parent=11 // pred_region
        %348 = vsyncadd %s304, 16
      $region192: #{_lambda_.3} parent=11 // pred_fallthru
        _
      %s349 = sadd.s32 %s57, 6
      %s350 = sld [smem:[#allocation5 + %s349]]
      %s351 = scalar_lea.vmem %s1, %s350
      %s352 = scalar_lea.vmem [#allocation2], 6
      %s353 = scalar_lea.sflag [#allocation3], 6
      %p355 = scmp.lt.u32.totalorder 1, 8
      %p356 = pneg %p355
      // Predicated region
      $region193: #{_lambda_.3} parent=11 // pred_check
        _
      $region194: #{_lambda_.3} parent=11 // pred_check_branch
        %358 = sbr.rel (%p355) target = $region196
      $region195: #{_lambda_.3} parent=11 // pred_region
        %s373 = sand.u32 1, 7
        %p374 = scmp.eq.s32.totalorder %s373, 0
        %p375 = pneg %p374
        // Predicated region
        $region208: #{_lambda_.3} parent=195 // pred_check
          _
        $region209: #{_lambda_.3} parent=195 // pred_check_branch
          %377 = sbr.rel (%p374) target = $region211
        $region210: #{_lambda_.3} parent=195 // pred_region
          %s378 = sand.u32 1, 7
          %s379 = ssub.s32 1, %s378
          %s380 = scalar_lea.vmem %s351, %s379
          %s381 = ssub.s32 1, %s378
          %s382 = scalar_lea.vmem %s352, %s381 [#allocation2]
          %s383 = sshllo.u32 0, %s378
          loop: start=0, step=1, limit=1
          $region212: #{_lambda_.3} parent=210 // loop_pre_header
            _
          $region213: #{_lambda_.3} parent=210 // loop_header
            %s385 = sphi 0, %s389
            %p386 = scmp.ge.s32.totalorder %s385, 1
            %s390 = sphi %s380, %s380
            %s391 = sphi %s382, %s382
          $region214: #{_lambda_.3} parent=210 // loop_header_branch
            %388 = sbr.rel (%p386) target = $region218
          $region215: #{_lambda_.3} parent=210 // loop_body
            %v392 = vld [vmem:[%s390] sm:%s383]
            %393 = vst [vmem:[%s391] sm:%s383] %v392
          $region216: #{_lambda_.3} parent=210 // loop_footer
            %s389 = sadd.s32 1, %s385
          $region217: #{_lambda_.3} parent=210 // loop_footer_branch
            %384 = sbr.rel target = $region213
          $region218: #{_lambda_.3} parent=210 // loop_exit
            _
        $region211: #{_lambda_.3} parent=195 // pred_fallthru
          _
      $region196: #{_lambda_.3} parent=11 // pred_fallthru
        _
      // Predicated region
      $region197: #{_lambda_.3} parent=11 // pred_check
        %p359 = pneg %p355
      $region198: #{_lambda_.3} parent=11 // pred_check_branch
        %361 = sbr.rel (%p359) target = $region200
      $region199: #{_lambda_.3} parent=11 // pred_region
        %s362 = sshllo.u32 0, 1
        loop: start=0, step=1, limit=1
        $region201: #{_lambda_.3} parent=199 // loop_pre_header
          _
        $region202: #{_lambda_.3} parent=199 // loop_header
          %s364 = sphi 0, %s368
          %p365 = scmp.ge.s32.totalorder %s364, 1
          %s369 = sphi %s351, %s351
          %s370 = sphi %s352, %s352
        $region203: #{_lambda_.3} parent=199 // loop_header_branch
          %367 = sbr.rel (%p365) target = $region207
        $region204: #{_lambda_.3} parent=199 // loop_body
          %v371 = vld [vmem:[%s369] sm:%s362]
          %372 = vst [vmem:[%s370] sm:%s362] %v371
        $region205: #{_lambda_.3} parent=199 // loop_footer
          %s368 = sadd.s32 1, %s364
        $region206: #{_lambda_.3} parent=199 // loop_footer_branch
          %363 = sbr.rel target = $region202
        $region207: #{_lambda_.3} parent=199 // loop_exit
          _
      $region200: #{_lambda_.3} parent=11 // pred_fallthru
        _
      // Predicated region
      $region219: #{_lambda_.3} parent=11 // pred_check
        _
      $region220: #{_lambda_.3} parent=11 // pred_check_branch
        %396 = sbr.rel (0) target = $region222
      $region221: #{_lambda_.3} parent=11 // pred_region
        %397 = vsyncadd %s353, 16
      $region222: #{_lambda_.3} parent=11 // pred_fallthru
        _
      %s398 = sadd.s32 %s57, 7
      %s399 = sld [smem:[#allocation5 + %s398]]
      %s400 = scalar_lea.vmem %s1, %s399
      %s401 = scalar_lea.vmem [#allocation2], 7
      %s402 = scalar_lea.sflag [#allocation3], 7
      %p404 = scmp.lt.u32.totalorder 1, 8
      %p405 = pneg %p404
      // Predicated region
      $region223: #{_lambda_.3} parent=11 // pred_check
        _
      $region224: #{_lambda_.3} parent=11 // pred_check_branch
        %407 = sbr.rel (%p404) target = $region226
      $region225: #{_lambda_.3} parent=11 // pred_region
        %s422 = sand.u32 1, 7
        %p423 = scmp.eq.s32.totalorder %s422, 0
        %p424 = pneg %p423
        // Predicated region
        $region238: #{_lambda_.3} parent=225 // pred_check
          _
        $region239: #{_lambda_.3} parent=225 // pred_check_branch
          %426 = sbr.rel (%p423) target = $region241
        $region240: #{_lambda_.3} parent=225 // pred_region
          %s427 = sand.u32 1, 7
          %s428 = ssub.s32 1, %s427
          %s429 = scalar_lea.vmem %s400, %s428
          %s430 = ssub.s32 1, %s427
          %s431 = scalar_lea.vmem %s401, %s430 [#allocation2]
          %s432 = sshllo.u32 0, %s427
          loop: start=0, step=1, limit=1
          $region242: #{_lambda_.3} parent=240 // loop_pre_header
            _
          $region243: #{_lambda_.3} parent=240 // loop_header
            %s434 = sphi 0, %s438
            %p435 = scmp.ge.s32.totalorder %s434, 1
            %s439 = sphi %s429, %s429
            %s440 = sphi %s431, %s431
          $region244: #{_lambda_.3} parent=240 // loop_header_branch
            %437 = sbr.rel (%p435) target = $region248
          $region245: #{_lambda_.3} parent=240 // loop_body
            %v441 = vld [vmem:[%s439] sm:%s432]
            %442 = vst [vmem:[%s440] sm:%s432] %v441
          $region246: #{_lambda_.3} parent=240 // loop_footer
            %s438 = sadd.s32 1, %s434
          $region247: #{_lambda_.3} parent=240 // loop_footer_branch
            %433 = sbr.rel target = $region243
          $region248: #{_lambda_.3} parent=240 // loop_exit
            _
        $region241: #{_lambda_.3} parent=225 // pred_fallthru
          _
      $region226: #{_lambda_.3} parent=11 // pred_fallthru
        _
      // Predicated region
      $region227: #{_lambda_.3} parent=11 // pred_check
        %p408 = pneg %p404
      $region228: #{_lambda_.3} parent=11 // pred_check_branch
        %410 = sbr.rel (%p408) target = $region230
      $region229: #{_lambda_.3} parent=11 // pred_region
        %s411 = sshllo.u32 0, 1
        loop: start=0, step=1, limit=1
        $region231: #{_lambda_.3} parent=229 // loop_pre_header
          _
        $region232: #{_lambda_.3} parent=229 // loop_header
          %s413 = sphi 0, %s417
          %p414 = scmp.ge.s32.totalorder %s413, 1
          %s418 = sphi %s400, %s400
          %s419 = sphi %s401, %s401
        $region233: #{_lambda_.3} parent=229 // loop_header_branch
          %416 = sbr.rel (%p414) target = $region237
        $region234: #{_lambda_.3} parent=229 // loop_body
          %v420 = vld [vmem:[%s418] sm:%s411]
          %421 = vst [vmem:[%s419] sm:%s411] %v420
        $region235: #{_lambda_.3} parent=229 // loop_footer
          %s417 = sadd.s32 1, %s413
        $region236: #{_lambda_.3} parent=229 // loop_footer_branch
          %412 = sbr.rel target = $region232
        $region237: #{_lambda_.3} parent=229 // loop_exit
          _
      $region230: #{_lambda_.3} parent=11 // pred_fallthru
        _
      // Predicated region
      $region249: #{_lambda_.3} parent=11 // pred_check
        _
      $region250: #{_lambda_.3} parent=11 // pred_check_branch
        %445 = sbr.rel (0) target = $region252
      $region251: #{_lambda_.3} parent=11 // pred_region
        %446 = vsyncadd %s402, 16
      $region252: #{_lambda_.3} parent=11 // pred_fallthru
        _
      %s447 = sadd.s32 %s57, 8
      %s448 = sld [smem:[#allocation5 + %s447]]
      %s449 = scalar_lea.vmem %s1, %s448
      %s450 = scalar_lea.vmem [#allocation2], 8
      %s451 = scalar_lea.sflag [#allocation3], 8
      %p453 = scmp.lt.u32.totalorder 1, 8
      %p454 = pneg %p453
      // Predicated region
      $region253: #{_lambda_.3} parent=11 // pred_check
        _
      $region254: #{_lambda_.3} parent=11 // pred_check_branch
        %456 = sbr.rel (%p453) target = $region256
      $region255: #{_lambda_.3} parent=11 // pred_region
        %s471 = sand.u32 1, 7
        %p472 = scmp.eq.s32.totalorder %s471, 0
        %p473 = pneg %p472
        // Predicated region
        $region268: #{_lambda_.3} parent=255 // pred_check
          _
        $region269: #{_lambda_.3} parent=255 // pred_check_branch
          %475 = sbr.rel (%p472) target = $region271
        $region270: #{_lambda_.3} parent=255 // pred_region
          %s476 = sand.u32 1, 7
          %s477 = ssub.s32 1, %s476
          %s478 = scalar_lea.vmem %s449, %s477
          %s479 = ssub.s32 1, %s476
          %s480 = scalar_lea.vmem %s450, %s479 [#allocation2]
          %s481 = sshllo.u32 0, %s476
          loop: start=0, step=1, limit=1
          $region272: #{_lambda_.3} parent=270 // loop_pre_header
            _
          $region273: #{_lambda_.3} parent=270 // loop_header
            %s483 = sphi 0, %s487
            %p484 = scmp.ge.s32.totalorder %s483, 1
            %s488 = sphi %s478, %s478
            %s489 = sphi %s480, %s480
          $region274: #{_lambda_.3} parent=270 // loop_header_branch
            %486 = sbr.rel (%p484) target = $region278
          $region275: #{_lambda_.3} parent=270 // loop_body
            %v490 = vld [vmem:[%s488] sm:%s481]
            %491 = vst [vmem:[%s489] sm:%s481] %v490
          $region276: #{_lambda_.3} parent=270 // loop_footer
            %s487 = sadd.s32 1, %s483
          $region277: #{_lambda_.3} parent=270 // loop_footer_branch
            %482 = sbr.rel target = $region273
          $region278: #{_lambda_.3} parent=270 // loop_exit
            _
        $region271: #{_lambda_.3} parent=255 // pred_fallthru
          _
      $region256: #{_lambda_.3} parent=11 // pred_fallthru
        _
      // Predicated region
      $region257: #{_lambda_.3} parent=11 // pred_check
        %p457 = pneg %p453
      $region258: #{_lambda_.3} parent=11 // pred_check_branch
        %459 = sbr.rel (%p457) target = $region260
      $region259: #{_lambda_.3} parent=11 // pred_region
        %s460 = sshllo.u32 0, 1
        loop: start=0, step=1, limit=1
        $region261: #{_lambda_.3} parent=259 // loop_pre_header
          _
        $region262: #{_lambda_.3} parent=259 // loop_header
          %s462 = sphi 0, %s466
          %p463 = scmp.ge.s32.totalorder %s462, 1
          %s467 = sphi %s449, %s449
          %s468 = sphi %s450, %s450
        $region263: #{_lambda_.3} parent=259 // loop_header_branch
          %465 = sbr.rel (%p463) target = $region267
        $region264: #{_lambda_.3} parent=259 // loop_body
          %v469 = vld [vmem:[%s467] sm:%s460]
          %470 = vst [vmem:[%s468] sm:%s460] %v469
        $region265: #{_lambda_.3} parent=259 // loop_footer
          %s466 = sadd.s32 1, %s462
        $region266: #{_lambda_.3} parent=259 // loop_footer_branch
          %461 = sbr.rel target = $region262
        $region267: #{_lambda_.3} parent=259 // loop_exit
          _
      $region260: #{_lambda_.3} parent=11 // pred_fallthru
        _
      // Predicated region
      $region279: #{_lambda_.3} parent=11 // pred_check
        _
      $region280: #{_lambda_.3} parent=11 // pred_check_branch
        %494 = sbr.rel (0) target = $region282
      $region281: #{_lambda_.3} parent=11 // pred_region
        %495 = vsyncadd %s451, 16
      $region282: #{_lambda_.3} parent=11 // pred_fallthru
        _
      %s496 = sadd.s32 %s57, 9
      %s497 = sld [smem:[#allocation5 + %s496]]
      %s498 = scalar_lea.vmem %s1, %s497
      %s499 = scalar_lea.vmem [#allocation2], 9
      %s500 = scalar_lea.sflag [#allocation3], 9
      %p502 = scmp.lt.u32.totalorder 1, 8
      %p503 = pneg %p502
      // Predicated region
      $region283: #{_lambda_.3} parent=11 // pred_check
        _
      $region284: #{_lambda_.3} parent=11 // pred_check_branch
        %505 = sbr.rel (%p502) target = $region286
      $region285: #{_lambda_.3} parent=11 // pred_region
        %s520 = sand.u32 1, 7
        %p521 = scmp.eq.s32.totalorder %s520, 0
        %p522 = pneg %p521
        // Predicated region
        $region298: #{_lambda_.3} parent=285 // pred_check
          _
        $region299: #{_lambda_.3} parent=285 // pred_check_branch
          %524 = sbr.rel (%p521) target = $region301
        $region300: #{_lambda_.3} parent=285 // pred_region
          %s525 = sand.u32 1, 7
          %s526 = ssub.s32 1, %s525
          %s527 = scalar_lea.vmem %s498, %s526
          %s528 = ssub.s32 1, %s525
          %s529 = scalar_lea.vmem %s499, %s528 [#allocation2]
          %s530 = sshllo.u32 0, %s525
          loop: start=0, step=1, limit=1
          $region302: #{_lambda_.3} parent=300 // loop_pre_header
            _
          $region303: #{_lambda_.3} parent=300 // loop_header
            %s532 = sphi 0, %s536
            %p533 = scmp.ge.s32.totalorder %s532, 1
            %s537 = sphi %s527, %s527
            %s538 = sphi %s529, %s529
          $region304: #{_lambda_.3} parent=300 // loop_header_branch
            %535 = sbr.rel (%p533) target = $region308
          $region305: #{_lambda_.3} parent=300 // loop_body
            %v539 = vld [vmem:[%s537] sm:%s530]
            %540 = vst [vmem:[%s538] sm:%s530] %v539
          $region306: #{_lambda_.3} parent=300 // loop_footer
            %s536 = sadd.s32 1, %s532
          $region307: #{_lambda_.3} parent=300 // loop_footer_branch
            %531 = sbr.rel target = $region303
          $region308: #{_lambda_.3} parent=300 // loop_exit
            _
        $region301: #{_lambda_.3} parent=285 // pred_fallthru
          _
      $region286: #{_lambda_.3} parent=11 // pred_fallthru
        _
      // Predicated region
      $region287: #{_lambda_.3} parent=11 // pred_check
        %p506 = pneg %p502
      $region288: #{_lambda_.3} parent=11 // pred_check_branch
        %508 = sbr.rel (%p506) target = $region290
      $region289: #{_lambda_.3} parent=11 // pred_region
        %s509 = sshllo.u32 0, 1
        loop: start=0, step=1, limit=1
        $region291: #{_lambda_.3} parent=289 // loop_pre_header
          _
        $region292: #{_lambda_.3} parent=289 // loop_header
          %s511 = sphi 0, %s515
          %p512 = scmp.ge.s32.totalorder %s511, 1
          %s516 = sphi %s498, %s498
          %s517 = sphi %s499, %s499
        $region293: #{_lambda_.3} parent=289 // loop_header_branch
          %514 = sbr.rel (%p512) target = $region297
        $region294: #{_lambda_.3} parent=289 // loop_body
          %v518 = vld [vmem:[%s516] sm:%s509]
          %519 = vst [vmem:[%s517] sm:%s509] %v518
        $region295: #{_lambda_.3} parent=289 // loop_footer
          %s515 = sadd.s32 1, %s511
        $region296: #{_lambda_.3} parent=289 // loop_footer_branch
          %510 = sbr.rel target = $region292
        $region297: #{_lambda_.3} parent=289 // loop_exit
          _
      $region290: #{_lambda_.3} parent=11 // pred_fallthru
        _
      // Predicated region
      $region309: #{_lambda_.3} parent=11 // pred_check
        _
      $region310: #{_lambda_.3} parent=11 // pred_check_branch
        %543 = sbr.rel (0) target = $region312
      $region311: #{_lambda_.3} parent=11 // pred_region
        %544 = vsyncadd %s500, 16
      $region312: #{_lambda_.3} parent=11 // pred_fallthru
        _
      %s545 = sadd.s32 %s57, 10
      %s546 = sld [smem:[#allocation5 + %s545]]
      %s547 = scalar_lea.vmem %s1, %s546
      %s548 = scalar_lea.vmem [#allocation2], 10
      %s549 = scalar_lea.sflag [#allocation3], 10
      %p551 = scmp.lt.u32.totalorder 1, 8
      %p552 = pneg %p551
      // Predicated region
      $region313: #{_lambda_.3} parent=11 // pred_check
        _
      $region314: #{_lambda_.3} parent=11 // pred_check_branch
        %554 = sbr.rel (%p551) target = $region316
      $region315: #{_lambda_.3} parent=11 // pred_region
        %s569 = sand.u32 1, 7
        %p570 = scmp.eq.s32.totalorder %s569, 0
        %p571 = pneg %p570
        // Predicated region
        $region328: #{_lambda_.3} parent=315 // pred_check
          _
        $region329: #{_lambda_.3} parent=315 // pred_check_branch
          %573 = sbr.rel (%p570) target = $region331
        $region330: #{_lambda_.3} parent=315 // pred_region
          %s574 = sand.u32 1, 7
          %s575 = ssub.s32 1, %s574
          %s576 = scalar_lea.vmem %s547, %s575
          %s577 = ssub.s32 1, %s574
          %s578 = scalar_lea.vmem %s548, %s577 [#allocation2]
          %s579 = sshllo.u32 0, %s574
          loop: start=0, step=1, limit=1
          $region332: #{_lambda_.3} parent=330 // loop_pre_header
            _
          $region333: #{_lambda_.3} parent=330 // loop_header
            %s581 = sphi 0, %s585
            %p582 = scmp.ge.s32.totalorder %s581, 1
            %s586 = sphi %s576, %s576
            %s587 = sphi %s578, %s578
          $region334: #{_lambda_.3} parent=330 // loop_header_branch
            %584 = sbr.rel (%p582) target = $region338
          $region335: #{_lambda_.3} parent=330 // loop_body
            %v588 = vld [vmem:[%s586] sm:%s579]
            %589 = vst [vmem:[%s587] sm:%s579] %v588
          $region336: #{_lambda_.3} parent=330 // loop_footer
            %s585 = sadd.s32 1, %s581
          $region337: #{_lambda_.3} parent=330 // loop_footer_branch
            %580 = sbr.rel target = $region333
          $region338: #{_lambda_.3} parent=330 // loop_exit
            _
        $region331: #{_lambda_.3} parent=315 // pred_fallthru
          _
      $region316: #{_lambda_.3} parent=11 // pred_fallthru
        _
      // Predicated region
      $region317: #{_lambda_.3} parent=11 // pred_check
        %p555 = pneg %p551
      $region318: #{_lambda_.3} parent=11 // pred_check_branch
        %557 = sbr.rel (%p555) target = $region320
      $region319: #{_lambda_.3} parent=11 // pred_region
        %s558 = sshllo.u32 0, 1
        loop: start=0, step=1, limit=1
        $region321: #{_lambda_.3} parent=319 // loop_pre_header
          _
        $region322: #{_lambda_.3} parent=319 // loop_header
          %s560 = sphi 0, %s564
          %p561 = scmp.ge.s32.totalorder %s560, 1
          %s565 = sphi %s547, %s547
          %s566 = sphi %s548, %s548
        $region323: #{_lambda_.3} parent=319 // loop_header_branch
          %563 = sbr.rel (%p561) target = $region327
        $region324: #{_lambda_.3} parent=319 // loop_body
          %v567 = vld [vmem:[%s565] sm:%s558]
          %568 = vst [vmem:[%s566] sm:%s558] %v567
        $region325: #{_lambda_.3} parent=319 // loop_footer
          %s564 = sadd.s32 1, %s560
        $region326: #{_lambda_.3} parent=319 // loop_footer_branch
          %559 = sbr.rel target = $region322
        $region327: #{_lambda_.3} parent=319 // loop_exit
          _
      $region320: #{_lambda_.3} parent=11 // pred_fallthru
        _
      // Predicated region
      $region339: #{_lambda_.3} parent=11 // pred_check
        _
      $region340: #{_lambda_.3} parent=11 // pred_check_branch
        %592 = sbr.rel (0) target = $region342
      $region341: #{_lambda_.3} parent=11 // pred_region
        %593 = vsyncadd %s549, 16
      $region342: #{_lambda_.3} parent=11 // pred_fallthru
        _
      %s594 = sadd.s32 %s57, 11
      %s595 = sld [smem:[#allocation5 + %s594]]
      %s596 = scalar_lea.vmem %s1, %s595
      %s597 = scalar_lea.vmem [#allocation2], 11
      %s598 = scalar_lea.sflag [#allocation3], 11
      %p600 = scmp.lt.u32.totalorder 1, 8
      %p601 = pneg %p600
      // Predicated region
      $region343: #{_lambda_.3} parent=11 // pred_check
        _
      $region344: #{_lambda_.3} parent=11 // pred_check_branch
        %603 = sbr.rel (%p600) target = $region346
      $region345: #{_lambda_.3} parent=11 // pred_region
        %s618 = sand.u32 1, 7
        %p619 = scmp.eq.s32.totalorder %s618, 0
        %p620 = pneg %p619
        // Predicated region
        $region358: #{_lambda_.3} parent=345 // pred_check
          _
        $region359: #{_lambda_.3} parent=345 // pred_check_branch
          %622 = sbr.rel (%p619) target = $region361
        $region360: #{_lambda_.3} parent=345 // pred_region
          %s623 = sand.u32 1, 7
          %s624 = ssub.s32 1, %s623
          %s625 = scalar_lea.vmem %s596, %s624
          %s626 = ssub.s32 1, %s623
          %s627 = scalar_lea.vmem %s597, %s626 [#allocation2]
          %s628 = sshllo.u32 0, %s623
          loop: start=0, step=1, limit=1
          $region362: #{_lambda_.3} parent=360 // loop_pre_header
            _
          $region363: #{_lambda_.3} parent=360 // loop_header
            %s630 = sphi 0, %s634
            %p631 = scmp.ge.s32.totalorder %s630, 1
            %s635 = sphi %s625, %s625
            %s636 = sphi %s627, %s627
          $region364: #{_lambda_.3} parent=360 // loop_header_branch
            %633 = sbr.rel (%p631) target = $region368
          $region365: #{_lambda_.3} parent=360 // loop_body
            %v637 = vld [vmem:[%s635] sm:%s628]
            %638 = vst [vmem:[%s636] sm:%s628] %v637
          $region366: #{_lambda_.3} parent=360 // loop_footer
            %s634 = sadd.s32 1, %s630
          $region367: #{_lambda_.3} parent=360 // loop_footer_branch
            %629 = sbr.rel target = $region363
          $region368: #{_lambda_.3} parent=360 // loop_exit
            _
        $region361: #{_lambda_.3} parent=345 // pred_fallthru
          _
      $region346: #{_lambda_.3} parent=11 // pred_fallthru
        _
      // Predicated region
      $region347: #{_lambda_.3} parent=11 // pred_check
        %p604 = pneg %p600
      $region348: #{_lambda_.3} parent=11 // pred_check_branch
        %606 = sbr.rel (%p604) target = $region350
      $region349: #{_lambda_.3} parent=11 // pred_region
        %s607 = sshllo.u32 0, 1
        loop: start=0, step=1, limit=1
        $region351: #{_lambda_.3} parent=349 // loop_pre_header
          _
        $region352: #{_lambda_.3} parent=349 // loop_header
          %s609 = sphi 0, %s613
          %p610 = scmp.ge.s32.totalorder %s609, 1
          %s614 = sphi %s596, %s596
          %s615 = sphi %s597, %s597
        $region353: #{_lambda_.3} parent=349 // loop_header_branch
          %612 = sbr.rel (%p610) target = $region357
        $region354: #{_lambda_.3} parent=349 // loop_body
          %v616 = vld [vmem:[%s614] sm:%s607]
          %617 = vst [vmem:[%s615] sm:%s607] %v616
        $region355: #{_lambda_.3} parent=349 // loop_footer
          %s613 = sadd.s32 1, %s609
        $region356: #{_lambda_.3} parent=349 // loop_footer_branch
          %608 = sbr.rel target = $region352
        $region357: #{_lambda_.3} parent=349 // loop_exit
          _
      $region350: #{_lambda_.3} parent=11 // pred_fallthru
        _
      // Predicated region
      $region369: #{_lambda_.3} parent=11 // pred_check
        _
      $region370: #{_lambda_.3} parent=11 // pred_check_branch
        %641 = sbr.rel (0) target = $region372
      $region371: #{_lambda_.3} parent=11 // pred_region
        %642 = vsyncadd %s598, 16
      $region372: #{_lambda_.3} parent=11 // pred_fallthru
        _
      %s643 = sadd.s32 %s57, 12
      %s644 = sld [smem:[#allocation5 + %s643]]
      %s645 = scalar_lea.vmem %s1, %s644
      %s646 = scalar_lea.vmem [#allocation2], 12
      %s647 = scalar_lea.sflag [#allocation3], 12
      %p649 = scmp.lt.u32.totalorder 1, 8
      %p650 = pneg %p649
      // Predicated region
      $region373: #{_lambda_.3} parent=11 // pred_check
        _
      $region374: #{_lambda_.3} parent=11 // pred_check_branch
        %652 = sbr.rel (%p649) target = $region376
      $region375: #{_lambda_.3} parent=11 // pred_region
        %s667 = sand.u32 1, 7
        %p668 = scmp.eq.s32.totalorder %s667, 0
        %p669 = pneg %p668
        // Predicated region
        $region388: #{_lambda_.3} parent=375 // pred_check
          _
        $region389: #{_lambda_.3} parent=375 // pred_check_branch
          %671 = sbr.rel (%p668) target = $region391
        $region390: #{_lambda_.3} parent=375 // pred_region
          %s672 = sand.u32 1, 7
          %s673 = ssub.s32 1, %s672
          %s674 = scalar_lea.vmem %s645, %s673
          %s675 = ssub.s32 1, %s672
          %s676 = scalar_lea.vmem %s646, %s675 [#allocation2]
          %s677 = sshllo.u32 0, %s672
          loop: start=0, step=1, limit=1
          $region392: #{_lambda_.3} parent=390 // loop_pre_header
            _
          $region393: #{_lambda_.3} parent=390 // loop_header
            %s679 = sphi 0, %s683
            %p680 = scmp.ge.s32.totalorder %s679, 1
            %s684 = sphi %s674, %s674
            %s685 = sphi %s676, %s676
          $region394: #{_lambda_.3} parent=390 // loop_header_branch
            %682 = sbr.rel (%p680) target = $region398
          $region395: #{_lambda_.3} parent=390 // loop_body
            %v686 = vld [vmem:[%s684] sm:%s677]
            %687 = vst [vmem:[%s685] sm:%s677] %v686
          $region396: #{_lambda_.3} parent=390 // loop_footer
            %s683 = sadd.s32 1, %s679
          $region397: #{_lambda_.3} parent=390 // loop_footer_branch
            %678 = sbr.rel target = $region393
          $region398: #{_lambda_.3} parent=390 // loop_exit
            _
        $region391: #{_lambda_.3} parent=375 // pred_fallthru
          _
      $region376: #{_lambda_.3} parent=11 // pred_fallthru
        _
      // Predicated region
      $region377: #{_lambda_.3} parent=11 // pred_check
        %p653 = pneg %p649
      $region378: #{_lambda_.3} parent=11 // pred_check_branch
        %655 = sbr.rel (%p653) target = $region380
      $region379: #{_lambda_.3} parent=11 // pred_region
        %s656 = sshllo.u32 0, 1
        loop: start=0, step=1, limit=1
        $region381: #{_lambda_.3} parent=379 // loop_pre_header
          _
        $region382: #{_lambda_.3} parent=379 // loop_header
          %s658 = sphi 0, %s662
          %p659 = scmp.ge.s32.totalorder %s658, 1
          %s663 = sphi %s645, %s645
          %s664 = sphi %s646, %s646
        $region383: #{_lambda_.3} parent=379 // loop_header_branch
          %661 = sbr.rel (%p659) target = $region387
        $region384: #{_lambda_.3} parent=379 // loop_body
          %v665 = vld [vmem:[%s663] sm:%s656]
          %666 = vst [vmem:[%s664] sm:%s656] %v665
        $region385: #{_lambda_.3} parent=379 // loop_footer
          %s662 = sadd.s32 1, %s658
        $region386: #{_lambda_.3} parent=379 // loop_footer_branch
          %657 = sbr.rel target = $region382
        $region387: #{_lambda_.3} parent=379 // loop_exit
          _
      $region380: #{_lambda_.3} parent=11 // pred_fallthru
        _
      // Predicated region
      $region399: #{_lambda_.3} parent=11 // pred_check
        _
      $region400: #{_lambda_.3} parent=11 // pred_check_branch
        %690 = sbr.rel (0) target = $region402
      $region401: #{_lambda_.3} parent=11 // pred_region
        %691 = vsyncadd %s647, 16
      $region402: #{_lambda_.3} parent=11 // pred_fallthru
        _
      %s692 = sadd.s32 %s57, 13
      %s693 = sld [smem:[#allocation5 + %s692]]
      %s694 = scalar_lea.vmem %s1, %s693
      %s695 = scalar_lea.vmem [#allocation2], 13
      %s696 = scalar_lea.sflag [#allocation3], 13
      %p698 = scmp.lt.u32.totalorder 1, 8
      %p699 = pneg %p698
      // Predicated region
      $region403: #{_lambda_.3} parent=11 // pred_check
        _
      $region404: #{_lambda_.3} parent=11 // pred_check_branch
        %701 = sbr.rel (%p698) target = $region406
      $region405: #{_lambda_.3} parent=11 // pred_region
        %s716 = sand.u32 1, 7
        %p717 = scmp.eq.s32.totalorder %s716, 0
        %p718 = pneg %p717
        // Predicated region
        $region418: #{_lambda_.3} parent=405 // pred_check
          _
        $region419: #{_lambda_.3} parent=405 // pred_check_branch
          %720 = sbr.rel (%p717) target = $region421
        $region420: #{_lambda_.3} parent=405 // pred_region
          %s721 = sand.u32 1, 7
          %s722 = ssub.s32 1, %s721
          %s723 = scalar_lea.vmem %s694, %s722
          %s724 = ssub.s32 1, %s721
          %s725 = scalar_lea.vmem %s695, %s724 [#allocation2]
          %s726 = sshllo.u32 0, %s721
          loop: start=0, step=1, limit=1
          $region422: #{_lambda_.3} parent=420 // loop_pre_header
            _
          $region423: #{_lambda_.3} parent=420 // loop_header
            %s728 = sphi 0, %s732
            %p729 = scmp.ge.s32.totalorder %s728, 1
            %s733 = sphi %s723, %s723
            %s734 = sphi %s725, %s725
          $region424: #{_lambda_.3} parent=420 // loop_header_branch
            %731 = sbr.rel (%p729) target = $region428
          $region425: #{_lambda_.3} parent=420 // loop_body
            %v735 = vld [vmem:[%s733] sm:%s726]
            %736 = vst [vmem:[%s734] sm:%s726] %v735
          $region426: #{_lambda_.3} parent=420 // loop_footer
            %s732 = sadd.s32 1, %s728
          $region427: #{_lambda_.3} parent=420 // loop_footer_branch
            %727 = sbr.rel target = $region423
          $region428: #{_lambda_.3} parent=420 // loop_exit
            _
        $region421: #{_lambda_.3} parent=405 // pred_fallthru
          _
      $region406: #{_lambda_.3} parent=11 // pred_fallthru
        _
      // Predicated region
      $region407: #{_lambda_.3} parent=11 // pred_check
        %p702 = pneg %p698
      $region408: #{_lambda_.3} parent=11 // pred_check_branch
        %704 = sbr.rel (%p702) target = $region410
      $region409: #{_lambda_.3} parent=11 // pred_region
        %s705 = sshllo.u32 0, 1
        loop: start=0, step=1, limit=1
        $region411: #{_lambda_.3} parent=409 // loop_pre_header
          _
        $region412: #{_lambda_.3} parent=409 // loop_header
          %s707 = sphi 0, %s711
          %p708 = scmp.ge.s32.totalorder %s707, 1
          %s712 = sphi %s694, %s694
          %s713 = sphi %s695, %s695
        $region413: #{_lambda_.3} parent=409 // loop_header_branch
          %710 = sbr.rel (%p708) target = $region417
        $region414: #{_lambda_.3} parent=409 // loop_body
          %v714 = vld [vmem:[%s712] sm:%s705]
          %715 = vst [vmem:[%s713] sm:%s705] %v714
        $region415: #{_lambda_.3} parent=409 // loop_footer
          %s711 = sadd.s32 1, %s707
        $region416: #{_lambda_.3} parent=409 // loop_footer_branch
          %706 = sbr.rel target = $region412
        $region417: #{_lambda_.3} parent=409 // loop_exit
          _
      $region410: #{_lambda_.3} parent=11 // pred_fallthru
        _
      // Predicated region
      $region429: #{_lambda_.3} parent=11 // pred_check
        _
      $region430: #{_lambda_.3} parent=11 // pred_check_branch
        %739 = sbr.rel (0) target = $region432
      $region431: #{_lambda_.3} parent=11 // pred_region
        %740 = vsyncadd %s696, 16
      $region432: #{_lambda_.3} parent=11 // pred_fallthru
        _
      %s741 = sadd.s32 %s57, 14
      %s742 = sld [smem:[#allocation5 + %s741]]
      %s743 = scalar_lea.vmem %s1, %s742
      %s744 = scalar_lea.vmem [#allocation2], 14
      %s745 = scalar_lea.sflag [#allocation3], 14
      %p747 = scmp.lt.u32.totalorder 1, 8
      %p748 = pneg %p747
      // Predicated region
      $region433: #{_lambda_.3} parent=11 // pred_check
        _
      $region434: #{_lambda_.3} parent=11 // pred_check_branch
        %750 = sbr.rel (%p747) target = $region436
      $region435: #{_lambda_.3} parent=11 // pred_region
        %s765 = sand.u32 1, 7
        %p766 = scmp.eq.s32.totalorder %s765, 0
        %p767 = pneg %p766
        // Predicated region
        $region448: #{_lambda_.3} parent=435 // pred_check
          _
        $region449: #{_lambda_.3} parent=435 // pred_check_branch
          %769 = sbr.rel (%p766) target = $region451
        $region450: #{_lambda_.3} parent=435 // pred_region
          %s770 = sand.u32 1, 7
          %s771 = ssub.s32 1, %s770
          %s772 = scalar_lea.vmem %s743, %s771
          %s773 = ssub.s32 1, %s770
          %s774 = scalar_lea.vmem %s744, %s773 [#allocation2]
          %s775 = sshllo.u32 0, %s770
          loop: start=0, step=1, limit=1
          $region452: #{_lambda_.3} parent=450 // loop_pre_header
            _
          $region453: #{_lambda_.3} parent=450 // loop_header
            %s777 = sphi 0, %s781
            %p778 = scmp.ge.s32.totalorder %s777, 1
            %s782 = sphi %s772, %s772
            %s783 = sphi %s774, %s774
          $region454: #{_lambda_.3} parent=450 // loop_header_branch
            %780 = sbr.rel (%p778) target = $region458
          $region455: #{_lambda_.3} parent=450 // loop_body
            %v784 = vld [vmem:[%s782] sm:%s775]
            %785 = vst [vmem:[%s783] sm:%s775] %v784
          $region456: #{_lambda_.3} parent=450 // loop_footer
            %s781 = sadd.s32 1, %s777
          $region457: #{_lambda_.3} parent=450 // loop_footer_branch
            %776 = sbr.rel target = $region453
          $region458: #{_lambda_.3} parent=450 // loop_exit
            _
        $region451: #{_lambda_.3} parent=435 // pred_fallthru
          _
      $region436: #{_lambda_.3} parent=11 // pred_fallthru
        _
      // Predicated region
      $region437: #{_lambda_.3} parent=11 // pred_check
        %p751 = pneg %p747
      $region438: #{_lambda_.3} parent=11 // pred_check_branch
        %753 = sbr.rel (%p751) target = $region440
      $region439: #{_lambda_.3} parent=11 // pred_region
        %s754 = sshllo.u32 0, 1
        loop: start=0, step=1, limit=1
        $region441: #{_lambda_.3} parent=439 // loop_pre_header
          _
        $region442: #{_lambda_.3} parent=439 // loop_header
          %s756 = sphi 0, %s760
          %p757 = scmp.ge.s32.totalorder %s756, 1
          %s761 = sphi %s743, %s743
          %s762 = sphi %s744, %s744
        $region443: #{_lambda_.3} parent=439 // loop_header_branch
          %759 = sbr.rel (%p757) target = $region447
        $region444: #{_lambda_.3} parent=439 // loop_body
          %v763 = vld [vmem:[%s761] sm:%s754]
          %764 = vst [vmem:[%s762] sm:%s754] %v763
        $region445: #{_lambda_.3} parent=439 // loop_footer
          %s760 = sadd.s32 1, %s756
        $region446: #{_lambda_.3} parent=439 // loop_footer_branch
          %755 = sbr.rel target = $region442
        $region447: #{_lambda_.3} parent=439 // loop_exit
          _
      $region440: #{_lambda_.3} parent=11 // pred_fallthru
        _
      // Predicated region
      $region459: #{_lambda_.3} parent=11 // pred_check
        _
      $region460: #{_lambda_.3} parent=11 // pred_check_branch
        %788 = sbr.rel (0) target = $region462
      $region461: #{_lambda_.3} parent=11 // pred_region
        %789 = vsyncadd %s745, 16
      $region462: #{_lambda_.3} parent=11 // pred_fallthru
        _
      %s790 = sadd.s32 %s57, 15
      %s791 = sld [smem:[#allocation5 + %s790]]
      %s792 = scalar_lea.vmem %s1, %s791
      %s793 = scalar_lea.vmem [#allocation2], 15
      %s794 = scalar_lea.sflag [#allocation3], 15
      %p796 = scmp.lt.u32.totalorder 1, 8
      %p797 = pneg %p796
      // Predicated region
      $region463: #{_lambda_.3} parent=11 // pred_check
        _
      $region464: #{_lambda_.3} parent=11 // pred_check_branch
        %799 = sbr.rel (%p796) target = $region466
      $region465: #{_lambda_.3} parent=11 // pred_region
        %s814 = sand.u32 1, 7
        %p815 = scmp.eq.s32.totalorder %s814, 0
        %p816 = pneg %p815
        // Predicated region
        $region478: #{_lambda_.3} parent=465 // pred_check
          _
        $region479: #{_lambda_.3} parent=465 // pred_check_branch
          %818 = sbr.rel (%p815) target = $region481
        $region480: #{_lambda_.3} parent=465 // pred_region
          %s819 = sand.u32 1, 7
          %s820 = ssub.s32 1, %s819
          %s821 = scalar_lea.vmem %s792, %s820
          %s822 = ssub.s32 1, %s819
          %s823 = scalar_lea.vmem %s793, %s822 [#allocation2]
          %s824 = sshllo.u32 0, %s819
          loop: start=0, step=1, limit=1
          $region482: #{_lambda_.3} parent=480 // loop_pre_header
            _
          $region483: #{_lambda_.3} parent=480 // loop_header
            %s826 = sphi 0, %s830
            %p827 = scmp.ge.s32.totalorder %s826, 1
            %s831 = sphi %s821, %s821
            %s832 = sphi %s823, %s823
          $region484: #{_lambda_.3} parent=480 // loop_header_branch
            %829 = sbr.rel (%p827) target = $region488
          $region485: #{_lambda_.3} parent=480 // loop_body
            %v833 = vld [vmem:[%s831] sm:%s824]
            %834 = vst [vmem:[%s832] sm:%s824] %v833
          $region486: #{_lambda_.3} parent=480 // loop_footer
            %s830 = sadd.s32 1, %s826
          $region487: #{_lambda_.3} parent=480 // loop_footer_branch
            %825 = sbr.rel target = $region483
          $region488: #{_lambda_.3} parent=480 // loop_exit
            _
        $region481: #{_lambda_.3} parent=465 // pred_fallthru
          _
      $region466: #{_lambda_.3} parent=11 // pred_fallthru
        _
      // Predicated region
      $region467: #{_lambda_.3} parent=11 // pred_check
        %p800 = pneg %p796
      $region468: #{_lambda_.3} parent=11 // pred_check_branch
        %802 = sbr.rel (%p800) target = $region470
      $region469: #{_lambda_.3} parent=11 // pred_region
        %s803 = sshllo.u32 0, 1
        loop: start=0, step=1, limit=1
        $region471: #{_lambda_.3} parent=469 // loop_pre_header
          _
        $region472: #{_lambda_.3} parent=469 // loop_header
          %s805 = sphi 0, %s809
          %p806 = scmp.ge.s32.totalorder %s805, 1
          %s810 = sphi %s792, %s792
          %s811 = sphi %s793, %s793
        $region473: #{_lambda_.3} parent=469 // loop_header_branch
          %808 = sbr.rel (%p806) target = $region477
        $region474: #{_lambda_.3} parent=469 // loop_body
          %v812 = vld [vmem:[%s810] sm:%s803]
          %813 = vst [vmem:[%s811] sm:%s803] %v812
        $region475: #{_lambda_.3} parent=469 // loop_footer
          %s809 = sadd.s32 1, %s805
        $region476: #{_lambda_.3} parent=469 // loop_footer_branch
          %804 = sbr.rel target = $region472
        $region477: #{_lambda_.3} parent=469 // loop_exit
          _
      $region470: #{_lambda_.3} parent=11 // pred_fallthru
        _
      // Predicated region
      $region489: #{_lambda_.3} parent=11 // pred_check
        _
      $region490: #{_lambda_.3} parent=11 // pred_check_branch
        %837 = sbr.rel (0) target = $region492
      $region491: #{_lambda_.3} parent=11 // pred_region
        %838 = vsyncadd %s794, 16
      $region492: #{_lambda_.3} parent=11 // pred_fallthru
        _
      loop: start=0, step=1, limit=256
      $region493: #{_lambda_.3} parent=11 // loop_pre_header
        _
      $region494: #{_lambda_.3} parent=11 // loop_header
        %s840 = sphi 0, %s844
        %p841 = scmp.ge.s32.totalorder %s840, 256
      $region495: #{_lambda_.3} parent=11 // loop_header_branch
        %843 = sbr.rel (%p841) target = $region499
      $region496: #{_lambda_.3} parent=11 // loop_body
        %p845 = scmp.lt.s32.totalorder %s840, 0
        %s846 = ssub.s32 0, %s840
        %s847 = scalar_select %p845, %s846, %s840
        %s848 = sand.u32 %s847, 15
        %s849 = ssub.s32 0, %s848
        %s850 = scalar_select %p845, %s849, %s848
        %p851 = scmp.ne.s32.totalorder %s850, 0
        %p852 = scmp.lt.s32.totalorder %s850, 0
        %p853 = pnand %p852, %p851
        %p854 = pneg %p853
        %s855 = sadd.s32 %s850, 16
        %s856 = scalar_select %p854, %s855, %s850
        %s857 = sadd.s32 %s57, %s840
        %s858 = sld [smem:[#allocation5 + %s857]]
        %s859 = scalar_lea.sflag [#allocation3], %s856
        %s860 = smul.u32 1, 1
        %s861 = sshll.u32 %s860, 4
        %862 = dma.done %s859, %s861
        %s863 = sadd.s32 %s840, 16
        %p864 = scmp.lt.s32.totalorder %s863, 256
        // Predicated region
        $region500: #{_lambda_.3} parent=496 // pred_check
          %p865 = pneg %p864
        $region501: #{_lambda_.3} parent=496 // pred_check_branch
          %867 = sbr.rel (%p865) target = $region503
        $region502: #{_lambda_.3} parent=496 // pred_region
          %s868 = sadd.s32 %s57, %s863
          %s869 = sld [smem:[#allocation5 + %s868]]
          %s870 = scalar_lea.vmem %s1, %s869
          %s871 = scalar_lea.vmem [#allocation2], %s863
          %p873 = scmp.lt.u32.totalorder 1, 8
          %p874 = pneg %p873
          // Predicated region
          $region504: #{_lambda_.3} parent=502 // pred_check
            _
          $region505: #{_lambda_.3} parent=502 // pred_check_branch
            %876 = sbr.rel (%p873) target = $region507
          $region506: #{_lambda_.3} parent=502 // pred_region
            %s891 = sand.u32 1, 7
            %p892 = scmp.eq.s32.totalorder %s891, 0
            %p893 = pneg %p892
            // Predicated region
            $region519: #{_lambda_.3} parent=506 // pred_check
              _
            $region520: #{_lambda_.3} parent=506 // pred_check_branch
              %895 = sbr.rel (%p892) target = $region522
            $region521: #{_lambda_.3} parent=506 // pred_region
              %s896 = sand.u32 1, 7
              %s897 = ssub.s32 1, %s896
              %s898 = scalar_lea.vmem %s870, %s897
              %s899 = ssub.s32 1, %s896
              %s900 = scalar_lea.vmem %s871, %s899 [#allocation2]
              %s901 = sshllo.u32 0, %s896
              loop: start=0, step=1, limit=1
              $region523: #{_lambda_.3} parent=521 // loop_pre_header
                _
              $region524: #{_lambda_.3} parent=521 // loop_header
                %s903 = sphi 0, %s907
                %p904 = scmp.ge.s32.totalorder %s903, 1
                %s908 = sphi %s898, %s898
                %s909 = sphi %s900, %s900
              $region525: #{_lambda_.3} parent=521 // loop_header_branch
                %906 = sbr.rel (%p904) target = $region529
              $region526: #{_lambda_.3} parent=521 // loop_body
                %v910 = vld [vmem:[%s908] sm:%s901]
                %911 = vst [vmem:[%s909] sm:%s901] %v910
              $region527: #{_lambda_.3} parent=521 // loop_footer
                %s907 = sadd.s32 1, %s903
              $region528: #{_lambda_.3} parent=521 // loop_footer_branch
                %902 = sbr.rel target = $region524
              $region529: #{_lambda_.3} parent=521 // loop_exit
                _
            $region522: #{_lambda_.3} parent=506 // pred_fallthru
              _
          $region507: #{_lambda_.3} parent=502 // pred_fallthru
            _
          // Predicated region
          $region508: #{_lambda_.3} parent=502 // pred_check
            %p877 = pneg %p873
          $region509: #{_lambda_.3} parent=502 // pred_check_branch
            %879 = sbr.rel (%p877) target = $region511
          $region510: #{_lambda_.3} parent=502 // pred_region
            %s880 = sshllo.u32 0, 1
            loop: start=0, step=1, limit=1
            $region512: #{_lambda_.3} parent=510 // loop_pre_header
              _
            $region513: #{_lambda_.3} parent=510 // loop_header
              %s882 = sphi 0, %s886
              %p883 = scmp.ge.s32.totalorder %s882, 1
              %s887 = sphi %s870, %s870
              %s888 = sphi %s871, %s871
            $region514: #{_lambda_.3} parent=510 // loop_header_branch
              %885 = sbr.rel (%p883) target = $region518
            $region515: #{_lambda_.3} parent=510 // loop_body
              %v889 = vld [vmem:[%s887] sm:%s880]
              %890 = vst [vmem:[%s888] sm:%s880] %v889
            $region516: #{_lambda_.3} parent=510 // loop_footer
              %s886 = sadd.s32 1, %s882
            $region517: #{_lambda_.3} parent=510 // loop_footer_branch
              %881 = sbr.rel target = $region513
            $region518: #{_lambda_.3} parent=510 // loop_exit
              _
          $region511: #{_lambda_.3} parent=502 // pred_fallthru
            _
          // Predicated region
          $region530: #{_lambda_.3} parent=502 // pred_check
            _
          $region531: #{_lambda_.3} parent=502 // pred_check_branch
            %914 = sbr.rel (0) target = $region533
          $region532: #{_lambda_.3} parent=502 // pred_region
            %915 = vsyncadd %s859, 16
          $region533: #{_lambda_.3} parent=502 // pred_fallthru
            _
        $region503: #{_lambda_.3} parent=496 // pred_fallthru
          _
      $region497: #{_lambda_.3} parent=11 // loop_footer
        %s844 = sadd.s32 1, %s840
      $region498: #{_lambda_.3} parent=11 // loop_footer_branch
        %839 = sbr.rel target = $region494
      $region499: #{_lambda_.3} parent=11 // loop_exit
        _
      %v916 = vld [vmem:[#allocation2] sm:$0xff]
      %v917 = vld [vmem:[#allocation2 + $0x8] sm:$0xff]
      %v918 = vld [vmem:[#allocation2 + $0x10] sm:$0xff]
      %v919 = vld [vmem:[#allocation2 + $0x18] sm:$0xff]
      %v920 = vld [vmem:[#allocation2 + $0x20] sm:$0xff]
      %v921 = vld [vmem:[#allocation2 + $0x28] sm:$0xff]
      %v922 = vld [vmem:[#allocation2 + $0x30] sm:$0xff]
      %v923 = vld [vmem:[#allocation2 + $0x38] sm:$0xff]
      %v924 = vld [vmem:[#allocation2 + $0x40] sm:$0xff]
      %v925 = vld [vmem:[#allocation2 + $0x48] sm:$0xff]
      %v926 = vld [vmem:[#allocation2 + $0x50] sm:$0xff]
      %v927 = vld [vmem:[#allocation2 + $0x58] sm:$0xff]
      %v928 = vld [vmem:[#allocation2 + $0x60] sm:$0xff]
      %v929 = vld [vmem:[#allocation2 + $0x68] sm:$0xff]
      %v930 = vld [vmem:[#allocation2 + $0x70] sm:$0xff]
      %v931 = vld [vmem:[#allocation2 + $0x78] sm:$0xff]
      %v932 = vld [vmem:[#allocation2 + $0x80] sm:$0xff]
      %v933 = vld [vmem:[#allocation2 + $0x88] sm:$0xff]
      %v934 = vld [vmem:[#allocation2 + $0x90] sm:$0xff]
      %v935 = vld [vmem:[#allocation2 + $0x98] sm:$0xff]
      %v936 = vld [vmem:[#allocation2 + $0xa0] sm:$0xff]
      %v937 = vld [vmem:[#allocation2 + $0xa8] sm:$0xff]
      %v938 = vld [vmem:[#allocation2 + $0xb0] sm:$0xff]
      %v939 = vld [vmem:[#allocation2 + $0xb8] sm:$0xff]
      %v940 = vld [vmem:[#allocation2 + $0xc0] sm:$0xff]
      %v941 = vld [vmem:[#allocation2 + $0xc8] sm:$0xff]
      %v942 = vld [vmem:[#allocation2 + $0xd0] sm:$0xff]
      %v943 = vld [vmem:[#allocation2 + $0xd8] sm:$0xff]
      %v944 = vld [vmem:[#allocation2 + $0xe0] sm:$0xff]
      %v945 = vld [vmem:[#allocation2 + $0xe8] sm:$0xff]
      %v946 = vld [vmem:[#allocation2 + $0xf0] sm:$0xff]
      %v947 = vld [vmem:[#allocation2 + $0xf8] sm:$0xff]
      %948 = vst [vmem:[%s55] sm:$0xff] %v916
      %949 = vst [vmem:[%s55 + $0x8] sm:$0xff] %v917
      %950 = vst [vmem:[%s55 + $0x10] sm:$0xff] %v918
      %951 = vst [vmem:[%s55 + $0x18] sm:$0xff] %v919
      %952 = vst [vmem:[%s55 + $0x20] sm:$0xff] %v920
      %953 = vst [vmem:[%s55 + $0x28] sm:$0xff] %v921
      %954 = vst [vmem:[%s55 + $0x30] sm:$0xff] %v922
      %955 = vst [vmem:[%s55 + $0x38] sm:$0xff] %v923
      %956 = vst [vmem:[%s55 + $0x40] sm:$0xff] %v924
      %957 = vst [vmem:[%s55 + $0x48] sm:$0xff] %v925
      %958 = vst [vmem:[%s55 + $0x50] sm:$0xff] %v926
      %959 = vst [vmem:[%s55 + $0x58] sm:$0xff] %v927
      %960 = vst [vmem:[%s55 + $0x60] sm:$0xff] %v928
      %961 = vst [vmem:[%s55 + $0x68] sm:$0xff] %v929
      %962 = vst [vmem:[%s55 + $0x70] sm:$0xff] %v930
      %963 = vst [vmem:[%s55 + $0x78] sm:$0xff] %v931
      %964 = vst [vmem:[%s55 + $0x80] sm:$0xff] %v932
      %965 = vst [vmem:[%s55 + $0x88] sm:$0xff] %v933
      %966 = vst [vmem:[%s55 + $0x90] sm:$0xff] %v934
      %967 = vst [vmem:[%s55 + $0x98] sm:$0xff] %v935
      %968 = vst [vmem:[%s55 + $0xa0] sm:$0xff] %v936
      %969 = vst [vmem:[%s55 + $0xa8] sm:$0xff] %v937
      %970 = vst [vmem:[%s55 + $0xb0] sm:$0xff] %v938
      %971 = vst [vmem:[%s55 + $0xb8] sm:$0xff] %v939
      %972 = vst [vmem:[%s55 + $0xc0] sm:$0xff] %v940
      %973 = vst [vmem:[%s55 + $0xc8] sm:$0xff] %v941
      %974 = vst [vmem:[%s55 + $0xd0] sm:$0xff] %v942
      %975 = vst [vmem:[%s55 + $0xd8] sm:$0xff] %v943
      %976 = vst [vmem:[%s55 + $0xe0] sm:$0xff] %v944
      %977 = vst [vmem:[%s55 + $0xe8] sm:$0xff] %v945
      %978 = vst [vmem:[%s55 + $0xf0] sm:$0xff] %v946
      %979 = vst [vmem:[%s55 + $0xf8] sm:$0xff] %v947
      %s980 = smul.u32 32, %s14
      %p981 = scmp.lt.s32.totalorder %s980, 95
      %s982 = scalar_select %p981, %s980, 95
      %s983 = smul.addr %s982, 8
      %s984 = scalar_lea.vmem %s2, %s983
      // Predicated region
      $region534: #{_lambda_.3} parent=11 // pred_check
        %p985 = pneg %p29
      $region535: #{_lambda_.3} parent=11 // pred_check_branch
        %987 = sbr.rel (%p985) target = $region537
      $region536: #{_lambda_.3} parent=11 // pred_region
        %s988 = smul.u32 32, %s14
      $region537: #{_lambda_.3} parent=11 // pred_fallthru
        _
    $region12: #{_lambda_.3} parent=5 // pred_fallthru
      _
    %p989 = scmp.le.s32.totalorder 1, %s14
    // Predicated region
    $region538: #{_lambda_.3} parent=5 // pred_check
      %p990 = pneg %p989
    $region539: #{_lambda_.3} parent=5 // pred_check_branch
      %992 = sbr.rel (%p990) target = $region541
    $region540: #{_lambda_.3} parent=5 // pred_region
      %s993 = ssub.s32 %s14, 1
      // Predicated region
      $region542: #{_lambda_.3} parent=540 // pred_check
        %p994 = pneg %p35
      $region543: #{_lambda_.3} parent=540 // pred_check_branch
        %996 = sbr.rel (%p994) target = $region545
      $region544: #{_lambda_.3} parent=540 // pred_region
        %s997 = smul.u32 32, %s19
        %p998 = scmp.lt.s32.totalorder %s997, 95
        %s999 = scalar_select %p998, %s997, 95
        %s1000 = smul.addr %s999, 8
        %s1001 = scalar_lea.vmem %s2, %s1000
      $region545: #{_lambda_.3} parent=540 // pred_fallthru
        _
    $region541: #{_lambda_.3} parent=5 // pred_fallthru
      _
  $region6: #{_lambda_.3} parent=0 // loop_footer
    %s18 = sadd.s32 1, %s14
  $region7: #{_lambda_.3} parent=0 // loop_footer_branch
    %13 = sbr.rel target = $region3
  $region8: #{_lambda_.3} parent=0 // loop_exit
    _
  %1002 = vsyncmov [#allocation3]
  %s1003 = vpop.sfrf %1002
  %p1004 = scmp.eq.s32.totalorder %s1003, 0
  %p1005 = pneg %p1004
  %1007 = shalt.err (%p1005)
  %s1008 = scalar_lea.sflag [#allocation3], 1
  %1009 = vsyncmov %s1008
  %s1010 = vpop.sfrf %1009
  %p1011 = scmp.eq.s32.totalorder %s1010, 0
  %p1012 = pneg %p1011
  %1014 = shalt.err (%p1012)
  %s1015 = scalar_lea.sflag [#allocation3], 2
  %1016 = vsyncmov %s1015
  %s1017 = vpop.sfrf %1016
  %p1018 = scmp.eq.s32.totalorder %s1017, 0
  %p1019 = pneg %p1018
  %1021 = shalt.err (%p1019)
  %s1022 = scalar_lea.sflag [#allocation3], 3
  %1023 = vsyncmov %s1022
  %s1024 = vpop.sfrf %1023
  %p1025 = scmp.eq.s32.totalorder %s1024, 0
  %p1026 = pneg %p1025
  %1028 = shalt.err (%p1026)
  %s1029 = scalar_lea.sflag [#allocation3], 4
  %1030 = vsyncmov %s1029
  %s1031 = vpop.sfrf %1030
  %p1032 = scmp.eq.s32.totalorder %s1031, 0
  %p1033 = pneg %p1032
  %1035 = shalt.err (%p1033)
  %s1036 = scalar_lea.sflag [#allocation3], 5
  %1037 = vsyncmov %s1036
  %s1038 = vpop.sfrf %1037
  %p1039 = scmp.eq.s32.totalorder %s1038, 0
  %p1040 = pneg %p1039
  %1042 = shalt.err (%p1040)
  %s1043 = scalar_lea.sflag [#allocation3], 6
  %1044 = vsyncmov %s1043
  %s1045 = vpop.sfrf %1044
  %p1046 = scmp.eq.s32.totalorder %s1045, 0
  %p1047 = pneg %p1046
  %1049 = shalt.err (%p1047)
  %s1050 = scalar_lea.sflag [#allocation3], 7
  %1051 = vsyncmov %s1050
  %s1052 = vpop.sfrf %1051
  %p1053 = scmp.eq.s32.totalorder %s1052, 0
  %p1054 = pneg %p1053
  %1056 = shalt.err (%p1054)
  %s1057 = scalar_lea.sflag [#allocation3], 8
  %1058 = vsyncmov %s1057
  %s1059 = vpop.sfrf %1058
  %p1060 = scmp.eq.s32.totalorder %s1059, 0
  %p1061 = pneg %p1060
  %1063 = shalt.err (%p1061)
  %s1064 = scalar_lea.sflag [#allocation3], 9
  %1065 = vsyncmov %s1064
  %s1066 = vpop.sfrf %1065
  %p1067 = scmp.eq.s32.totalorder %s1066, 0
  %p1068 = pneg %p1067
  %1070 = shalt.err (%p1068)
  %s1071 = scalar_lea.sflag [#allocation3], 10
  %1072 = vsyncmov %s1071
  %s1073 = vpop.sfrf %1072
  %p1074 = scmp.eq.s32.totalorder %s1073, 0
  %p1075 = pneg %p1074
  %1077 = shalt.err (%p1075)
  %s1078 = scalar_lea.sflag [#allocation3], 11
  %1079 = vsyncmov %s1078
  %s1080 = vpop.sfrf %1079
  %p1081 = scmp.eq.s32.totalorder %s1080, 0
  %p1082 = pneg %p1081
  %1084 = shalt.err (%p1082)
  %s1085 = scalar_lea.sflag [#allocation3], 12
  %1086 = vsyncmov %s1085
  %s1087 = vpop.sfrf %1086
  %p1088 = scmp.eq.s32.totalorder %s1087, 0
  %p1089 = pneg %p1088
  %1091 = shalt.err (%p1089)
  %s1092 = scalar_lea.sflag [#allocation3], 13
  %1093 = vsyncmov %s1092
  %s1094 = vpop.sfrf %1093
  %p1095 = scmp.eq.s32.totalorder %s1094, 0
  %p1096 = pneg %p1095
  %1098 = shalt.err (%p1096)
  %s1099 = scalar_lea.sflag [#allocation3], 14
  %1100 = vsyncmov %s1099
  %s1101 = vpop.sfrf %1100
  %p1102 = scmp.eq.s32.totalorder %s1101, 0
  %p1103 = pneg %p1102
  %1105 = shalt.err (%p1103)
  %s1106 = scalar_lea.sflag [#allocation3], 15
  %1107 = vsyncmov %s1106
  %s1108 = vpop.sfrf %1107
  %p1109 = scmp.eq.s32.totalorder %s1108, 0
  %p1110 = pneg %p1109
  %1112 = shalt.err (%p1110)

</llo_original>
